<compile_context>
chip_gen: v5e
topology: v5e:2x2
jax: 0.10.0
libtpu: 0.0.40
codegen_flags: <defaults>
</compile_context>

<pallas_src>
import functools

import jax
import jax.numpy as jnp
from jax.experimental import pallas as pl
from jax.experimental.pallas import tpu as pltpu

C_IN = 3          # RGB input channels
C_PAD = 8         # input channels zero-padded to a sublane-aligned count
C_FEAT = 32       # feature channels
LRN_SIZE = 5
LRN_ALPHA = 1e-4
LRN_BETA = 0.75
LRN_K = 1.0


def _round_up(v, m):
    return (v + m - 1) // m * m


# ---------------------------------------------------------------------------
# Kernel A: Conv(3->32) -> ReLU -> Conv(32->32) -> LRN(5) -> * cos_window
# ---------------------------------------------------------------------------
def _feature_kernel(x_ref, w1_ref, b1_ref, w2_ref, b2_ref, band_ref,
                    mask_ref, win_ref, o_ref, *, E, WM, WOUT, offs):
    # x_ref:   (1, C_PAD, WX) bf16; G images per step, one 128-aligned lane
    #          slab per image (padded grid starts at slab offset 2E), zero tail
    # w1_ref:  (32, 72)   bf16 im2col conv1 weights
    # w2_ref:  (9, 32, 32) bf16 per-tap conv2 weights
    # b1/b2:   (32, 1) f32     band: (32, 32) bf16 LRN band matrix
    # mask_ref:(1, WM) f32 interior mask on the conv1-activation slab layout
    # win_ref: (1, WOUT) f32 Hann window on the output slab layout
    # o_ref:   (1, 32, WOUT) f32 windowed feature map (slab layout)
    x = x_ref[0].astype(jnp.float32)                              # (C_PAD, WX)

    # ---- conv1 (3x3, pad=1): one im2col MXU matmul (32,72)@(72,WM) ----
    p1 = jnp.concatenate([x[:, E + o: E + o + WM] for o in offs], axis=0)
    a1 = jnp.dot(w1_ref[...], p1.astype(jnp.bfloat16),
                 preferred_element_type=jnp.float32)              # (32, WM) f32
    a1 = jnp.maximum(a1 + b1_ref[...], 0.0) * mask_ref[...]       # ReLU + zero ring

    # ---- conv2 (3x3, pad=1): 9 per-tap accumulated matmuls (no 288-row
    #      staging buffer); each tap is a lane-shifted slice of a1 ----
    acc = jnp.zeros((C_FEAT, WOUT), jnp.float32)
    for t, o in enumerate(offs):
        tap = a1[:, E + o: E + o + WOUT].astype(jnp.bfloat16)
        acc = acc + jnp.dot(w2_ref[t], tap,
                            preferred_element_type=jnp.float32)
    a2 = acc + b2_ref[...]                                        # (32, WOUT) f32

    # ---- LocalResponseNorm(size=5, alpha=1e-4, beta=0.75, k=1) over channels
    sq = (a2 * a2).astype(jnp.bfloat16)
    ssum = jnp.dot(band_ref[...], sq, preferred_element_type=jnp.float32)
    base = LRN_K + (LRN_ALPHA / LRN_SIZE) * ssum                  # always >= 1
    inv_denom = jnp.exp(-LRN_BETA * jnp.log(base))                # base**-0.75 (EUP)

    # ---- cosine (Hann) window; zeroes everything outside the interior ----
    o_ref[0] = a2 * inv_denom * win_ref[...]


def feature_extract(x_nchw, w1_oihw, b1, w2_oihw, b2, cosw):
    """Conv/ReLU/Conv/LRN/window.  Returns (B, 32, H, W) float32."""
    B, Cin, H, W = x_nchw.shape
    Hp, Wp = H + 2, W + 2
    L = Hp * Wp                       # flattened zero-padded grid
    E = Wp + 1                        # max |3x3 tap offset| on the flat grid
    Lext2 = L + 4 * E
    Px = _round_up(Lext2, 128)        # per-image lane slab stride (128-aligned)
    Epad = _round_up(2 * E, 128)      # zero tail so static slices stay in-bounds
    NSTEPS = 2 if B > 1 else 1        # two "parallel" steps -> both v7x TCs busy
    G = -(-B // NSTEPS)               # images folded per grid step
    Bpad = NSTEPS * G
    WX = G * Px + 2 * Epad            # input lane width per step
    WM = G * Px + Epad                # conv1 activation lane width
    WOUT = G * Px                     # output lane width (multiple of 128)
    offs = tuple(dy * Wp + dx for dy in (-1, 0, 1) for dx in (-1, 0, 1))

    # --- wrapper-side prep (tiny; fuses into the surrounding jit) ---
    # input: pad channels 3->8, zero spatial border, flatten, place per-image
    # slabs at offset 2E, fold G images per grid step on the lane axis.
    xp = jnp.pad(x_nchw.astype(jnp.float32),
                 ((0, 0), (0, C_PAD - Cin), (1, 1), (1, 1)))       # (B,8,Hp,Wp)
    x_slab = jnp.zeros((Bpad, C_PAD, Px), jnp.float32)
    x_slab = x_slab.at[:B, :, 2 * E:2 * E + L].set(xp.reshape(B, C_PAD, L))
    x_steps = (x_slab.reshape(NSTEPS, G, C_PAD, Px)
               .transpose(0, 2, 1, 3).reshape(NSTEPS, C_PAD, G * Px))
    x_ext = jnp.pad(x_steps, ((0, 0), (0, 0), (0, 2 * Epad))
                    ).astype(jnp.bfloat16)                         # (NSTEPS,8,WX)

    # conv weights arrive in PyTorch OIHW layout; convert for the MXU (bf16).
    w1_hwio = jnp.transpose(w1_oihw.astype(jnp.float32), (2, 3, 1, 0))
    w1_hwio = jnp.pad(w1_hwio, ((0, 0), (0, 0), (0, C_PAD - Cin), (0, 0)))
    w1t = w1_hwio.reshape(9 * C_PAD, C_FEAT).T.astype(jnp.bfloat16)      # (32,72)
    w2_taps = (jnp.transpose(w2_oihw.astype(jnp.float32), (2, 3, 0, 1))
               .reshape(9, C_FEAT, C_FEAT).astype(jnp.bfloat16))         # (9,32,32)
    b1c = b1.reshape(C_FEAT, 1).astype(jnp.float32)
    b2c = b2.reshape(C_FEAT, 1).astype(jnp.float32)

    # LRN band matrix |i-j| <= 2 (hoisted out of the kernel)
    ii = jnp.arange(C_FEAT)[:, None]
    jj = jnp.arange(C_FEAT)[None, :]
    band = (jnp.abs(ii - jj) <= (LRN_SIZE // 2)).astype(jnp.bfloat16)

    # interior mask on the conv1-activation slab layout (index g*Px + E + q)
    row = jnp.arange(Hp)[:, None]
    col = jnp.arange(Wp)[None, :]
    interior = ((row >= 1) & (row <= H) & (col >= 1) & (col <= W))
    interior = interior.astype(jnp.float32).reshape(L)
    mask1 = jnp.zeros((Px,), jnp.float32).at[E:E + L].set(interior)
    mask = jnp.concatenate([jnp.tile(mask1, (G,)),
                            jnp.zeros((Epad,), jnp.float32)]).reshape(1, WM)

    # Hann window on the output slab layout (index g*Px + p); zero outside
    wgrid = jnp.zeros((Hp, Wp), jnp.float32
                      ).at[1:H + 1, 1:W + 1].set(cosw.astype(jnp.float32))
    win1 = jnp.zeros((Px,), jnp.float32).at[:L].set(wgrid.reshape(L))
    win = jnp.tile(win1, (G,)).reshape(1, WOUT)

    kernel = functools.partial(_feature_kernel, E=E, WM=WM, WOUT=WOUT, offs=offs)
    out = pl.pallas_call(
        kernel,
        out_shape=jax.ShapeDtypeStruct((NSTEPS, C_FEAT, WOUT), jnp.float32),
        grid=(NSTEPS,),
        in_specs=[
            pl.BlockSpec((1, C_PAD, WX), lambda s: (s, 0, 0)),
            pl.BlockSpec((C_FEAT, 9 * C_PAD), lambda s: (0, 0)),
            pl.BlockSpec((C_FEAT, 1), lambda s: (0, 0)),
            pl.BlockSpec((9, C_FEAT, C_FEAT), lambda s: (0, 0, 0)),
            pl.BlockSpec((C_FEAT, 1), lambda s: (0, 0)),
            pl.BlockSpec((C_FEAT, C_FEAT), lambda s: (0, 0)),
            pl.BlockSpec((1, WM), lambda s: (0, 0)),
            pl.BlockSpec((1, WOUT), lambda s: (0, 0)),
        ],
        out_specs=pl.BlockSpec((1, C_FEAT, WOUT), lambda s: (s, 0, 0)),
        compiler_params=pltpu.CompilerParams(
            dimension_semantics=("parallel",)),
    )(x_ext, w1t, b1c, w2_taps, b2c, band, mask, win)

    # un-fold the slabs: (NSTEPS, 32, G*Px) -> (B, 32, Hp, Wp) -> interior
    out = (out.reshape(NSTEPS, C_FEAT, G, Px)
           .transpose(0, 2, 1, 3).reshape(Bpad, C_FEAT, Px))
    feat = out[:B, :, :L].reshape(B, C_FEAT, Hp, Wp)[:, :, 1:H + 1, 1:W + 1]
    return feat


# ---------------------------------------------------------------------------
# Kernel B: kxzf = sum_c xf * conj(zf); response spectrum = kxzf * alphaf
# ---------------------------------------------------------------------------
def _corr_kernel(xr_ref, xi_ref, zr_ref, zi_ref, ar_ref, ai_ref, or_ref, oi_ref):
    # xr/xi: (B, C, S)   zr/zi: (C, S)   ar/ai: (1, S)   outputs: (B, S)
    xr = xr_ref[...]
    xi = xi_ref[...]
    zr = zr_ref[...]
    zi = zi_ref[...]
    # complex_mulconj(xf, zf) summed over channels (sublane reduce, XLU)
    kr = jnp.sum(xr * zr + xi * zi, axis=1)                        # (B, S)
    ki = jnp.sum(xi * zr - xr * zi, axis=1)                        # (B, S)
    ar = ar_ref[...]
    ai = ai_ref[...]
    # complex_mul(kxzf, alphaf) folded into the same kernel
    or_ref[...] = kr * ar - ki * ai
    oi_ref[...] = kr * ai + ki * ar


def correlation(xr, xi, zr, zi, ar, ai):
    B, C, S = xr.shape
    cost = pl.CostEstimate(
        flops=10 * B * C * S,
        transcendentals=0,
        bytes_accessed=4 * (2 * B * C * S + 2 * C * S + 2 * S + 2 * B * S))
    return pl.pallas_call(
        _corr_kernel,
        out_shape=(jax.ShapeDtypeStruct((B, S), jnp.float32),
                   jax.ShapeDtypeStruct((B, S), jnp.float32)),
        grid=(1,),
        in_specs=[
            pl.BlockSpec((B, C, S), lambda i: (0, 0, 0)),
            pl.BlockSpec((B, C, S), lambda i: (0, 0, 0)),
            pl.BlockSpec((C, S), lambda i: (0, 0)),
            pl.BlockSpec((C, S), lambda i: (0, 0)),
            pl.BlockSpec((1, S), lambda i: (0, 0)),
            pl.BlockSpec((1, S), lambda i: (0, 0)),
        ],
        out_specs=(pl.BlockSpec((B, S), lambda i: (0, 0)),
                   pl.BlockSpec((B, S), lambda i: (0, 0))),
        compiler_params=pltpu.CompilerParams(
            dimension_semantics=("arbitrary",)),
        cost_estimate=cost,
    )(xr, xi, zr, zi, ar, ai)


# ---------------------------------------------------------------------------
# Forward pass
# ---------------------------------------------------------------------------
@jax.jit
def dcfnet_forward(x_nchw, params):
    """DCFNet.forward: x (B, 3, H, W) -> response (B, 1, H, W)."""
    w1, b1, w2, b2, cosw, zf_r, zf_i, af_r, af_i = params
    B, _, H, W = x_nchw.shape

    feat = feature_extract(x_nchw, w1, b1, w2, b2, cosw)           # (B, 32, H, W)

    # TODO(synk): torch.rfft / torch.irfft (2-D FFT) have no Pallas/Mosaic
    # primitive; the FFTs stay in XLA while the complex correlation is Pallas.
    xf = jnp.fft.rfft2(feat, axes=(2, 3))                          # (B, 32, H, Wf)
    Wf = W // 2 + 1
    S = H * Wf

    # channels stay on sublanes: (B, 32, S) -- no XLA transpose/relayout needed
    xr = xf.real.astype(jnp.float32).reshape(B, C_FEAT, S)
    xi = xf.imag.astype(jnp.float32).reshape(B, C_FEAT, S)
    zr = zf_r.astype(jnp.float32).reshape(C_FEAT, S)
    zi = zf_i.astype(jnp.float32).reshape(C_FEAT, S)
    ar = af_r.astype(jnp.float32).reshape(1, S)
    ai = af_i.astype(jnp.float32).reshape(1, S)

    kr, ki = correlation(xr, xi, zr, zi, ar, ai)                   # (B, S) each
    resp_f = (kr + 1j * ki).reshape(B, H, Wf)
    resp = jnp.fft.irfft2(resp_f, s=(H, W), axes=(1, 2))           # (B, H, W)
    return resp[:, None, :, :].astype(jnp.float32)                 # (B, 1, H, W)


# ---------------------------------------------------------------------------
# Pure-JAX (XLA) reference for a loose correctness check
# ---------------------------------------------------------------------------
@jax.jit
def _reference_forward(x, params):
    w1, b1, w2, b2, cosw, zf_r, zf_i, af_r, af_i = params
    B, _, H, W = x.shape
    dn = ("NCHW", "HWIO", "NCHW")
    hp = jax.lax.Precision.HIGHEST
    a = jax.lax.conv_general_dilated(
        x, jnp.transpose(w1, (2, 3, 1, 0)), (1, 1), "SAME",
        dimension_numbers=dn, precision=hp) + b1.reshape(1, -1, 1, 1)
    a = jnp.maximum(a, 0.0)
    a = jax.lax.conv_general_dilated(
        a, jnp.transpose(w2, (2, 3, 1, 0)), (1, 1), "SAME",
        dimension_numbers=dn, precision=hp) + b2.reshape(1, -1, 1, 1)
    sq = jnp.pad(a * a, ((0, 0), (LRN_SIZE // 2, LRN_SIZE // 2), (0, 0), (0, 0)))
    ssum = sum(sq[:, i:i + C_FEAT] for i in range(LRN_SIZE))
    feat = a / (LRN_K + (LRN_ALPHA / LRN_SIZE) * ssum) ** LRN_BETA
    feat = feat * cosw[None, None]
    xf = jnp.fft.rfft2(feat, axes=(2, 3))
    kxzf = jnp.sum(xf * jnp.conj(zf_r + 1j * zf_i)[None], axis=1)  # (B, H, Wf)
    resp = jnp.fft.irfft2(kxzf * (af_r + 1j * af_i)[None], s=(H, W), axes=(1, 2))
    return resp[:, None, :, :]


if __name__ == "__main__":
    B, H, W = 2, 16, 16
    Wf = W // 2 + 1

    key = jax.random.PRNGKey(0)
    ks = jax.random.split(key, 8)

    # deterministic synthetic parameters, PyTorch layouts (OIHW conv weights)
    x = jax.random.normal(ks[0], (B, C_IN, H, W), jnp.float32)
    w1 = jax.random.normal(ks[1], (C_FEAT, C_IN, 3, 3), jnp.float32) * 0.1
    b1 = jnp.full((C_FEAT,), 0.01, jnp.float32)
    w2 = jax.random.normal(ks[2], (C_FEAT, C_FEAT, 3, 3), jnp.float32) * 0.1
    b2 = jnp.full((C_FEAT,), 0.01, jnp.float32)

    # config.cos_window: outer product of Hann windows (DCFNet tracker config)
    hann_h = 0.5 - 0.5 * jnp.cos(2.0 * jnp.pi * jnp.arange(H) / (H - 1))
    hann_w = 0.5 - 0.5 * jnp.cos(2.0 * jnp.pi * jnp.arange(W) / (W - 1))
    cosw = jnp.outer(hann_h, hann_w).astype(jnp.float32)

    # synthetic tracker state: model_zf (template spectrum) and model_alphaf
    zf_r = jax.random.normal(ks[3], (C_FEAT, H, Wf), jnp.float32)
    zf_i = jax.random.normal(ks[4], (C_FEAT, H, Wf), jnp.float32)
    af_r = jax.random.normal(ks[5], (H, Wf), jnp.float32)
    af_i = jax.random.normal(ks[6], (H, Wf), jnp.float32)

    params = (w1, b1, w2, b2, cosw, zf_r, zf_i, af_r, af_i)

    out = dcfnet_forward(x, params)
    jax.block_until_ready(out)
    assert out.shape == (B, 1, H, W)
    assert bool(jnp.all(jnp.isfinite(out)))

    # loose-tolerance check vs. an XLA reference (kernel uses bf16 MXU operands)
    ref = _reference_forward(x, params)
    err = float(jnp.max(jnp.abs(out - ref)) / (jnp.max(jnp.abs(ref)) + 1e-6))
    assert err < 5e-2, f"mismatch vs reference: rel-to-max err {err:.4f}"
    print("KERNEL_OK")
</pallas_src>

<mosaic_0001>
module attributes {stable_mosaic.version = 11 : i64} {
  func.func @_feature_kernel(%arg0: i32, %arg1: memref<1x8x768xbf16, #tpu.memory_space<vmem>>, %arg2: memref<32x72xbf16, #tpu.memory_space<vmem>>, %arg3: memref<32x1xf32, #tpu.memory_space<vmem>>, %arg4: memref<9x32x32xbf16, #tpu.memory_space<vmem>>, %arg5: memref<32x1xf32, #tpu.memory_space<vmem>>, %arg6: memref<32x32xbf16, #tpu.memory_space<vmem>>, %arg7: memref<1x640xf32, #tpu.memory_space<vmem>>, %arg8: memref<1x512xf32, #tpu.memory_space<vmem>>, %arg9: memref<1x32x512xf32, #tpu.memory_space<vmem>>) attributes {dimension_semantics = [#tpu.dimension_semantics<parallel>], iteration_bounds = array<i64: 2>, scalar_prefetch = 0 : i64, scratch_operands = 0 : i64, tpu.core_type = #tpu.core_type<tc>, window_params = [{transform_indices = @transform_0, window_bounds = array<i64: 1, 8, 768>}, {pipeline_mode = #tpu.pipeline_mode<synchronous>, transform_indices = @transform_1, window_bounds = array<i64: 32, 72>}, {pipeline_mode = #tpu.pipeline_mode<synchronous>, transform_indices = @transform_2, window_bounds = array<i64: 32, 1>}, {pipeline_mode = #tpu.pipeline_mode<synchronous>, transform_indices = @transform_3, window_bounds = array<i64: 9, 32, 32>}, {pipeline_mode = #tpu.pipeline_mode<synchronous>, transform_indices = @transform_4, window_bounds = array<i64: 32, 1>}, {pipeline_mode = #tpu.pipeline_mode<synchronous>, transform_indices = @transform_5, window_bounds = array<i64: 32, 32>}, {pipeline_mode = #tpu.pipeline_mode<synchronous>, transform_indices = @transform_6, window_bounds = array<i64: 1, 640>}, {pipeline_mode = #tpu.pipeline_mode<synchronous>, transform_indices = @transform_7, window_bounds = array<i64: 1, 512>}, {transform_indices = @transform_8, window_bounds = array<i64: 1, 32, 512>}]} {
    %c0 = arith.constant 0 : index
    %c0_0 = arith.constant 0 : index
    %c0_1 = arith.constant 0 : index
    %0 = vector.load %arg1[%c0, %c0_0, %c0_1] : memref<1x8x768xbf16, #tpu.memory_space<vmem>>, vector<1x8x768xbf16>
    %1 = vector.shape_cast %0 : vector<1x8x768xbf16> to vector<8x768xbf16>
    %2 = arith.extf %1 : vector<8x768xbf16> to vector<8x768xf32>
    %3 = vector.extract_strided_slice %2 {offsets = [0, 0], sizes = [8, 640], strides = [1, 1]} : vector<8x768xf32> to vector<8x640xf32>
    %4 = vector.extract_strided_slice %2 {offsets = [0, 1], sizes = [8, 640], strides = [1, 1]} : vector<8x768xf32> to vector<8x640xf32>
    %5 = vector.extract_strided_slice %2 {offsets = [0, 2], sizes = [8, 640], strides = [1, 1]} : vector<8x768xf32> to vector<8x640xf32>
    %6 = vector.extract_strided_slice %2 {offsets = [0, 18], sizes = [8, 640], strides = [1, 1]} : vector<8x768xf32> to vector<8x640xf32>
    %7 = vector.extract_strided_slice %2 {offsets = [0, 19], sizes = [8, 640], strides = [1, 1]} : vector<8x768xf32> to vector<8x640xf32>
    %8 = vector.extract_strided_slice %2 {offsets = [0, 20], sizes = [8, 640], strides = [1, 1]} : vector<8x768xf32> to vector<8x640xf32>
    %9 = vector.extract_strided_slice %2 {offsets = [0, 36], sizes = [8, 640], strides = [1, 1]} : vector<8x768xf32> to vector<8x640xf32>
    %10 = vector.extract_strided_slice %2 {offsets = [0, 37], sizes = [8, 640], strides = [1, 1]} : vector<8x768xf32> to vector<8x640xf32>
    %11 = vector.extract_strided_slice %2 {offsets = [0, 38], sizes = [8, 640], strides = [1, 1]} : vector<8x768xf32> to vector<8x640xf32>
    %12 = tpu.concatenate %3, %4, %5, %6, %7, %8, %9, %10, %11 in 0 : vector<8x640xf32>, vector<8x640xf32>, vector<8x640xf32>, vector<8x640xf32>, vector<8x640xf32>, vector<8x640xf32>, vector<8x640xf32>, vector<8x640xf32>, vector<8x640xf32> -> vector<72x640xf32>
    %c0_2 = arith.constant 0 : index
    %c0_3 = arith.constant 0 : index
    %13 = vector.load %arg2[%c0_2, %c0_3] : memref<32x72xbf16, #tpu.memory_space<vmem>>, vector<32x72xbf16>
    %14 = arith.truncf %12 : vector<72x640xf32> to vector<72x640xbf16>
    %cst = arith.constant dense<0.000000e+00> : vector<32x640xf32>
    %15 = tpu.matmul %13, %14, %cst {dimension_numbers = #tpu.dot_dimension_numbers<[1], [0], [0], [1], [0, 0, 1, 1], [], []>} : vector<32x72xbf16>, vector<72x640xbf16>, vector<32x640xf32> -> vector<32x640xf32>
    %c0_4 = arith.constant 0 : index
    %c0_5 = arith.constant 0 : index
    %16 = vector.load %arg3[%c0_4, %c0_5] : memref<32x1xf32, #tpu.memory_space<vmem>>, vector<32x1xf32>
    %17 = vector.broadcast %16 : vector<32x1xf32> to vector<32x640xf32>
    %18 = arith.addf %15, %17 : vector<32x640xf32>
    %cst_6 = arith.constant 0.000000e+00 : f32
    %19 = vector.broadcast %cst_6 : f32 to vector<32x640xf32>
    %20 = arith.maximumf %18, %19 : vector<32x640xf32>
    %c0_7 = arith.constant 0 : index
    %c0_8 = arith.constant 0 : index
    %21 = vector.load %arg7[%c0_7, %c0_8] : memref<1x640xf32, #tpu.memory_space<vmem>>, vector<1x640xf32>
    %22 = vector.broadcast %21 : vector<1x640xf32> to vector<32x640xf32>
    %23 = arith.mulf %20, %22 : vector<32x640xf32>
    %cst_9 = arith.constant 0.000000e+00 : f32
    %24 = vector.broadcast %cst_9 : f32 to vector<32x512xf32>
    %25 = vector.extract_strided_slice %23 {offsets = [0, 0], sizes = [32, 512], strides = [1, 1]} : vector<32x640xf32> to vector<32x512xf32>
    %26 = arith.truncf %25 : vector<32x512xf32> to vector<32x512xbf16>
    %c0_10 = arith.constant 0 : index
    %c0_11 = arith.constant 0 : index
    %c0_12 = arith.constant 0 : index
    %27 = vector.load %arg4[%c0_10, %c0_11, %c0_12] : memref<9x32x32xbf16, #tpu.memory_space<vmem>>, vector<1x32x32xbf16>
    %28 = vector.shape_cast %27 : vector<1x32x32xbf16> to vector<32x32xbf16>
    %cst_13 = arith.constant dense<0.000000e+00> : vector<32x512xf32>
    %29 = tpu.matmul %28, %26, %cst_13 {dimension_numbers = #tpu.dot_dimension_numbers<[1], [0], [0], [1], [0, 0, 1, 1], [], []>} : vector<32x32xbf16>, vector<32x512xbf16>, vector<32x512xf32> -> vector<32x512xf32>
    %30 = arith.addf %24, %29 : vector<32x512xf32>
    %31 = vector.extract_strided_slice %23 {offsets = [0, 1], sizes = [32, 512], strides = [1, 1]} : vector<32x640xf32> to vector<32x512xf32>
    %32 = arith.truncf %31 : vector<32x512xf32> to vector<32x512xbf16>
    %c1 = arith.constant 1 : index
    %c0_14 = arith.constant 0 : index
    %c0_15 = arith.constant 0 : index
    %33 = vector.load %arg4[%c1, %c0_14, %c0_15] : memref<9x32x32xbf16, #tpu.memory_space<vmem>>, vector<1x32x32xbf16>
    %34 = vector.shape_cast %33 : vector<1x32x32xbf16> to vector<32x32xbf16>
    %cst_16 = arith.constant dense<0.000000e+00> : vector<32x512xf32>
    %35 = tpu.matmul %34, %32, %cst_16 {dimension_numbers = #tpu.dot_dimension_numbers<[1], [0], [0], [1], [0, 0, 1, 1], [], []>} : vector<32x32xbf16>, vector<32x512xbf16>, vector<32x512xf32> -> vector<32x512xf32>
    %36 = arith.addf %30, %35 : vector<32x512xf32>
    %37 = vector.extract_strided_slice %23 {offsets = [0, 2], sizes = [32, 512], strides = [1, 1]} : vector<32x640xf32> to vector<32x512xf32>
    %38 = arith.truncf %37 : vector<32x512xf32> to vector<32x512xbf16>
    %c2 = arith.constant 2 : index
    %c0_17 = arith.constant 0 : index
    %c0_18 = arith.constant 0 : index
    %39 = vector.load %arg4[%c2, %c0_17, %c0_18] : memref<9x32x32xbf16, #tpu.memory_space<vmem>>, vector<1x32x32xbf16>
    %40 = vector.shape_cast %39 : vector<1x32x32xbf16> to vector<32x32xbf16>
    %cst_19 = arith.constant dense<0.000000e+00> : vector<32x512xf32>
    %41 = tpu.matmul %40, %38, %cst_19 {dimension_numbers = #tpu.dot_dimension_numbers<[1], [0], [0], [1], [0, 0, 1, 1], [], []>} : vector<32x32xbf16>, vector<32x512xbf16>, vector<32x512xf32> -> vector<32x512xf32>
    %42 = arith.addf %36, %41 : vector<32x512xf32>
    %43 = vector.extract_strided_slice %23 {offsets = [0, 18], sizes = [32, 512], strides = [1, 1]} : vector<32x640xf32> to vector<32x512xf32>
    %44 = arith.truncf %43 : vector<32x512xf32> to vector<32x512xbf16>
    %c3 = arith.constant 3 : index
    %c0_20 = arith.constant 0 : index
    %c0_21 = arith.constant 0 : index
    %45 = vector.load %arg4[%c3, %c0_20, %c0_21] : memref<9x32x32xbf16, #tpu.memory_space<vmem>>, vector<1x32x32xbf16>
    %46 = vector.shape_cast %45 : vector<1x32x32xbf16> to vector<32x32xbf16>
    %cst_22 = arith.constant dense<0.000000e+00> : vector<32x512xf32>
    %47 = tpu.matmul %46, %44, %cst_22 {dimension_numbers = #tpu.dot_dimension_numbers<[1], [0], [0], [1], [0, 0, 1, 1], [], []>} : vector<32x32xbf16>, vector<32x512xbf16>, vector<32x512xf32> -> vector<32x512xf32>
    %48 = arith.addf %42, %47 : vector<32x512xf32>
    %49 = vector.extract_strided_slice %23 {offsets = [0, 19], sizes = [32, 512], strides = [1, 1]} : vector<32x640xf32> to vector<32x512xf32>
    %50 = arith.truncf %49 : vector<32x512xf32> to vector<32x512xbf16>
    %c4 = arith.constant 4 : index
    %c0_23 = arith.constant 0 : index
    %c0_24 = arith.constant 0 : index
    %51 = vector.load %arg4[%c4, %c0_23, %c0_24] : memref<9x32x32xbf16, #tpu.memory_space<vmem>>, vector<1x32x32xbf16>
    %52 = vector.shape_cast %51 : vector<1x32x32xbf16> to vector<32x32xbf16>
    %cst_25 = arith.constant dense<0.000000e+00> : vector<32x512xf32>
    %53 = tpu.matmul %52, %50, %cst_25 {dimension_numbers = #tpu.dot_dimension_numbers<[1], [0], [0], [1], [0, 0, 1, 1], [], []>} : vector<32x32xbf16>, vector<32x512xbf16>, vector<32x512xf32> -> vector<32x512xf32>
    %54 = arith.addf %48, %53 : vector<32x512xf32>
    %55 = vector.extract_strided_slice %23 {offsets = [0, 20], sizes = [32, 512], strides = [1, 1]} : vector<32x640xf32> to vector<32x512xf32>
    %56 = arith.truncf %55 : vector<32x512xf32> to vector<32x512xbf16>
    %c5 = arith.constant 5 : index
    %c0_26 = arith.constant 0 : index
    %c0_27 = arith.constant 0 : index
    %57 = vector.load %arg4[%c5, %c0_26, %c0_27] : memref<9x32x32xbf16, #tpu.memory_space<vmem>>, vector<1x32x32xbf16>
    %58 = vector.shape_cast %57 : vector<1x32x32xbf16> to vector<32x32xbf16>
    %cst_28 = arith.constant dense<0.000000e+00> : vector<32x512xf32>
    %59 = tpu.matmul %58, %56, %cst_28 {dimension_numbers = #tpu.dot_dimension_numbers<[1], [0], [0], [1], [0, 0, 1, 1], [], []>} : vector<32x32xbf16>, vector<32x512xbf16>, vector<32x512xf32> -> vector<32x512xf32>
    %60 = arith.addf %54, %59 : vector<32x512xf32>
    %61 = vector.extract_strided_slice %23 {offsets = [0, 36], sizes = [32, 512], strides = [1, 1]} : vector<32x640xf32> to vector<32x512xf32>
    %62 = arith.truncf %61 : vector<32x512xf32> to vector<32x512xbf16>
    %c6 = arith.constant 6 : index
    %c0_29 = arith.constant 0 : index
    %c0_30 = arith.constant 0 : index
    %63 = vector.load %arg4[%c6, %c0_29, %c0_30] : memref<9x32x32xbf16, #tpu.memory_space<vmem>>, vector<1x32x32xbf16>
    %64 = vector.shape_cast %63 : vector<1x32x32xbf16> to vector<32x32xbf16>
    %cst_31 = arith.constant dense<0.000000e+00> : vector<32x512xf32>
    %65 = tpu.matmul %64, %62, %cst_31 {dimension_numbers = #tpu.dot_dimension_numbers<[1], [0], [0], [1], [0, 0, 1, 1], [], []>} : vector<32x32xbf16>, vector<32x512xbf16>, vector<32x512xf32> -> vector<32x512xf32>
    %66 = arith.addf %60, %65 : vector<32x512xf32>
    %67 = vector.extract_strided_slice %23 {offsets = [0, 37], sizes = [32, 512], strides = [1, 1]} : vector<32x640xf32> to vector<32x512xf32>
    %68 = arith.truncf %67 : vector<32x512xf32> to vector<32x512xbf16>
    %c7 = arith.constant 7 : index
    %c0_32 = arith.constant 0 : index
    %c0_33 = arith.constant 0 : index
    %69 = vector.load %arg4[%c7, %c0_32, %c0_33] : memref<9x32x32xbf16, #tpu.memory_space<vmem>>, vector<1x32x32xbf16>
    %70 = vector.shape_cast %69 : vector<1x32x32xbf16> to vector<32x32xbf16>
    %cst_34 = arith.constant dense<0.000000e+00> : vector<32x512xf32>
    %71 = tpu.matmul %70, %68, %cst_34 {dimension_numbers = #tpu.dot_dimension_numbers<[1], [0], [0], [1], [0, 0, 1, 1], [], []>} : vector<32x32xbf16>, vector<32x512xbf16>, vector<32x512xf32> -> vector<32x512xf32>
    %72 = arith.addf %66, %71 : vector<32x512xf32>
    %73 = vector.extract_strided_slice %23 {offsets = [0, 38], sizes = [32, 512], strides = [1, 1]} : vector<32x640xf32> to vector<32x512xf32>
    %74 = arith.truncf %73 : vector<32x512xf32> to vector<32x512xbf16>
    %c8 = arith.constant 8 : index
    %c0_35 = arith.constant 0 : index
    %c0_36 = arith.constant 0 : index
    %75 = vector.load %arg4[%c8, %c0_35, %c0_36] : memref<9x32x32xbf16, #tpu.memory_space<vmem>>, vector<1x32x32xbf16>
    %76 = vector.shape_cast %75 : vector<1x32x32xbf16> to vector<32x32xbf16>
    %cst_37 = arith.constant dense<0.000000e+00> : vector<32x512xf32>
    %77 = tpu.matmul %76, %74, %cst_37 {dimension_numbers = #tpu.dot_dimension_numbers<[1], [0], [0], [1], [0, 0, 1, 1], [], []>} : vector<32x32xbf16>, vector<32x512xbf16>, vector<32x512xf32> -> vector<32x512xf32>
    %78 = arith.addf %72, %77 : vector<32x512xf32>
    %c0_38 = arith.constant 0 : index
    %c0_39 = arith.constant 0 : index
    %79 = vector.load %arg5[%c0_38, %c0_39] : memref<32x1xf32, #tpu.memory_space<vmem>>, vector<32x1xf32>
    %80 = vector.broadcast %79 : vector<32x1xf32> to vector<32x512xf32>
    %81 = arith.addf %78, %80 : vector<32x512xf32>
    %82 = arith.mulf %81, %81 : vector<32x512xf32>
    %83 = arith.truncf %82 : vector<32x512xf32> to vector<32x512xbf16>
    %c0_40 = arith.constant 0 : index
    %c0_41 = arith.constant 0 : index
    %84 = vector.load %arg6[%c0_40, %c0_41] : memref<32x32xbf16, #tpu.memory_space<vmem>>, vector<32x32xbf16>
    %cst_42 = arith.constant dense<0.000000e+00> : vector<32x512xf32>
    %85 = tpu.matmul %84, %83, %cst_42 {dimension_numbers = #tpu.dot_dimension_numbers<[1], [0], [0], [1], [0, 0, 1, 1], [], []>} : vector<32x32xbf16>, vector<32x512xbf16>, vector<32x512xf32> -> vector<32x512xf32>
    %cst_43 = arith.constant 2.000000e-05 : f32
    %86 = vector.broadcast %cst_43 : f32 to vector<32x512xf32>
    %87 = arith.mulf %86, %85 : vector<32x512xf32>
    %cst_44 = arith.constant 1.000000e+00 : f32
    %88 = vector.broadcast %cst_44 : f32 to vector<32x512xf32>
    %89 = arith.addf %88, %87 : vector<32x512xf32>
    %90 = math.log %89 : vector<32x512xf32>
    %cst_45 = arith.constant -7.500000e-01 : f32
    %91 = vector.broadcast %cst_45 : f32 to vector<32x512xf32>
    %92 = arith.mulf %91, %90 : vector<32x512xf32>
    %93 = math.exp %92 : vector<32x512xf32>
    %94 = arith.mulf %81, %93 : vector<32x512xf32>
    %c0_46 = arith.constant 0 : index
    %c0_47 = arith.constant 0 : index
    %95 = vector.load %arg8[%c0_46, %c0_47] : memref<1x512xf32, #tpu.memory_space<vmem>>, vector<1x512xf32>
    %96 = vector.broadcast %95 : vector<1x512xf32> to vector<32x512xf32>
    %97 = arith.mulf %94, %96 : vector<32x512xf32>
    %c0_48 = arith.constant 0 : index
    %c0_49 = arith.constant 0 : index
    %c0_50 = arith.constant 0 : index
    %98 = vector.load %arg9[%c0_48, %c0_49, %c0_50] : memref<1x32x512xf32, #tpu.memory_space<vmem>>, vector<1x32x512xf32>
    %99 = vector.shape_cast %98 : vector<1x32x512xf32> to vector<32x512xf32>
    %100 = vector.shape_cast %97 : vector<32x512xf32> to vector<1x32x512xf32>
    tpu.vector_store %arg9[%c0_48, %c0_49, %c0_50], %100 {strides = array<i32>} : memref<1x32x512xf32, #tpu.memory_space<vmem>>, vector<1x32x512xf32>,
    return
  }
  func.func @transform_0(%arg0: i32) -> (i32, i32, i32) {
    %c0_i32 = arith.constant 0 : i32
    %c0_i32_0 = arith.constant 0 : i32
    %c0_i32_1 = arith.constant 0 : i32
    return %arg0, %c0_i32, %c0_i32_0 : i32, i32, i32
  }
  func.func @transform_1(%arg0: i32) -> (i32, i32) {
    %c0_i32 = arith.constant 0 : i32
    %c0_i32_0 = arith.constant 0 : i32
    %c0_i32_1 = arith.constant 0 : i32
    return %c0_i32, %c0_i32_0 : i32, i32
  }
  func.func @transform_2(%arg0: i32) -> (i32, i32) {
    %c0_i32 = arith.constant 0 : i32
    %c0_i32_0 = arith.constant 0 : i32
    %c0_i32_1 = arith.constant 0 : i32
    return %c0_i32, %c0_i32_0 : i32, i32
  }
  func.func @transform_3(%arg0: i32) -> (i32, i32, i32) {
    %c0_i32 = arith.constant 0 : i32
    %c0_i32_0 = arith.constant 0 : i32
    %c0_i32_1 = arith.constant 0 : i32
    %c0_i32_2 = arith.constant 0 : i32
    return %c0_i32, %c0_i32_0, %c0_i32_1 : i32, i32, i32
  }
  func.func @transform_4(%arg0: i32) -> (i32, i32) {
    %c0_i32 = arith.constant 0 : i32
    %c0_i32_0 = arith.constant 0 : i32
    %c0_i32_1 = arith.constant 0 : i32
    return %c0_i32, %c0_i32_0 : i32, i32
  }
  func.func @transform_5(%arg0: i32) -> (i32, i32) {
    %c0_i32 = arith.constant 0 : i32
    %c0_i32_0 = arith.constant 0 : i32
    %c0_i32_1 = arith.constant 0 : i32
    return %c0_i32, %c0_i32_0 : i32, i32
  }
  func.func @transform_6(%arg0: i32) -> (i32, i32) {
    %c0_i32 = arith.constant 0 : i32
    %c0_i32_0 = arith.constant 0 : i32
    %c0_i32_1 = arith.constant 0 : i32
    return %c0_i32, %c0_i32_0 : i32, i32
  }
  func.func @transform_7(%arg0: i32) -> (i32, i32) {
    %c0_i32 = arith.constant 0 : i32
    %c0_i32_0 = arith.constant 0 : i32
    %c0_i32_1 = arith.constant 0 : i32
    return %c0_i32, %c0_i32_0 : i32, i32
  }
  func.func @transform_8(%arg0: i32) -> (i32, i32, i32) {
    %c0_i32 = arith.constant 0 : i32
    %c0_i32_0 = arith.constant 0 : i32
    %c0_i32_1 = arith.constant 0 : i32
    return %arg0, %c0_i32, %c0_i32_0 : i32, i32, i32
  }
}

module attributes {stable_mosaic.version = 11 : i64} {
  func.func @_corr_kernel(%arg0: i32, %arg1: memref<2x32x144xf32, #tpu.memory_space<vmem>>, %arg2: memref<2x32x144xf32, #tpu.memory_space<vmem>>, %arg3: memref<32x144xf32, #tpu.memory_space<vmem>>, %arg4: memref<32x144xf32, #tpu.memory_space<vmem>>, %arg5: memref<1x144xf32, #tpu.memory_space<vmem>>, %arg6: memref<1x144xf32, #tpu.memory_space<vmem>>, %arg7: memref<2x144xf32, #tpu.memory_space<vmem>>, %arg8: memref<2x144xf32, #tpu.memory_space<vmem>>) attributes {dimension_semantics = [#tpu.dimension_semantics<arbitrary>], iteration_bounds = array<i64: 1>, scalar_prefetch = 0 : i64, scratch_operands = 0 : i64, tpu.core_type = #tpu.core_type<tc>, window_params = [{pipeline_mode = #tpu.pipeline_mode<synchronous>, transform_indices = @transform_0, window_bounds = array<i64: 2, 32, 144>}, {pipeline_mode = #tpu.pipeline_mode<synchronous>, transform_indices = @transform_1, window_bounds = array<i64: 2, 32, 144>}, {pipeline_mode = #tpu.pipeline_mode<synchronous>, transform_indices = @transform_2, window_bounds = array<i64: 32, 144>}, {pipeline_mode = #tpu.pipeline_mode<synchronous>, transform_indices = @transform_3, window_bounds = array<i64: 32, 144>}, {pipeline_mode = #tpu.pipeline_mode<synchronous>, transform_indices = @transform_4, window_bounds = array<i64: 1, 144>}, {pipeline_mode = #tpu.pipeline_mode<synchronous>, transform_indices = @transform_5, window_bounds = array<i64: 1, 144>}, {pipeline_mode = #tpu.pipeline_mode<synchronous>, transform_indices = @transform_6, window_bounds = array<i64: 2, 144>}, {pipeline_mode = #tpu.pipeline_mode<synchronous>, transform_indices = @transform_7, window_bounds = array<i64: 2, 144>}]} {
    %c0 = arith.constant 0 : index
    %c0_0 = arith.constant 0 : index
    %c0_1 = arith.constant 0 : index
    %0 = vector.load %arg1[%c0, %c0_0, %c0_1] : memref<2x32x144xf32, #tpu.memory_space<vmem>>, vector<2x32x144xf32>
    %c0_2 = arith.constant 0 : index
    %c0_3 = arith.constant 0 : index
    %c0_4 = arith.constant 0 : index
    %1 = vector.load %arg2[%c0_2, %c0_3, %c0_4] : memref<2x32x144xf32, #tpu.memory_space<vmem>>, vector<2x32x144xf32>
    %c0_5 = arith.constant 0 : index
    %c0_6 = arith.constant 0 : index
    %2 = vector.load %arg3[%c0_5, %c0_6] : memref<32x144xf32, #tpu.memory_space<vmem>>, vector<32x144xf32>
    %c0_7 = arith.constant 0 : index
    %c0_8 = arith.constant 0 : index
    %3 = vector.load %arg4[%c0_7, %c0_8] : memref<32x144xf32, #tpu.memory_space<vmem>>, vector<32x144xf32>
    %4 = vector.shape_cast %2 : vector<32x144xf32> to vector<1x32x144xf32>
    %5 = vector.broadcast %4 : vector<1x32x144xf32> to vector<2x32x144xf32>
    %6 = arith.mulf %0, %5 : vector<2x32x144xf32>
    %7 = vector.shape_cast %3 : vector<32x144xf32> to vector<1x32x144xf32>
    %8 = vector.broadcast %7 : vector<1x32x144xf32> to vector<2x32x144xf32>
    %9 = arith.mulf %1, %8 : vector<2x32x144xf32>
    %10 = arith.addf %6, %9 : vector<2x32x144xf32>
    %cst = arith.constant dense<0.000000e+00> : vector<2x144xf32>
    %11 = vector.multi_reduction <add>, %10, %cst [1] : vector<2x32x144xf32> to vector<2x144xf32>
    %12 = vector.shape_cast %2 : vector<32x144xf32> to vector<1x32x144xf32>
    %13 = vector.broadcast %12 : vector<1x32x144xf32> to vector<2x32x144xf32>
    %14 = arith.mulf %1, %13 : vector<2x32x144xf32>
    %15 = vector.shape_cast %3 : vector<32x144xf32> to vector<1x32x144xf32>
    %16 = vector.broadcast %15 : vector<1x32x144xf32> to vector<2x32x144xf32>
    %17 = arith.mulf %0, %16 : vector<2x32x144xf32>
    %18 = arith.subf %14, %17 : vector<2x32x144xf32>
    %cst_9 = arith.constant dense<0.000000e+00> : vector<2x144xf32>
    %19 = vector.multi_reduction <add>, %18, %cst_9 [1] : vector<2x32x144xf32> to vector<2x144xf32>
    %c0_10 = arith.constant 0 : index
    %c0_11 = arith.constant 0 : index
    %20 = vector.load %arg5[%c0_10, %c0_11] : memref<1x144xf32, #tpu.memory_space<vmem>>, vector<1x144xf32>
    %c0_12 = arith.constant 0 : index
    %c0_13 = arith.constant 0 : index
    %21 = vector.load %arg6[%c0_12, %c0_13] : memref<1x144xf32, #tpu.memory_space<vmem>>, vector<1x144xf32>
    %22 = vector.broadcast %20 : vector<1x144xf32> to vector<2x144xf32>
    %23 = arith.mulf %11, %22 : vector<2x144xf32>
    %24 = vector.broadcast %21 : vector<1x144xf32> to vector<2x144xf32>
    %25 = arith.mulf %19, %24 : vector<2x144xf32>
    %26 = arith.subf %23, %25 : vector<2x144xf32>
    %c0_14 = arith.constant 0 : index
    %c0_15 = arith.constant 0 : index
    %27 = vector.load %arg7[%c0_14, %c0_15] : memref<2x144xf32, #tpu.memory_space<vmem>>, vector<2x144xf32>
    tpu.vector_store %arg7[%c0_14, %c0_15], %26 {strides = array<i32>} : memref<2x144xf32, #tpu.memory_space<vmem>>, vector<2x144xf32>,
    %28 = vector.broadcast %21 : vector<1x144xf32> to vector<2x144xf32>
    %29 = arith.mulf %11, %28 : vector<2x144xf32>
    %30 = vector.broadcast %20 : vector<1x144xf32> to vector<2x144xf32>
    %31 = arith.mulf %19, %30 : vector<2x144xf32>
    %32 = arith.addf %29, %31 : vector<2x144xf32>
    %c0_16 = arith.constant 0 : index
    %c0_17 = arith.constant 0 : index
    %33 = vector.load %arg8[%c0_16, %c0_17] : memref<2x144xf32, #tpu.memory_space<vmem>>, vector<2x144xf32>
    tpu.vector_store %arg8[%c0_16, %c0_17], %32 {strides = array<i32>} : memref<2x144xf32, #tpu.memory_space<vmem>>, vector<2x144xf32>,
    return
  }
  func.func @transform_0(%arg0: i32) -> (i32, i32, i32) {
    %c0_i32 = arith.constant 0 : i32
    %c0_i32_0 = arith.constant 0 : i32
    %c0_i32_1 = arith.constant 0 : i32
    %c0_i32_2 = arith.constant 0 : i32
    return %c0_i32, %c0_i32_0, %c0_i32_1 : i32, i32, i32
  }
  func.func @transform_1(%arg0: i32) -> (i32, i32, i32) {
    %c0_i32 = arith.constant 0 : i32
    %c0_i32_0 = arith.constant 0 : i32
    %c0_i32_1 = arith.constant 0 : i32
    %c0_i32_2 = arith.constant 0 : i32
    return %c0_i32, %c0_i32_0, %c0_i32_1 : i32, i32, i32
  }
  func.func @transform_2(%arg0: i32) -> (i32, i32) {
    %c0_i32 = arith.constant 0 : i32
    %c0_i32_0 = arith.constant 0 : i32
    %c0_i32_1 = arith.constant 0 : i32
    return %c0_i32, %c0_i32_0 : i32, i32
  }
  func.func @transform_3(%arg0: i32) -> (i32, i32) {
    %c0_i32 = arith.constant 0 : i32
    %c0_i32_0 = arith.constant 0 : i32
    %c0_i32_1 = arith.constant 0 : i32
    return %c0_i32, %c0_i32_0 : i32, i32
  }
  func.func @transform_4(%arg0: i32) -> (i32, i32) {
    %c0_i32 = arith.constant 0 : i32
    %c0_i32_0 = arith.constant 0 : i32
    %c0_i32_1 = arith.constant 0 : i32
    return %c0_i32, %c0_i32_0 : i32, i32
  }
  func.func @transform_5(%arg0: i32) -> (i32, i32) {
    %c0_i32 = arith.constant 0 : i32
    %c0_i32_0 = arith.constant 0 : i32
    %c0_i32_1 = arith.constant 0 : i32
    return %c0_i32, %c0_i32_0 : i32, i32
  }
  func.func @transform_6(%arg0: i32) -> (i32, i32) {
    %c0_i32 = arith.constant 0 : i32
    %c0_i32_0 = arith.constant 0 : i32
    %c0_i32_1 = arith.constant 0 : i32
    return %c0_i32, %c0_i32_0 : i32, i32
  }
  func.func @transform_7(%arg0: i32) -> (i32, i32) {
    %c0_i32 = arith.constant 0 : i32
    %c0_i32_0 = arith.constant 0 : i32
    %c0_i32_1 = arith.constant 0 : i32
    return %c0_i32, %c0_i32_0 : i32, i32
  }
}

</mosaic_0001>

<llo_original>
// kernel: dcfnet_forward.2
$region0: #{dcfnet_forward.2}
  #allocation0 [shape = 'u32[]', space=smem, size = 0x4, offset = 0x4, fixed_abs, tag = 'smem constant byte address 0x4 - core index']
  #allocation1 [shape = 'u32[72,128]{1,0:T(1,128)}', space=vmem, size = 0x9000, scoped, tag = 'internal scratch']
  %s0 = inlined_call_operand.vmem [shape: bf16[2,8,768], index: 0, kind: input, shape index: {}]
  %s1 = inlined_call_operand.vmem [shape: bf16[32,72], index: 1, kind: input, shape index: {}]
  %s2 = inlined_call_operand.vmem [shape: f32[32,1], index: 2, kind: input, shape index: {}]
  %s3 = inlined_call_operand.vmem [shape: bf16[9,32,32], index: 3, kind: input, shape index: {}]
  %s4 = inlined_call_operand.vmem [shape: f32[32,1], index: 4, kind: input, shape index: {}]
  %s5 = inlined_call_operand.vmem [shape: bf16[32,32], index: 5, kind: input, shape index: {}]
  %s6 = inlined_call_operand.vmem [shape: f32[1,640], index: 6, kind: input, shape index: {}]
  %s7 = inlined_call_operand.vmem [shape: f32[1,512], index: 7, kind: input, shape index: {}]
  %s8 = inlined_call_operand.vmem [shape: f32[2,32,512], index: 8, kind: output, shape index: {}]
  %s9 = sld [smem:[#allocation0]]
  $region65: #{dcfnet_forward.2} parent=0
    _
  %s11 = ssub.s32 1, %s9
  %s12 = scalar_select 0, %s11, %s9
  loop: start=0, step=1, limit=4
  $region2: #{dcfnet_forward.2} parent=0 // loop_pre_header
    _
  $region3: #{dcfnet_forward.2} parent=0 // loop_header
    %s14 = sphi 0, %s18
    %p15 = scmp.ge.s32.totalorder %s14, 4
    %s24 = sphi 0, %s26
    %s27 = sphi 0, %s24
    %s28 = sphi 0, %s27
    %s44 = sphi 0, %s28
    %s48 = sphi 0, %s48
    %s50 = sphi 0, %s48
    %s51 = sphi 0, %s50
    %s65 = sphi 0, %s51
    %s69 = sphi 0, %s69
    %s71 = sphi 0, %s69
    %s72 = sphi 0, %s71
    %s86 = sphi 0, %s72
    %s90 = sphi 0, %s90
    %s92 = sphi 0, %s90
    %s93 = sphi 0, %s92
    %s107 = sphi 0, %s93
    %s111 = sphi 0, %s111
    %s113 = sphi 0, %s111
    %s114 = sphi 0, %s113
    %s128 = sphi 0, %s114
    %s132 = sphi 0, %s132
    %s134 = sphi 0, %s132
    %s135 = sphi 0, %s134
    %s149 = sphi 0, %s135
    %s153 = sphi 0, %s153
    %s155 = sphi 0, %s153
    %s156 = sphi 0, %s155
    %s170 = sphi 0, %s156
    %s174 = sphi 0, %s174
    %s176 = sphi 0, %s174
    %s177 = sphi 0, %s176
    %s191 = sphi 0, %s177
    %s197 = sphi 0, %s199
    %s200 = sphi 0, %s197
    %s201 = sphi 0, %s200
    %s217 = sphi 0, %s201
  $region4: #{dcfnet_forward.2} parent=0 // loop_header_branch
    %17 = sbr.rel (%p15) target = $region8
  $region5: #{dcfnet_forward.2} parent=0 // loop_body
    %s19 = ssub.s32 %s14, 1
    %s20 = ssub.s32 %s14, 2
    %s21 = sadd.s32 %s14, 1
    %s22 = ssub.s32 %s14, %s21
    %p23 = scmp.eq.s32.totalorder %s22, 0
    %s25 = sadd.s32 %s24, 1
    %s26 = scalar_select %p23, %s24, %s25
    %p29 = pneg %p23
    %p30 = scmp.eq.s32.totalorder %s14, 1
    %p31 = por %p29, %p30
    %p32 = scmp.ne.s32.totalorder %s24, %s27
    %p33 = scmp.eq.s32.totalorder %s14, 0
    %p34 = por %p32, %p33
    %p35 = scmp.ne.s32.totalorder %s24, %s27
    %p36 = scmp.eq.s32.totalorder %s19, 1
    %p37 = por %p35, %p36
    %p38 = scmp.ne.s32.totalorder %s27, %s28
    %p39 = scmp.eq.s32.totalorder %s19, 0
    %p40 = por %p38, %p39
    %p41 = scmp.ne.s32.totalorder %s27, %s28
    %p42 = scmp.eq.s32.totalorder %s20, 1
    %p43 = por %p41, %p42
    %p45 = scmp.ne.s32.totalorder %s28, %s44
    %p46 = scmp.eq.s32.totalorder %s20, 0
    %p47 = por %p45, %p46
    %s49 = sadd.s32 %s48, 1
    %p52 = scmp.eq.s32.totalorder %s14, 1
    %p53 = scmp.ne.s32.totalorder %s48, %s50
    %p54 = scmp.eq.s32.totalorder %s14, 0
    %p55 = por %p53, %p54
    %p56 = scmp.ne.s32.totalorder %s48, %s50
    %p57 = scmp.eq.s32.totalorder %s19, 1
    %p58 = por %p56, %p57
    %p59 = scmp.ne.s32.totalorder %s50, %s51
    %p60 = scmp.eq.s32.totalorder %s19, 0
    %p61 = por %p59, %p60
    %p62 = scmp.ne.s32.totalorder %s50, %s51
    %p63 = scmp.eq.s32.totalorder %s20, 1
    %p64 = por %p62, %p63
    %p66 = scmp.ne.s32.totalorder %s51, %s65
    %p67 = scmp.eq.s32.totalorder %s20, 0
    %p68 = por %p66, %p67
    %s70 = sadd.s32 %s69, 1
    %p73 = scmp.eq.s32.totalorder %s14, 1
    %p74 = scmp.ne.s32.totalorder %s69, %s71
    %p75 = scmp.eq.s32.totalorder %s14, 0
    %p76 = por %p74, %p75
    %p77 = scmp.ne.s32.totalorder %s69, %s71
    %p78 = scmp.eq.s32.totalorder %s19, 1
    %p79 = por %p77, %p78
    %p80 = scmp.ne.s32.totalorder %s71, %s72
    %p81 = scmp.eq.s32.totalorder %s19, 0
    %p82 = por %p80, %p81
    %p83 = scmp.ne.s32.totalorder %s71, %s72
    %p84 = scmp.eq.s32.totalorder %s20, 1
    %p85 = por %p83, %p84
    %p87 = scmp.ne.s32.totalorder %s72, %s86
    %p88 = scmp.eq.s32.totalorder %s20, 0
    %p89 = por %p87, %p88
    %s91 = sadd.s32 %s90, 1
    %p94 = scmp.eq.s32.totalorder %s14, 1
    %p95 = scmp.ne.s32.totalorder %s90, %s92
    %p96 = scmp.eq.s32.totalorder %s14, 0
    %p97 = por %p95, %p96
    %p98 = scmp.ne.s32.totalorder %s90, %s92
    %p99 = scmp.eq.s32.totalorder %s19, 1
    %p100 = por %p98, %p99
    %p101 = scmp.ne.s32.totalorder %s92, %s93
    %p102 = scmp.eq.s32.totalorder %s19, 0
    %p103 = por %p101, %p102
    %p104 = scmp.ne.s32.totalorder %s92, %s93
    %p105 = scmp.eq.s32.totalorder %s20, 1
    %p106 = por %p104, %p105
    %p108 = scmp.ne.s32.totalorder %s93, %s107
    %p109 = scmp.eq.s32.totalorder %s20, 0
    %p110 = por %p108, %p109
    %s112 = sadd.s32 %s111, 1
    %p115 = scmp.eq.s32.totalorder %s14, 1
    %p116 = scmp.ne.s32.totalorder %s111, %s113
    %p117 = scmp.eq.s32.totalorder %s14, 0
    %p118 = por %p116, %p117
    %p119 = scmp.ne.s32.totalorder %s111, %s113
    %p120 = scmp.eq.s32.totalorder %s19, 1
    %p121 = por %p119, %p120
    %p122 = scmp.ne.s32.totalorder %s113, %s114
    %p123 = scmp.eq.s32.totalorder %s19, 0
    %p124 = por %p122, %p123
    %p125 = scmp.ne.s32.totalorder %s113, %s114
    %p126 = scmp.eq.s32.totalorder %s20, 1
    %p127 = por %p125, %p126
    %p129 = scmp.ne.s32.totalorder %s114, %s128
    %p130 = scmp.eq.s32.totalorder %s20, 0
    %p131 = por %p129, %p130
    %s133 = sadd.s32 %s132, 1
    %p136 = scmp.eq.s32.totalorder %s14, 1
    %p137 = scmp.ne.s32.totalorder %s132, %s134
    %p138 = scmp.eq.s32.totalorder %s14, 0
    %p139 = por %p137, %p138
    %p140 = scmp.ne.s32.totalorder %s132, %s134
    %p141 = scmp.eq.s32.totalorder %s19, 1
    %p142 = por %p140, %p141
    %p143 = scmp.ne.s32.totalorder %s134, %s135
    %p144 = scmp.eq.s32.totalorder %s19, 0
    %p145 = por %p143, %p144
    %p146 = scmp.ne.s32.totalorder %s134, %s135
    %p147 = scmp.eq.s32.totalorder %s20, 1
    %p148 = por %p146, %p147
    %p150 = scmp.ne.s32.totalorder %s135, %s149
    %p151 = scmp.eq.s32.totalorder %s20, 0
    %p152 = por %p150, %p151
    %s154 = sadd.s32 %s153, 1
    %p157 = scmp.eq.s32.totalorder %s14, 1
    %p158 = scmp.ne.s32.totalorder %s153, %s155
    %p159 = scmp.eq.s32.totalorder %s14, 0
    %p160 = por %p158, %p159
    %p161 = scmp.ne.s32.totalorder %s153, %s155
    %p162 = scmp.eq.s32.totalorder %s19, 1
    %p163 = por %p161, %p162
    %p164 = scmp.ne.s32.totalorder %s155, %s156
    %p165 = scmp.eq.s32.totalorder %s19, 0
    %p166 = por %p164, %p165
    %p167 = scmp.ne.s32.totalorder %s155, %s156
    %p168 = scmp.eq.s32.totalorder %s20, 1
    %p169 = por %p167, %p168
    %p171 = scmp.ne.s32.totalorder %s156, %s170
    %p172 = scmp.eq.s32.totalorder %s20, 0
    %p173 = por %p171, %p172
    %s175 = sadd.s32 %s174, 1
    %p178 = scmp.eq.s32.totalorder %s14, 1
    %p179 = scmp.ne.s32.totalorder %s174, %s176
    %p180 = scmp.eq.s32.totalorder %s14, 0
    %p181 = por %p179, %p180
    %p182 = scmp.ne.s32.totalorder %s174, %s176
    %p183 = scmp.eq.s32.totalorder %s19, 1
    %p184 = por %p182, %p183
    %p185 = scmp.ne.s32.totalorder %s176, %s177
    %p186 = scmp.eq.s32.totalorder %s19, 0
    %p187 = por %p185, %p186
    %p188 = scmp.ne.s32.totalorder %s176, %s177
    %p189 = scmp.eq.s32.totalorder %s20, 1
    %p190 = por %p188, %p189
    %p192 = scmp.ne.s32.totalorder %s177, %s191
    %p193 = scmp.eq.s32.totalorder %s20, 0
    %p194 = por %p192, %p193
    %s195 = ssub.s32 %s14, %s21
    %p196 = scmp.eq.s32.totalorder %s195, 0
    %s198 = sadd.s32 %s197, 1
    %s199 = scalar_select %p196, %s197, %s198
    %p202 = pneg %p196
    %p203 = scmp.eq.s32.totalorder %s14, 1
    %p204 = por %p202, %p203
    %p205 = scmp.ne.s32.totalorder %s197, %s200
    %p206 = scmp.eq.s32.totalorder %s14, 0
    %p207 = por %p205, %p206
    %p208 = scmp.ne.s32.totalorder %s197, %s200
    %p209 = scmp.eq.s32.totalorder %s19, 1
    %p210 = por %p208, %p209
    %p211 = scmp.ne.s32.totalorder %s200, %s201
    %p212 = scmp.eq.s32.totalorder %s19, 0
    %p213 = por %p211, %p212
    %p214 = scmp.ne.s32.totalorder %s200, %s201
    %p215 = scmp.eq.s32.totalorder %s20, 1
    %p216 = por %p214, %p215
    %p218 = scmp.ne.s32.totalorder %s201, %s217
    %p219 = scmp.eq.s32.totalorder %s20, 0
    %p220 = por %p218, %p219
    %p221 = scmp.le.s32.totalorder 1, %s14
    %p222 = scmp.lt.s32.totalorder %s14, 3
    %p223 = pnand %p221, %p222
    %p224 = pneg %p223
    // Predicated region
    $region9: #{dcfnet_forward.2} parent=5 // pred_check
      _
    $region10: #{dcfnet_forward.2} parent=5 // pred_check_branch
      %226 = sbr.rel (%p223) target = $region12
    $region11: #{dcfnet_forward.2} parent=5 // pred_region
      %s227 = ssub.s32 %s14, 1
      // Predicated region
      $region13: #{dcfnet_forward.2} parent=11 // pred_check
        %p228 = pneg %p61
      $region14: #{dcfnet_forward.2} parent=11 // pred_check_branch
        %230 = sbr.rel (%p228) target = $region16
      $region15: #{dcfnet_forward.2} parent=11 // pred_region
        _
      $region16: #{dcfnet_forward.2} parent=11 // pred_fallthru
        _
      // Predicated region
      $region17: #{dcfnet_forward.2} parent=11 // pred_check
        %p231 = pneg %p82
      $region18: #{dcfnet_forward.2} parent=11 // pred_check_branch
        %233 = sbr.rel (%p231) target = $region20
      $region19: #{dcfnet_forward.2} parent=11 // pred_region
        _
      $region20: #{dcfnet_forward.2} parent=11 // pred_fallthru
        _
      // Predicated region
      $region21: #{dcfnet_forward.2} parent=11 // pred_check
        %p234 = pneg %p103
      $region22: #{dcfnet_forward.2} parent=11 // pred_check_branch
        %236 = sbr.rel (%p234) target = $region24
      $region23: #{dcfnet_forward.2} parent=11 // pred_region
        _
      $region24: #{dcfnet_forward.2} parent=11 // pred_fallthru
        _
      // Predicated region
      $region25: #{dcfnet_forward.2} parent=11 // pred_check
        %p237 = pneg %p124
      $region26: #{dcfnet_forward.2} parent=11 // pred_check_branch
        %239 = sbr.rel (%p237) target = $region28
      $region27: #{dcfnet_forward.2} parent=11 // pred_region
        _
      $region28: #{dcfnet_forward.2} parent=11 // pred_fallthru
        _
      // Predicated region
      $region29: #{dcfnet_forward.2} parent=11 // pred_check
        %p240 = pneg %p145
      $region30: #{dcfnet_forward.2} parent=11 // pred_check_branch
        %242 = sbr.rel (%p240) target = $region32
      $region31: #{dcfnet_forward.2} parent=11 // pred_region
        _
      $region32: #{dcfnet_forward.2} parent=11 // pred_fallthru
        _
      // Predicated region
      $region33: #{dcfnet_forward.2} parent=11 // pred_check
        %p243 = pneg %p166
      $region34: #{dcfnet_forward.2} parent=11 // pred_check_branch
        %245 = sbr.rel (%p243) target = $region36
      $region35: #{dcfnet_forward.2} parent=11 // pred_region
        _
      $region36: #{dcfnet_forward.2} parent=11 // pred_fallthru
        _
      // Predicated region
      $region37: #{dcfnet_forward.2} parent=11 // pred_check
        %p246 = pneg %p187
      $region38: #{dcfnet_forward.2} parent=11 // pred_check_branch
        %248 = sbr.rel (%p246) target = $region40
      $region39: #{dcfnet_forward.2} parent=11 // pred_region
        _
      $region40: #{dcfnet_forward.2} parent=11 // pred_fallthru
        _
    $region12: #{dcfnet_forward.2} parent=5 // pred_fallthru
      _
    %p249 = scmp.lt.s32.totalorder %s14, 2
    // Predicated region
    $region41: #{dcfnet_forward.2} parent=5 // pred_check
      %p250 = pneg %p249
    $region42: #{dcfnet_forward.2} parent=5 // pred_check_branch
      %252 = sbr.rel (%p250) target = $region44
    $region43: #{dcfnet_forward.2} parent=5 // pred_region
      // Predicated region
      $region45: #{dcfnet_forward.2} parent=43 // pred_check
        %p253 = pneg %p34
      $region46: #{dcfnet_forward.2} parent=43 // pred_check_branch
        %255 = sbr.rel (%p253) target = $region48
      $region47: #{dcfnet_forward.2} parent=43 // pred_region
        %p256 = scmp.lt.s32.totalorder %s14, 1
        %s257 = scalar_select %p256, %s14, 1
        %s258 = smul.addr %s257, 6
        %s259 = smul.addr %s258, 4
        %s260 = scalar_lea.vmem %s0, %s259
      $region48: #{dcfnet_forward.2} parent=43 // pred_fallthru
        _
    $region44: #{dcfnet_forward.2} parent=5 // pred_fallthru
      _
    %p261 = scmp.le.s32.totalorder 1, %s14
    %p262 = scmp.lt.s32.totalorder %s14, 3
    %p263 = pnand %p261, %p262
    %p264 = pneg %p263
    // Predicated region
    $region49: #{dcfnet_forward.2} parent=5 // pred_check
      _
    $region50: #{dcfnet_forward.2} parent=5 // pred_check_branch
      %266 = sbr.rel (%p263) target = $region52
    $region51: #{dcfnet_forward.2} parent=5 // pred_region
      %s267 = ssub.s32 %s14, 1
      %p268 = scmp.lt.s32.totalorder %s19, 1
      %s269 = scalar_select %p268, %s19, 1
      %s270 = smul.addr %s269, 6
      %s271 = smul.addr %s270, 4
      %s272 = scalar_lea.vmem %s0, %s271
      %p273 = pneg %p40
      %p274 = pneg %p37
      %p275 = pneg %p61
      %p276 = pneg %p58
      %p277 = pneg %p82
      %p278 = pneg %p79
      %p279 = pneg %p103
      %p280 = pneg %p100
      %p281 = pneg %p124
      %p282 = pneg %p121
      %p283 = pneg %p145
      %p284 = pneg %p142
      %p285 = pneg %p166
      %p286 = pneg %p163
      %p287 = pneg %p187
      %p288 = pneg %p184
      %p289 = pneg %p213
      %p290 = pneg %p210
      %p291 = scmp.lt.s32.totalorder %s19, 1
      %s292 = scalar_select %p291, %s19, 1
      %s293 = smul.addr %s292, 16
      %s294 = smul.addr %s293, 8
      %s295 = scalar_lea.vmem %s8, %s294
      %p296 = scmp.lt.s32.totalorder %s19, 1
      %s297 = scalar_select %p296, %s19, 1
      %s298 = smul.addr %s297, 6
      %s299 = smul.addr %s298, 4
      %s300 = scalar_lea.vmem %s0, %s299
      %p301 = scmp.lt.s32.totalorder %s19, 1
      %s302 = scalar_select %p301, %s19, 1
      %s303 = smul.addr %s302, 16
      %s304 = smul.addr %s303, 8
      %s305 = scalar_lea.vmem %s8, %s304
      %v307 = vld [vmem:[%s300] sm:$0xff]
      %v308 = vld [vmem:[%s300 + $0x8] sm:$0xff]
      %v309 = vld [vmem:[%s300 + $0x10] sm:$0xff]
      %v310 = vunpack.c.l.bf16 %v307
      %v311 = vunpack.c.h.bf16 %v307
      %v312 = vunpack.c.l.bf16 %v308
      %v313 = vunpack.c.h.bf16 %v308
      %v314 = vunpack.c.l.bf16 %v309
      %v315 = vunpack.c.h.bf16 %v309
      %322 = vrot.lane.b32.xlu0 %v310, 127
      %v323 = vpop.permute.xlu0 %322
      %324 = vrot.lane.b32.xlu0 %v311, 127
      %v325 = vpop.permute.xlu0 %324
      %326 = vrot.lane.b32.xlu0 %v312, 127
      %v327 = vpop.permute.xlu0 %326
      %328 = vrot.lane.b32.xlu0 %v313, 127
      %v329 = vpop.permute.xlu0 %328
      %330 = vrot.lane.b32.xlu0 %v314, 127
      %v331 = vpop.permute.xlu0 %330
      %332 = vrot.lane.b32.xlu0 %v315, 127
      %v333 = vpop.permute.xlu0 %332
      %vm334 = vcmask 1039360
      %v335 = vsel %vm334, %v323, %v325
      %v336 = vsel %vm334, %v325, %v327
      %v337 = vsel %vm334, %v327, %v329
      %v338 = vsel %vm334, %v329, %v331
      %v339 = vsel %vm334, %v331, %v333
      %345 = vrot.lane.b32.xlu0 %v310, 126
      %v346 = vpop.permute.xlu0 %345
      %347 = vrot.lane.b32.xlu0 %v311, 126
      %v348 = vpop.permute.xlu0 %347
      %349 = vrot.lane.b32.xlu0 %v312, 126
      %v350 = vpop.permute.xlu0 %349
      %351 = vrot.lane.b32.xlu0 %v313, 126
      %v352 = vpop.permute.xlu0 %351
      %353 = vrot.lane.b32.xlu0 %v314, 126
      %v354 = vpop.permute.xlu0 %353
      %355 = vrot.lane.b32.xlu0 %v315, 126
      %v356 = vpop.permute.xlu0 %355
      %vm357 = vcmask 1031168
      %v358 = vsel %vm357, %v346, %v348
      %v359 = vsel %vm357, %v348, %v350
      %v360 = vsel %vm357, %v350, %v352
      %v361 = vsel %vm357, %v352, %v354
      %v362 = vsel %vm357, %v354, %v356
      %368 = vrot.lane.b32.xlu0 %v310, 110
      %v369 = vpop.permute.xlu0 %368
      %370 = vrot.lane.b32.xlu0 %v311, 110
      %v371 = vpop.permute.xlu0 %370
      %372 = vrot.lane.b32.xlu0 %v312, 110
      %v373 = vpop.permute.xlu0 %372
      %374 = vrot.lane.b32.xlu0 %v313, 110
      %v375 = vpop.permute.xlu0 %374
      %376 = vrot.lane.b32.xlu0 %v314, 110
      %v377 = vpop.permute.xlu0 %376
      %378 = vrot.lane.b32.xlu0 %v315, 110
      %v379 = vpop.permute.xlu0 %378
      %vm380 = vcmask 900096
      %v381 = vsel %vm380, %v369, %v371
      %v382 = vsel %vm380, %v371, %v373
      %v383 = vsel %vm380, %v373, %v375
      %v384 = vsel %vm380, %v375, %v377
      %v385 = vsel %vm380, %v377, %v379
      %391 = vrot.lane.b32.xlu0 %v310, 109
      %v392 = vpop.permute.xlu0 %391
      %393 = vrot.lane.b32.xlu0 %v311, 109
      %v394 = vpop.permute.xlu0 %393
      %395 = vrot.lane.b32.xlu0 %v312, 109
      %v396 = vpop.permute.xlu0 %395
      %397 = vrot.lane.b32.xlu0 %v313, 109
      %v398 = vpop.permute.xlu0 %397
      %399 = vrot.lane.b32.xlu0 %v314, 109
      %v400 = vpop.permute.xlu0 %399
      %401 = vrot.lane.b32.xlu0 %v315, 109
      %v402 = vpop.permute.xlu0 %401
      %vm403 = vcmask 891904
      %v404 = vsel %vm403, %v392, %v394
      %v405 = vsel %vm403, %v394, %v396
      %v406 = vsel %vm403, %v396, %v398
      %v407 = vsel %vm403, %v398, %v400
      %v408 = vsel %vm403, %v400, %v402
      %414 = vrot.lane.b32.xlu0 %v310, 108
      %v415 = vpop.permute.xlu0 %414
      %416 = vrot.lane.b32.xlu0 %v311, 108
      %v417 = vpop.permute.xlu0 %416
      %418 = vrot.lane.b32.xlu0 %v312, 108
      %v419 = vpop.permute.xlu0 %418
      %420 = vrot.lane.b32.xlu0 %v313, 108
      %v421 = vpop.permute.xlu0 %420
      %422 = vrot.lane.b32.xlu0 %v314, 108
      %v423 = vpop.permute.xlu0 %422
      %424 = vrot.lane.b32.xlu0 %v315, 108
      %v425 = vpop.permute.xlu0 %424
      %vm426 = vcmask 883712
      %v427 = vsel %vm426, %v415, %v417
      %v428 = vsel %vm426, %v417, %v419
      %v429 = vsel %vm426, %v419, %v421
      %v430 = vsel %vm426, %v421, %v423
      %v431 = vsel %vm426, %v423, %v425
      %437 = vrot.lane.b32.xlu0 %v310, 92
      %v438 = vpop.permute.xlu0 %437
      %439 = vrot.lane.b32.xlu0 %v311, 92
      %v440 = vpop.permute.xlu0 %439
      %441 = vrot.lane.b32.xlu0 %v312, 92
      %v442 = vpop.permute.xlu0 %441
      %443 = vrot.lane.b32.xlu0 %v313, 92
      %v444 = vpop.permute.xlu0 %443
      %445 = vrot.lane.b32.xlu0 %v314, 92
      %v446 = vpop.permute.xlu0 %445
      %447 = vrot.lane.b32.xlu0 %v315, 92
      %v448 = vpop.permute.xlu0 %447
      %vm449 = vcmask 752640
      %v450 = vsel %vm449, %v438, %v440
      %v451 = vsel %vm449, %v440, %v442
      %v452 = vsel %vm449, %v442, %v444
      %v453 = vsel %vm449, %v444, %v446
      %v454 = vsel %vm449, %v446, %v448
      %460 = vrot.lane.b32.xlu0 %v310, 91
      %v461 = vpop.permute.xlu0 %460
      %462 = vrot.lane.b32.xlu0 %v311, 91
      %v463 = vpop.permute.xlu0 %462
      %464 = vrot.lane.b32.xlu0 %v312, 91
      %v465 = vpop.permute.xlu0 %464
      %466 = vrot.lane.b32.xlu0 %v313, 91
      %v467 = vpop.permute.xlu0 %466
      %468 = vrot.lane.b32.xlu0 %v314, 91
      %v469 = vpop.permute.xlu0 %468
      %470 = vrot.lane.b32.xlu0 %v315, 91
      %v471 = vpop.permute.xlu0 %470
      %vm472 = vcmask 744448
      %v473 = vsel %vm472, %v461, %v463
      %v474 = vsel %vm472, %v463, %v465
      %v475 = vsel %vm472, %v465, %v467
      %v476 = vsel %vm472, %v467, %v469
      %v477 = vsel %vm472, %v469, %v471
      %483 = vrot.lane.b32.xlu0 %v310, 90
      %v484 = vpop.permute.xlu0 %483
      %485 = vrot.lane.b32.xlu0 %v311, 90
      %v486 = vpop.permute.xlu0 %485
      %487 = vrot.lane.b32.xlu0 %v312, 90
      %v488 = vpop.permute.xlu0 %487
      %489 = vrot.lane.b32.xlu0 %v313, 90
      %v490 = vpop.permute.xlu0 %489
      %491 = vrot.lane.b32.xlu0 %v314, 90
      %v492 = vpop.permute.xlu0 %491
      %493 = vrot.lane.b32.xlu0 %v315, 90
      %v494 = vpop.permute.xlu0 %493
      %vm495 = vcmask 736256
      %v496 = vsel %vm495, %v484, %v486
      %v497 = vsel %vm495, %v486, %v488
      %v498 = vsel %vm495, %v488, %v490
      %v499 = vsel %vm495, %v490, %v492
      %v500 = vsel %vm495, %v492, %v494
      %v506 = vld [vmem:[%s1] sm:$0xf]
      %v507 = vld [vmem:[%s1 + $0x4] sm:$0xf]
      %v508 = vld [vmem:[%s1 + $0x8] sm:$0xf]
      %v509 = vld [vmem:[%s1 + $0xc] sm:$0xf]
      %v510 = vpack.c.bf16 %v335, %v310
      %v511 = vpack.c.bf16 %v336, %v311
      %v512 = vpack.c.bf16 %v337, %v312
      %v513 = vpack.c.bf16 %v338, %v313
      %v514 = vpack.c.bf16 %v339, %v314
      %v515 = vpack.c.bf16 %v381, %v358
      %v516 = vpack.c.bf16 %v382, %v359
      %v517 = vpack.c.bf16 %v383, %v360
      %v518 = vpack.c.bf16 %v384, %v361
      %v519 = vpack.c.bf16 %v385, %v362
      %v520 = vpack.c.bf16 %v427, %v404
      %v521 = vpack.c.bf16 %v428, %v405
      %v522 = vpack.c.bf16 %v429, %v406
      %v523 = vpack.c.bf16 %v430, %v407
      %v524 = vpack.c.bf16 %v431, %v408
      %v525 = vpack.c.bf16 %v473, %v450
      %v526 = vpack.c.bf16 %v474, %v451
      %v527 = vpack.c.bf16 %v475, %v452
      %v528 = vpack.c.bf16 %v476, %v453
      %v529 = vpack.c.bf16 %v477, %v454
      %v530 = vpack.c.bf16 %v496, %v496
      %v531 = vpack.c.bf16 %v497, %v497
      %v532 = vpack.c.bf16 %v498, %v498
      %v533 = vpack.c.bf16 %v499, %v499
      %v534 = vpack.c.bf16 %v500, %v500
      %v535 = vld [vmem:[%s2] sm:$0xff]
      %v536 = vld [vmem:[%s2 + $0x8] sm:$0xff]
      %v537 = vld [vmem:[%s2 + $0x10] sm:$0xff]
      %v538 = vld [vmem:[%s2 + $0x18] sm:$0xff]
      %540 = vset.pattern.permute.xlu0 0
      %541 = vperm.xlu0 %540, %v535
      %v542 = vpop.permute.xlu0 %541
      %545 = vset.pattern.permute.xlu0 0
      %546 = vperm.xlu0 %545, %v536
      %v547 = vpop.permute.xlu0 %546
      %550 = vset.pattern.permute.xlu0 0
      %551 = vperm.xlu0 %550, %v537
      %v552 = vpop.permute.xlu0 %551
      %555 = vset.pattern.permute.xlu0 0
      %556 = vperm.xlu0 %555, %v538
      %v557 = vpop.permute.xlu0 %556
      %v563 = vunpack.c.l.b16 %v506
      %v564 = vunpack.c.l.b16 %v507
      %v565 = vunpack.c.l.b16 %v508
      %v566 = vunpack.c.l.b16 %v509
      %v567 = vpack.c.b16 %v564, %v563
      %v568 = vpack.c.b16 %v566, %v565
      %vm569 = vcmask 588800
      %v571 = vsel %vm569, %v567, 0
      %v574 = vsel %vm569, %v568, 0
      %vm576 = vcmask 1043456
      %v578 = vsel %vm576, %v530, 0
      %v581 = vsel %vm576, %v531, 0
      %v584 = vsel %vm576, %v532, 0
      %v587 = vsel %vm576, %v533, 0
      %v590 = vsel %vm576, %v534, 0
      %592 = vmatpush.bf16.msra.mxu0 0
      %593 = vmatpush.bf16.msra.mxu0 0
      %594 = vmatpush.bf16.msra.mxu0 0
      %595 = vmatpush.bf16.msra.mxu0 %v578
      %596 = vmatpush.bf16.msra.mxu0 %v525
      %597 = vmatpush.bf16.msra.mxu0 %v520
      %598 = vmatpush.bf16.msra.mxu0 %v515
      %599 = vmatpush.bf16.msra.mxu0 %v510
      %600 = vmatmul.bf16.gmra.mxu0 %v571
      %v601 = vpop.f32.mrf.mxu0
      %v602 = vadd.f32 %v542, %v601
      %v603 = vpop.f32.mrf.mxu0
      %v604 = vadd.f32 %v547, %v603
      %605 = vmatmul.bf16.gmra.mxu0 %v574
      %v606 = vpop.f32.mrf.mxu0
      %v607 = vadd.f32 %v552, %v606
      %v608 = vpop.f32.mrf.mxu0
      %v609 = vadd.f32 %v557, %v608
      %610 = vdwg.mxu0
      %611 = vmatpush.bf16.msra.mxu0 0
      %612 = vmatpush.bf16.msra.mxu0 0
      %613 = vmatpush.bf16.msra.mxu0 0
      %614 = vmatpush.bf16.msra.mxu0 %v581
      %615 = vmatpush.bf16.msra.mxu0 %v526
      %616 = vmatpush.bf16.msra.mxu0 %v521
      %617 = vmatpush.bf16.msra.mxu0 %v516
      %618 = vmatpush.bf16.msra.mxu0 %v511
      %619 = vmatmul.bf16.gmra.mxu0 %v571
      %v620 = vpop.f32.mrf.mxu0
      %v621 = vadd.f32 %v542, %v620
      %v622 = vpop.f32.mrf.mxu0
      %v623 = vadd.f32 %v547, %v622
      %624 = vmatmul.bf16.gmra.mxu0 %v574
      %v625 = vpop.f32.mrf.mxu0
      %v626 = vadd.f32 %v552, %v625
      %v627 = vpop.f32.mrf.mxu0
      %v628 = vadd.f32 %v557, %v627
      %629 = vdwg.mxu0
      %630 = vmatpush.bf16.msra.mxu0 0
      %631 = vmatpush.bf16.msra.mxu0 0
      %632 = vmatpush.bf16.msra.mxu0 0
      %633 = vmatpush.bf16.msra.mxu0 %v584
      %634 = vmatpush.bf16.msra.mxu0 %v527
      %635 = vmatpush.bf16.msra.mxu0 %v522
      %636 = vmatpush.bf16.msra.mxu0 %v517
      %637 = vmatpush.bf16.msra.mxu0 %v512
      %638 = vmatmul.bf16.gmra.mxu0 %v571
      %v639 = vpop.f32.mrf.mxu0
      %v640 = vadd.f32 %v542, %v639
      %v641 = vpop.f32.mrf.mxu0
      %v642 = vadd.f32 %v547, %v641
      %643 = vmatmul.bf16.gmra.mxu0 %v574
      %v644 = vpop.f32.mrf.mxu0
      %v645 = vadd.f32 %v552, %v644
      %v646 = vpop.f32.mrf.mxu0
      %v647 = vadd.f32 %v557, %v646
      %648 = vdwg.mxu0
      %649 = vmatpush.bf16.msra.mxu0 0
      %650 = vmatpush.bf16.msra.mxu0 0
      %651 = vmatpush.bf16.msra.mxu0 0
      %652 = vmatpush.bf16.msra.mxu0 %v587
      %653 = vmatpush.bf16.msra.mxu0 %v528
      %654 = vmatpush.bf16.msra.mxu0 %v523
      %655 = vmatpush.bf16.msra.mxu0 %v518
      %656 = vmatpush.bf16.msra.mxu0 %v513
      %657 = vmatmul.bf16.gmra.mxu0 %v571
      %v658 = vpop.f32.mrf.mxu0
      %v659 = vadd.f32 %v542, %v658
      %v660 = vpop.f32.mrf.mxu0
      %v661 = vadd.f32 %v547, %v660
      %662 = vmatmul.bf16.gmra.mxu0 %v574
      %v663 = vpop.f32.mrf.mxu0
      %v664 = vadd.f32 %v552, %v663
      %v665 = vpop.f32.mrf.mxu0
      %v666 = vadd.f32 %v557, %v665
      %667 = vdwg.mxu0
      %668 = vmatpush.bf16.msra.mxu0 0
      %669 = vmatpush.bf16.msra.mxu0 0
      %670 = vmatpush.bf16.msra.mxu0 0
      %671 = vmatpush.bf16.msra.mxu0 %v590
      %672 = vmatpush.bf16.msra.mxu0 %v529
      %673 = vmatpush.bf16.msra.mxu0 %v524
      %674 = vmatpush.bf16.msra.mxu0 %v519
      %675 = vmatpush.bf16.msra.mxu0 %v514
      %676 = vmatmul.bf16.gmra.mxu0 %v571
      %v677 = vpop.f32.mrf.mxu0
      %v678 = vadd.f32 %v542, %v677
      %v679 = vpop.f32.mrf.mxu0
      %v680 = vadd.f32 %v547, %v679
      %681 = vmatmul.bf16.gmra.mxu0 %v574
      %v682 = vpop.f32.mrf.mxu0
      %v683 = vadd.f32 %v552, %v682
      %v684 = vpop.f32.mrf.mxu0
      %v685 = vadd.f32 %v557, %v684
      %686 = vdwg.mxu0
      %v687 = vmax.f32 %v602, 0.0
      %v688 = vmax.f32 %v621, 0.0
      %v689 = vmax.f32 %v640, 0.0
      %v690 = vmax.f32 %v659, 0.0
      %v691 = vmax.f32 %v678, 0.0
      %v692 = vmax.f32 %v604, 0.0
      %v693 = vmax.f32 %v623, 0.0
      %v694 = vmax.f32 %v642, 0.0
      %v695 = vmax.f32 %v661, 0.0
      %v696 = vmax.f32 %v680, 0.0
      %v697 = vmax.f32 %v607, 0.0
      %v698 = vmax.f32 %v626, 0.0
      %v699 = vmax.f32 %v645, 0.0
      %v700 = vmax.f32 %v664, 0.0
      %v701 = vmax.f32 %v683, 0.0
      %v702 = vmax.f32 %v609, 0.0
      %v703 = vmax.f32 %v628, 0.0
      %v704 = vmax.f32 %v647, 0.0
      %v705 = vmax.f32 %v666, 0.0
      %v706 = vmax.f32 %v685, 0.0
      %v707 = vld [vmem:[%s6] sm:$0x1f]
      %v709 = vperm.slane %v707, 0
      %v710 = vperm.slane %v707, 1
      %v711 = vperm.slane %v707, 2
      %v712 = vperm.slane %v707, 3
      %v713 = vperm.slane %v707, 4
      %v719 = vmul.f32 %v687, %v709
      %v720 = vmul.f32 %v688, %v710
      %v721 = vmul.f32 %v689, %v711
      %v722 = vmul.f32 %v690, %v712
      %v723 = vmul.f32 %v691, %v713
      %v724 = vmul.f32 %v692, %v709
      %v725 = vmul.f32 %v693, %v710
      %v726 = vmul.f32 %v694, %v711
      %v727 = vmul.f32 %v695, %v712
      %v728 = vmul.f32 %v696, %v713
      %v729 = vmul.f32 %v697, %v709
      %v730 = vmul.f32 %v698, %v710
      %v731 = vmul.f32 %v699, %v711
      %v732 = vmul.f32 %v700, %v712
      %v733 = vmul.f32 %v701, %v713
      %v734 = vmul.f32 %v702, %v709
      %v735 = vmul.f32 %v703, %v710
      %v736 = vmul.f32 %v704, %v711
      %v737 = vmul.f32 %v705, %v712
      %v738 = vmul.f32 %v706, %v713
      %v739 = vpack.c.bf16 %v724, %v719
      %v740 = vpack.c.bf16 %v725, %v720
      %v741 = vpack.c.bf16 %v726, %v721
      %v742 = vpack.c.bf16 %v727, %v722
      %v743 = vpack.c.bf16 %v734, %v729
      %v744 = vpack.c.bf16 %v735, %v730
      %v745 = vpack.c.bf16 %v736, %v731
      %v746 = vpack.c.bf16 %v737, %v732
      %v747 = vld [vmem:[%s3] sm:$0xf]
      %v748 = vld [vmem:[%s3 + $0x4] sm:$0xf]
      %v749 = vld [vmem:[%s3 + $0x8] sm:$0xf]
      %v750 = vld [vmem:[%s3 + $0xc] sm:$0xf]
      %v751 = vpack.c.bf16 %v728, %v723
      %v752 = vpack.c.bf16 %v738, %v733
      %s753 = scalar_lea.vmem %s3, 16
      %v754 = vld [vmem:[%s753] sm:$0xf]
      %v755 = vld [vmem:[%s753 + $0x4] sm:$0xf]
      %v756 = vld [vmem:[%s753 + $0x8] sm:$0xf]
      %v757 = vld [vmem:[%s753 + $0xc] sm:$0xf]
      %v762 = vunpack.c.l.b16 %v754
      %v763 = vunpack.c.l.b16 %v755
      %v764 = vunpack.c.l.b16 %v756
      %v765 = vunpack.c.l.b16 %v757
      %v766 = vpack.c.b16 %v763, %v762
      %v767 = vpack.c.b16 %v765, %v764
      %778 = vrot.lane.b32.xlu0 %v739, 127
      %v779 = vpop.permute.xlu0 %778
      %780 = vrot.lane.b32.xlu0 %v740, 127
      %v781 = vpop.permute.xlu0 %780
      %782 = vrot.lane.b32.xlu0 %v741, 127
      %v783 = vpop.permute.xlu0 %782
      %784 = vrot.lane.b32.xlu0 %v742, 127
      %v785 = vpop.permute.xlu0 %784
      %786 = vrot.lane.b32.xlu0 %v751, 127
      %v787 = vpop.permute.xlu0 %786
      %788 = vrot.lane.b32.xlu0 %v743, 127
      %v789 = vpop.permute.xlu0 %788
      %790 = vrot.lane.b32.xlu0 %v744, 127
      %v791 = vpop.permute.xlu0 %790
      %792 = vrot.lane.b32.xlu0 %v745, 127
      %v793 = vpop.permute.xlu0 %792
      %794 = vrot.lane.b32.xlu0 %v746, 127
      %v795 = vpop.permute.xlu0 %794
      %796 = vrot.lane.b32.xlu0 %v752, 127
      %v797 = vpop.permute.xlu0 %796
      %vm798 = vcmask 1039360
      %v799 = vsel %vm798, %v779, %v781
      %v800 = vsel %vm798, %v781, %v783
      %v801 = vsel %vm798, %v783, %v785
      %v802 = vsel %vm798, %v785, %v787
      %v803 = vsel %vm798, %v789, %v791
      %v804 = vsel %vm798, %v791, %v793
      %v805 = vsel %vm798, %v793, %v795
      %v806 = vsel %vm798, %v795, %v797
      %vm815 = vcmask 261120
      %v817 = vsel %vm815, %v766, 0
      %v820 = vsel %vm815, %v767, 0
      %822 = vmatpush.bf16.msra.mxu0 0
      %823 = vmatpush.bf16.msra.mxu0 0
      %824 = vmatpush.bf16.msra.mxu0 0
      %825 = vmatpush.bf16.msra.mxu0 0
      %826 = vmatpush.bf16.msra.mxu0 0
      %827 = vmatpush.bf16.msra.mxu0 0
      %828 = vmatpush.bf16.msra.mxu0 %v803
      %829 = vmatpush.bf16.msra.mxu0 %v799
      %830 = vmatmul.bf16.gmra.mxu0 %v817
      %v831 = vpop.f32.mrf.mxu0
      %v832 = vadd.f32 0.0, %v831
      %v833 = vpop.f32.mrf.mxu0
      %v834 = vadd.f32 0.0, %v833
      %835 = vmatmul.bf16.gmra.mxu0 %v820
      %v836 = vpop.f32.mrf.mxu0
      %v837 = vadd.f32 0.0, %v836
      %v838 = vpop.f32.mrf.mxu0
      %v839 = vadd.f32 0.0, %v838
      %840 = vdwg.mxu0
      %841 = vmatpush.bf16.msra.mxu0 0
      %842 = vmatpush.bf16.msra.mxu0 0
      %843 = vmatpush.bf16.msra.mxu0 0
      %844 = vmatpush.bf16.msra.mxu0 0
      %845 = vmatpush.bf16.msra.mxu0 0
      %846 = vmatpush.bf16.msra.mxu0 0
      %847 = vmatpush.bf16.msra.mxu0 %v804
      %848 = vmatpush.bf16.msra.mxu0 %v800
      %849 = vmatmul.bf16.gmra.mxu0 %v817
      %v850 = vpop.f32.mrf.mxu0
      %v851 = vadd.f32 0.0, %v850
      %v852 = vpop.f32.mrf.mxu0
      %v853 = vadd.f32 0.0, %v852
      %854 = vmatmul.bf16.gmra.mxu0 %v820
      %v855 = vpop.f32.mrf.mxu0
      %v856 = vadd.f32 0.0, %v855
      %v857 = vpop.f32.mrf.mxu0
      %v858 = vadd.f32 0.0, %v857
      %859 = vdwg.mxu0
      %860 = vmatpush.bf16.msra.mxu0 0
      %861 = vmatpush.bf16.msra.mxu0 0
      %862 = vmatpush.bf16.msra.mxu0 0
      %863 = vmatpush.bf16.msra.mxu0 0
      %864 = vmatpush.bf16.msra.mxu0 0
      %865 = vmatpush.bf16.msra.mxu0 0
      %866 = vmatpush.bf16.msra.mxu0 %v805
      %867 = vmatpush.bf16.msra.mxu0 %v801
      %868 = vmatmul.bf16.gmra.mxu0 %v817
      %v869 = vpop.f32.mrf.mxu0
      %v870 = vadd.f32 0.0, %v869
      %v871 = vpop.f32.mrf.mxu0
      %v872 = vadd.f32 0.0, %v871
      %873 = vmatmul.bf16.gmra.mxu0 %v820
      %v874 = vpop.f32.mrf.mxu0
      %v875 = vadd.f32 0.0, %v874
      %v876 = vpop.f32.mrf.mxu0
      %v877 = vadd.f32 0.0, %v876
      %878 = vdwg.mxu0
      %879 = vmatpush.bf16.msra.mxu0 0
      %880 = vmatpush.bf16.msra.mxu0 0
      %881 = vmatpush.bf16.msra.mxu0 0
      %882 = vmatpush.bf16.msra.mxu0 0
      %883 = vmatpush.bf16.msra.mxu0 0
      %884 = vmatpush.bf16.msra.mxu0 0
      %885 = vmatpush.bf16.msra.mxu0 %v806
      %886 = vmatpush.bf16.msra.mxu0 %v802
      %887 = vmatmul.bf16.gmra.mxu0 %v817
      %v888 = vpop.f32.mrf.mxu0
      %v889 = vadd.f32 0.0, %v888
      %v890 = vpop.f32.mrf.mxu0
      %v891 = vadd.f32 0.0, %v890
      %892 = vmatmul.bf16.gmra.mxu0 %v820
      %v893 = vpop.f32.mrf.mxu0
      %v894 = vadd.f32 0.0, %v893
      %v895 = vpop.f32.mrf.mxu0
      %v896 = vadd.f32 0.0, %v895
      %897 = vdwg.mxu0
      %v902 = vunpack.c.l.b16 %v747
      %v903 = vunpack.c.l.b16 %v748
      %v904 = vunpack.c.l.b16 %v749
      %v905 = vunpack.c.l.b16 %v750
      %v906 = vpack.c.b16 %v903, %v902
      %v907 = vpack.c.b16 %v905, %v904
      %v909 = vsel %vm815, %v906, 0
      %v912 = vsel %vm815, %v907, 0
      %914 = vmatpush.bf16.msra.mxu0 0
      %915 = vmatpush.bf16.msra.mxu0 0
      %916 = vmatpush.bf16.msra.mxu0 0
      %917 = vmatpush.bf16.msra.mxu0 0
      %918 = vmatpush.bf16.msra.mxu0 0
      %919 = vmatpush.bf16.msra.mxu0 0
      %920 = vmatpush.bf16.msra.mxu0 %v743
      %921 = vmatpush.bf16.msra.mxu0 %v739
      %922 = vmatmul.bf16.gmra.mxu0 %v909
      %v923 = vpop.f32.mrf.mxu0
      %v924 = vadd.f32 %v832, %v923
      %v925 = vpop.f32.mrf.mxu0
      %v926 = vadd.f32 %v834, %v925
      %927 = vmatmul.bf16.gmra.mxu0 %v912
      %v928 = vpop.f32.mrf.mxu0
      %v929 = vadd.f32 %v837, %v928
      %v930 = vpop.f32.mrf.mxu0
      %v931 = vadd.f32 %v839, %v930
      %932 = vdwg.mxu0
      %933 = vmatpush.bf16.msra.mxu0 0
      %934 = vmatpush.bf16.msra.mxu0 0
      %935 = vmatpush.bf16.msra.mxu0 0
      %936 = vmatpush.bf16.msra.mxu0 0
      %937 = vmatpush.bf16.msra.mxu0 0
      %938 = vmatpush.bf16.msra.mxu0 0
      %939 = vmatpush.bf16.msra.mxu0 %v744
      %940 = vmatpush.bf16.msra.mxu0 %v740
      %941 = vmatmul.bf16.gmra.mxu0 %v909
      %v942 = vpop.f32.mrf.mxu0
      %v943 = vadd.f32 %v851, %v942
      %v944 = vpop.f32.mrf.mxu0
      %v945 = vadd.f32 %v853, %v944
      %946 = vmatmul.bf16.gmra.mxu0 %v912
      %v947 = vpop.f32.mrf.mxu0
      %v948 = vadd.f32 %v856, %v947
      %v949 = vpop.f32.mrf.mxu0
      %v950 = vadd.f32 %v858, %v949
      %951 = vdwg.mxu0
      %952 = vmatpush.bf16.msra.mxu0 0
      %953 = vmatpush.bf16.msra.mxu0 0
      %954 = vmatpush.bf16.msra.mxu0 0
      %955 = vmatpush.bf16.msra.mxu0 0
      %956 = vmatpush.bf16.msra.mxu0 0
      %957 = vmatpush.bf16.msra.mxu0 0
      %958 = vmatpush.bf16.msra.mxu0 %v745
      %959 = vmatpush.bf16.msra.mxu0 %v741
      %960 = vmatmul.bf16.gmra.mxu0 %v909
      %v961 = vpop.f32.mrf.mxu0
      %v962 = vadd.f32 %v870, %v961
      %v963 = vpop.f32.mrf.mxu0
      %v964 = vadd.f32 %v872, %v963
      %965 = vmatmul.bf16.gmra.mxu0 %v912
      %v966 = vpop.f32.mrf.mxu0
      %v967 = vadd.f32 %v875, %v966
      %v968 = vpop.f32.mrf.mxu0
      %v969 = vadd.f32 %v877, %v968
      %970 = vdwg.mxu0
      %971 = vmatpush.bf16.msra.mxu0 0
      %972 = vmatpush.bf16.msra.mxu0 0
      %973 = vmatpush.bf16.msra.mxu0 0
      %974 = vmatpush.bf16.msra.mxu0 0
      %975 = vmatpush.bf16.msra.mxu0 0
      %976 = vmatpush.bf16.msra.mxu0 0
      %977 = vmatpush.bf16.msra.mxu0 %v746
      %978 = vmatpush.bf16.msra.mxu0 %v742
      %979 = vmatmul.bf16.gmra.mxu0 %v909
      %v980 = vpop.f32.mrf.mxu0
      %v981 = vadd.f32 %v889, %v980
      %v982 = vpop.f32.mrf.mxu0
      %v983 = vadd.f32 %v891, %v982
      %984 = vmatmul.bf16.gmra.mxu0 %v912
      %v985 = vpop.f32.mrf.mxu0
      %v986 = vadd.f32 %v894, %v985
      %v987 = vpop.f32.mrf.mxu0
      %v988 = vadd.f32 %v896, %v987
      %989 = vdwg.mxu0
      %s990 = scalar_lea.vmem %s3, 32
      %v991 = vld [vmem:[%s990] sm:$0xf]
      %v992 = vld [vmem:[%s990 + $0x4] sm:$0xf]
      %v993 = vld [vmem:[%s990 + $0x8] sm:$0xf]
      %v994 = vld [vmem:[%s990 + $0xc] sm:$0xf]
      %v999 = vunpack.c.l.b16 %v991
      %v1000 = vunpack.c.l.b16 %v992
      %v1001 = vunpack.c.l.b16 %v993
      %v1002 = vunpack.c.l.b16 %v994
      %v1003 = vpack.c.b16 %v1000, %v999
      %v1004 = vpack.c.b16 %v1002, %v1001
      %1005 = vrot.lane.b32.xlu0 %v739, 126
      %v1006 = vpop.permute.xlu0 %1005
      %1007 = vrot.lane.b32.xlu0 %v740, 126
      %v1008 = vpop.permute.xlu0 %1007
      %1009 = vrot.lane.b32.xlu0 %v741, 126
      %v1010 = vpop.permute.xlu0 %1009
      %1011 = vrot.lane.b32.xlu0 %v742, 126
      %v1012 = vpop.permute.xlu0 %1011
      %1013 = vrot.lane.b32.xlu0 %v751, 126
      %v1014 = vpop.permute.xlu0 %1013
      %1015 = vrot.lane.b32.xlu0 %v743, 126
      %v1016 = vpop.permute.xlu0 %1015
      %1017 = vrot.lane.b32.xlu0 %v744, 126
      %v1018 = vpop.permute.xlu0 %1017
      %1019 = vrot.lane.b32.xlu0 %v745, 126
      %v1020 = vpop.permute.xlu0 %1019
      %1021 = vrot.lane.b32.xlu0 %v746, 126
      %v1022 = vpop.permute.xlu0 %1021
      %1023 = vrot.lane.b32.xlu0 %v752, 126
      %v1024 = vpop.permute.xlu0 %1023
      %vm1025 = vcmask 1031168
      %v1026 = vsel %vm1025, %v1006, %v1008
      %v1027 = vsel %vm1025, %v1008, %v1010
      %v1028 = vsel %vm1025, %v1010, %v1012
      %v1029 = vsel %vm1025, %v1012, %v1014
      %v1030 = vsel %vm1025, %v1016, %v1018
      %v1031 = vsel %vm1025, %v1018, %v1020
      %v1032 = vsel %vm1025, %v1020, %v1022
      %v1033 = vsel %vm1025, %v1022, %v1024
      %v1043 = vsel %vm815, %v1003, 0
      %v1046 = vsel %vm815, %v1004, 0
      %1048 = vmatpush.bf16.msra.mxu0 0
      %1049 = vmatpush.bf16.msra.mxu0 0
      %1050 = vmatpush.bf16.msra.mxu0 0
      %1051 = vmatpush.bf16.msra.mxu0 0
      %1052 = vmatpush.bf16.msra.mxu0 0
      %1053 = vmatpush.bf16.msra.mxu0 0
      %1054 = vmatpush.bf16.msra.mxu0 %v1030
      %1055 = vmatpush.bf16.msra.mxu0 %v1026
      %1056 = vmatmul.bf16.gmra.mxu0 %v1043
      %v1057 = vpop.f32.mrf.mxu0
      %v1058 = vadd.f32 0.0, %v1057
      %v1059 = vpop.f32.mrf.mxu0
      %v1060 = vadd.f32 0.0, %v1059
      %1061 = vmatmul.bf16.gmra.mxu0 %v1046
      %v1062 = vpop.f32.mrf.mxu0
      %v1063 = vadd.f32 0.0, %v1062
      %v1064 = vpop.f32.mrf.mxu0
      %v1065 = vadd.f32 0.0, %v1064
      %1066 = vdwg.mxu0
      %1067 = vmatpush.bf16.msra.mxu0 0
      %1068 = vmatpush.bf16.msra.mxu0 0
      %1069 = vmatpush.bf16.msra.mxu0 0
      %1070 = vmatpush.bf16.msra.mxu0 0
      %1071 = vmatpush.bf16.msra.mxu0 0
      %1072 = vmatpush.bf16.msra.mxu0 0
      %1073 = vmatpush.bf16.msra.mxu0 %v1031
      %1074 = vmatpush.bf16.msra.mxu0 %v1027
      %1075 = vmatmul.bf16.gmra.mxu0 %v1043
      %v1076 = vpop.f32.mrf.mxu0
      %v1077 = vadd.f32 0.0, %v1076
      %v1078 = vpop.f32.mrf.mxu0
      %v1079 = vadd.f32 0.0, %v1078
      %1080 = vmatmul.bf16.gmra.mxu0 %v1046
      %v1081 = vpop.f32.mrf.mxu0
      %v1082 = vadd.f32 0.0, %v1081
      %v1083 = vpop.f32.mrf.mxu0
      %v1084 = vadd.f32 0.0, %v1083
      %1085 = vdwg.mxu0
      %1086 = vmatpush.bf16.msra.mxu0 0
      %1087 = vmatpush.bf16.msra.mxu0 0
      %1088 = vmatpush.bf16.msra.mxu0 0
      %1089 = vmatpush.bf16.msra.mxu0 0
      %1090 = vmatpush.bf16.msra.mxu0 0
      %1091 = vmatpush.bf16.msra.mxu0 0
      %1092 = vmatpush.bf16.msra.mxu0 %v1032
      %1093 = vmatpush.bf16.msra.mxu0 %v1028
      %1094 = vmatmul.bf16.gmra.mxu0 %v1043
      %v1095 = vpop.f32.mrf.mxu0
      %v1096 = vadd.f32 0.0, %v1095
      %v1097 = vpop.f32.mrf.mxu0
      %v1098 = vadd.f32 0.0, %v1097
      %1099 = vmatmul.bf16.gmra.mxu0 %v1046
      %v1100 = vpop.f32.mrf.mxu0
      %v1101 = vadd.f32 0.0, %v1100
      %v1102 = vpop.f32.mrf.mxu0
      %v1103 = vadd.f32 0.0, %v1102
      %1104 = vdwg.mxu0
      %1105 = vmatpush.bf16.msra.mxu0 0
      %1106 = vmatpush.bf16.msra.mxu0 0
      %1107 = vmatpush.bf16.msra.mxu0 0
      %1108 = vmatpush.bf16.msra.mxu0 0
      %1109 = vmatpush.bf16.msra.mxu0 0
      %1110 = vmatpush.bf16.msra.mxu0 0
      %1111 = vmatpush.bf16.msra.mxu0 %v1033
      %1112 = vmatpush.bf16.msra.mxu0 %v1029
      %1113 = vmatmul.bf16.gmra.mxu0 %v1043
      %v1114 = vpop.f32.mrf.mxu0
      %v1115 = vadd.f32 0.0, %v1114
      %v1116 = vpop.f32.mrf.mxu0
      %v1117 = vadd.f32 0.0, %v1116
      %1118 = vmatmul.bf16.gmra.mxu0 %v1046
      %v1119 = vpop.f32.mrf.mxu0
      %v1120 = vadd.f32 0.0, %v1119
      %v1121 = vpop.f32.mrf.mxu0
      %v1122 = vadd.f32 0.0, %v1121
      %1123 = vdwg.mxu0
      %v1124 = vadd.f32 %v924, %v1058
      %v1125 = vadd.f32 %v943, %v1077
      %v1126 = vadd.f32 %v962, %v1096
      %v1127 = vadd.f32 %v981, %v1115
      %v1128 = vadd.f32 %v926, %v1060
      %v1129 = vadd.f32 %v945, %v1079
      %v1130 = vadd.f32 %v964, %v1098
      %v1131 = vadd.f32 %v983, %v1117
      %v1132 = vadd.f32 %v929, %v1063
      %v1133 = vadd.f32 %v948, %v1082
      %v1134 = vadd.f32 %v967, %v1101
      %v1135 = vadd.f32 %v986, %v1120
      %v1136 = vadd.f32 %v931, %v1065
      %v1137 = vadd.f32 %v950, %v1084
      %v1138 = vadd.f32 %v969, %v1103
      %v1139 = vadd.f32 %v988, %v1122
      %s1140 = scalar_lea.vmem %s3, 48
      %v1141 = vld [vmem:[%s1140] sm:$0xf]
      %v1142 = vld [vmem:[%s1140 + $0x4] sm:$0xf]
      %v1143 = vld [vmem:[%s1140 + $0x8] sm:$0xf]
      %v1144 = vld [vmem:[%s1140 + $0xc] sm:$0xf]
      %v1149 = vunpack.c.l.b16 %v1141
      %v1150 = vunpack.c.l.b16 %v1142
      %v1151 = vunpack.c.l.b16 %v1143
      %v1152 = vunpack.c.l.b16 %v1144
      %v1153 = vpack.c.b16 %v1150, %v1149
      %v1154 = vpack.c.b16 %v1152, %v1151
      %1155 = vrot.lane.b32.xlu0 %v739, 110
      %v1156 = vpop.permute.xlu0 %1155
      %1157 = vrot.lane.b32.xlu0 %v740, 110
      %v1158 = vpop.permute.xlu0 %1157
      %1159 = vrot.lane.b32.xlu0 %v741, 110
      %v1160 = vpop.permute.xlu0 %1159
      %1161 = vrot.lane.b32.xlu0 %v742, 110
      %v1162 = vpop.permute.xlu0 %1161
      %1163 = vrot.lane.b32.xlu0 %v751, 110
      %v1164 = vpop.permute.xlu0 %1163
      %1165 = vrot.lane.b32.xlu0 %v743, 110
      %v1166 = vpop.permute.xlu0 %1165
      %1167 = vrot.lane.b32.xlu0 %v744, 110
      %v1168 = vpop.permute.xlu0 %1167
      %1169 = vrot.lane.b32.xlu0 %v745, 110
      %v1170 = vpop.permute.xlu0 %1169
      %1171 = vrot.lane.b32.xlu0 %v746, 110
      %v1172 = vpop.permute.xlu0 %1171
      %1173 = vrot.lane.b32.xlu0 %v752, 110
      %v1174 = vpop.permute.xlu0 %1173
      %vm1175 = vcmask 900096
      %v1176 = vsel %vm1175, %v1156, %v1158
      %v1177 = vsel %vm1175, %v1158, %v1160
      %v1178 = vsel %vm1175, %v1160, %v1162
      %v1179 = vsel %vm1175, %v1162, %v1164
      %v1180 = vsel %vm1175, %v1166, %v1168
      %v1181 = vsel %vm1175, %v1168, %v1170
      %v1182 = vsel %vm1175, %v1170, %v1172
      %v1183 = vsel %vm1175, %v1172, %v1174
      %v1193 = vsel %vm815, %v1153, 0
      %v1196 = vsel %vm815, %v1154, 0
      %1198 = vmatpush.bf16.msra.mxu0 0
      %1199 = vmatpush.bf16.msra.mxu0 0
      %1200 = vmatpush.bf16.msra.mxu0 0
      %1201 = vmatpush.bf16.msra.mxu0 0
      %1202 = vmatpush.bf16.msra.mxu0 0
      %1203 = vmatpush.bf16.msra.mxu0 0
      %1204 = vmatpush.bf16.msra.mxu0 %v1180
      %1205 = vmatpush.bf16.msra.mxu0 %v1176
      %1206 = vmatmul.bf16.gmra.mxu0 %v1193
      %v1207 = vpop.f32.mrf.mxu0
      %v1208 = vadd.f32 0.0, %v1207
      %v1209 = vpop.f32.mrf.mxu0
      %v1210 = vadd.f32 0.0, %v1209
      %1211 = vmatmul.bf16.gmra.mxu0 %v1196
      %v1212 = vpop.f32.mrf.mxu0
      %v1213 = vadd.f32 0.0, %v1212
      %v1214 = vpop.f32.mrf.mxu0
      %v1215 = vadd.f32 0.0, %v1214
      %1216 = vdwg.mxu0
      %1217 = vmatpush.bf16.msra.mxu0 0
      %1218 = vmatpush.bf16.msra.mxu0 0
      %1219 = vmatpush.bf16.msra.mxu0 0
      %1220 = vmatpush.bf16.msra.mxu0 0
      %1221 = vmatpush.bf16.msra.mxu0 0
      %1222 = vmatpush.bf16.msra.mxu0 0
      %1223 = vmatpush.bf16.msra.mxu0 %v1181
      %1224 = vmatpush.bf16.msra.mxu0 %v1177
      %1225 = vmatmul.bf16.gmra.mxu0 %v1193
      %v1226 = vpop.f32.mrf.mxu0
      %v1227 = vadd.f32 0.0, %v1226
      %v1228 = vpop.f32.mrf.mxu0
      %v1229 = vadd.f32 0.0, %v1228
      %1230 = vmatmul.bf16.gmra.mxu0 %v1196
      %v1231 = vpop.f32.mrf.mxu0
      %v1232 = vadd.f32 0.0, %v1231
      %v1233 = vpop.f32.mrf.mxu0
      %v1234 = vadd.f32 0.0, %v1233
      %1235 = vdwg.mxu0
      %1236 = vmatpush.bf16.msra.mxu0 0
      %1237 = vmatpush.bf16.msra.mxu0 0
      %1238 = vmatpush.bf16.msra.mxu0 0
      %1239 = vmatpush.bf16.msra.mxu0 0
      %1240 = vmatpush.bf16.msra.mxu0 0
      %1241 = vmatpush.bf16.msra.mxu0 0
      %1242 = vmatpush.bf16.msra.mxu0 %v1182
      %1243 = vmatpush.bf16.msra.mxu0 %v1178
      %1244 = vmatmul.bf16.gmra.mxu0 %v1193
      %v1245 = vpop.f32.mrf.mxu0
      %v1246 = vadd.f32 0.0, %v1245
      %v1247 = vpop.f32.mrf.mxu0
      %v1248 = vadd.f32 0.0, %v1247
      %1249 = vmatmul.bf16.gmra.mxu0 %v1196
      %v1250 = vpop.f32.mrf.mxu0
      %v1251 = vadd.f32 0.0, %v1250
      %v1252 = vpop.f32.mrf.mxu0
      %v1253 = vadd.f32 0.0, %v1252
      %1254 = vdwg.mxu0
      %1255 = vmatpush.bf16.msra.mxu0 0
      %1256 = vmatpush.bf16.msra.mxu0 0
      %1257 = vmatpush.bf16.msra.mxu0 0
      %1258 = vmatpush.bf16.msra.mxu0 0
      %1259 = vmatpush.bf16.msra.mxu0 0
      %1260 = vmatpush.bf16.msra.mxu0 0
      %1261 = vmatpush.bf16.msra.mxu0 %v1183
      %1262 = vmatpush.bf16.msra.mxu0 %v1179
      %1263 = vmatmul.bf16.gmra.mxu0 %v1193
      %v1264 = vpop.f32.mrf.mxu0
      %v1265 = vadd.f32 0.0, %v1264
      %v1266 = vpop.f32.mrf.mxu0
      %v1267 = vadd.f32 0.0, %v1266
      %1268 = vmatmul.bf16.gmra.mxu0 %v1196
      %v1269 = vpop.f32.mrf.mxu0
      %v1270 = vadd.f32 0.0, %v1269
      %v1271 = vpop.f32.mrf.mxu0
      %v1272 = vadd.f32 0.0, %v1271
      %1273 = vdwg.mxu0
      %v1274 = vadd.f32 %v1124, %v1208
      %v1275 = vadd.f32 %v1125, %v1227
      %v1276 = vadd.f32 %v1126, %v1246
      %v1277 = vadd.f32 %v1127, %v1265
      %v1278 = vadd.f32 %v1128, %v1210
      %v1279 = vadd.f32 %v1129, %v1229
      %v1280 = vadd.f32 %v1130, %v1248
      %v1281 = vadd.f32 %v1131, %v1267
      %v1282 = vadd.f32 %v1132, %v1213
      %v1283 = vadd.f32 %v1133, %v1232
      %v1284 = vadd.f32 %v1134, %v1251
      %v1285 = vadd.f32 %v1135, %v1270
      %v1286 = vadd.f32 %v1136, %v1215
      %v1287 = vadd.f32 %v1137, %v1234
      %v1288 = vadd.f32 %v1138, %v1253
      %v1289 = vadd.f32 %v1139, %v1272
      %s1290 = scalar_lea.vmem %s3, 64
      %v1291 = vld [vmem:[%s1290] sm:$0xf]
      %v1292 = vld [vmem:[%s1290 + $0x4] sm:$0xf]
      %v1293 = vld [vmem:[%s1290 + $0x8] sm:$0xf]
      %v1294 = vld [vmem:[%s1290 + $0xc] sm:$0xf]
      %v1299 = vunpack.c.l.b16 %v1291
      %v1300 = vunpack.c.l.b16 %v1292
      %v1301 = vunpack.c.l.b16 %v1293
      %v1302 = vunpack.c.l.b16 %v1294
      %v1303 = vpack.c.b16 %v1300, %v1299
      %v1304 = vpack.c.b16 %v1302, %v1301
      %1305 = vrot.lane.b32.xlu0 %v739, 109
      %v1306 = vpop.permute.xlu0 %1305
      %1307 = vrot.lane.b32.xlu0 %v740, 109
      %v1308 = vpop.permute.xlu0 %1307
      %1309 = vrot.lane.b32.xlu0 %v741, 109
      %v1310 = vpop.permute.xlu0 %1309
      %1311 = vrot.lane.b32.xlu0 %v742, 109
      %v1312 = vpop.permute.xlu0 %1311
      %1313 = vrot.lane.b32.xlu0 %v751, 109
      %v1314 = vpop.permute.xlu0 %1313
      %1315 = vrot.lane.b32.xlu0 %v743, 109
      %v1316 = vpop.permute.xlu0 %1315
      %1317 = vrot.lane.b32.xlu0 %v744, 109
      %v1318 = vpop.permute.xlu0 %1317
      %1319 = vrot.lane.b32.xlu0 %v745, 109
      %v1320 = vpop.permute.xlu0 %1319
      %1321 = vrot.lane.b32.xlu0 %v746, 109
      %v1322 = vpop.permute.xlu0 %1321
      %1323 = vrot.lane.b32.xlu0 %v752, 109
      %v1324 = vpop.permute.xlu0 %1323
      %vm1325 = vcmask 891904
      %v1326 = vsel %vm1325, %v1306, %v1308
      %v1327 = vsel %vm1325, %v1308, %v1310
      %v1328 = vsel %vm1325, %v1310, %v1312
      %v1329 = vsel %vm1325, %v1312, %v1314
      %v1330 = vsel %vm1325, %v1316, %v1318
      %v1331 = vsel %vm1325, %v1318, %v1320
      %v1332 = vsel %vm1325, %v1320, %v1322
      %v1333 = vsel %vm1325, %v1322, %v1324
      %v1343 = vsel %vm815, %v1303, 0
      %v1346 = vsel %vm815, %v1304, 0
      %1348 = vmatpush.bf16.msra.mxu0 0
      %1349 = vmatpush.bf16.msra.mxu0 0
      %1350 = vmatpush.bf16.msra.mxu0 0
      %1351 = vmatpush.bf16.msra.mxu0 0
      %1352 = vmatpush.bf16.msra.mxu0 0
      %1353 = vmatpush.bf16.msra.mxu0 0
      %1354 = vmatpush.bf16.msra.mxu0 %v1330
      %1355 = vmatpush.bf16.msra.mxu0 %v1326
      %1356 = vmatmul.bf16.gmra.mxu0 %v1343
      %v1357 = vpop.f32.mrf.mxu0
      %v1358 = vadd.f32 0.0, %v1357
      %v1359 = vpop.f32.mrf.mxu0
      %v1360 = vadd.f32 0.0, %v1359
      %1361 = vmatmul.bf16.gmra.mxu0 %v1346
      %v1362 = vpop.f32.mrf.mxu0
      %v1363 = vadd.f32 0.0, %v1362
      %v1364 = vpop.f32.mrf.mxu0
      %v1365 = vadd.f32 0.0, %v1364
      %1366 = vdwg.mxu0
      %1367 = vmatpush.bf16.msra.mxu0 0
      %1368 = vmatpush.bf16.msra.mxu0 0
      %1369 = vmatpush.bf16.msra.mxu0 0
      %1370 = vmatpush.bf16.msra.mxu0 0
      %1371 = vmatpush.bf16.msra.mxu0 0
      %1372 = vmatpush.bf16.msra.mxu0 0
      %1373 = vmatpush.bf16.msra.mxu0 %v1331
      %1374 = vmatpush.bf16.msra.mxu0 %v1327
      %1375 = vmatmul.bf16.gmra.mxu0 %v1343
      %v1376 = vpop.f32.mrf.mxu0
      %v1377 = vadd.f32 0.0, %v1376
      %v1378 = vpop.f32.mrf.mxu0
      %v1379 = vadd.f32 0.0, %v1378
      %1380 = vmatmul.bf16.gmra.mxu0 %v1346
      %v1381 = vpop.f32.mrf.mxu0
      %v1382 = vadd.f32 0.0, %v1381
      %v1383 = vpop.f32.mrf.mxu0
      %v1384 = vadd.f32 0.0, %v1383
      %1385 = vdwg.mxu0
      %1386 = vmatpush.bf16.msra.mxu0 0
      %1387 = vmatpush.bf16.msra.mxu0 0
      %1388 = vmatpush.bf16.msra.mxu0 0
      %1389 = vmatpush.bf16.msra.mxu0 0
      %1390 = vmatpush.bf16.msra.mxu0 0
      %1391 = vmatpush.bf16.msra.mxu0 0
      %1392 = vmatpush.bf16.msra.mxu0 %v1332
      %1393 = vmatpush.bf16.msra.mxu0 %v1328
      %1394 = vmatmul.bf16.gmra.mxu0 %v1343
      %v1395 = vpop.f32.mrf.mxu0
      %v1396 = vadd.f32 0.0, %v1395
      %v1397 = vpop.f32.mrf.mxu0
      %v1398 = vadd.f32 0.0, %v1397
      %1399 = vmatmul.bf16.gmra.mxu0 %v1346
      %v1400 = vpop.f32.mrf.mxu0
      %v1401 = vadd.f32 0.0, %v1400
      %v1402 = vpop.f32.mrf.mxu0
      %v1403 = vadd.f32 0.0, %v1402
      %1404 = vdwg.mxu0
      %1405 = vmatpush.bf16.msra.mxu0 0
      %1406 = vmatpush.bf16.msra.mxu0 0
      %1407 = vmatpush.bf16.msra.mxu0 0
      %1408 = vmatpush.bf16.msra.mxu0 0
      %1409 = vmatpush.bf16.msra.mxu0 0
      %1410 = vmatpush.bf16.msra.mxu0 0
      %1411 = vmatpush.bf16.msra.mxu0 %v1333
      %1412 = vmatpush.bf16.msra.mxu0 %v1329
      %1413 = vmatmul.bf16.gmra.mxu0 %v1343
      %v1414 = vpop.f32.mrf.mxu0
      %v1415 = vadd.f32 0.0, %v1414
      %v1416 = vpop.f32.mrf.mxu0
      %v1417 = vadd.f32 0.0, %v1416
      %1418 = vmatmul.bf16.gmra.mxu0 %v1346
      %v1419 = vpop.f32.mrf.mxu0
      %v1420 = vadd.f32 0.0, %v1419
      %v1421 = vpop.f32.mrf.mxu0
      %v1422 = vadd.f32 0.0, %v1421
      %1423 = vdwg.mxu0
      %v1424 = vadd.f32 %v1274, %v1358
      %v1425 = vadd.f32 %v1275, %v1377
      %v1426 = vadd.f32 %v1276, %v1396
      %v1427 = vadd.f32 %v1277, %v1415
      %v1428 = vadd.f32 %v1278, %v1360
      %v1429 = vadd.f32 %v1279, %v1379
      %v1430 = vadd.f32 %v1280, %v1398
      %v1431 = vadd.f32 %v1281, %v1417
      %v1432 = vadd.f32 %v1282, %v1363
      %v1433 = vadd.f32 %v1283, %v1382
      %v1434 = vadd.f32 %v1284, %v1401
      %v1435 = vadd.f32 %v1285, %v1420
      %v1436 = vadd.f32 %v1286, %v1365
      %v1437 = vadd.f32 %v1287, %v1384
      %v1438 = vadd.f32 %v1288, %v1403
      %v1439 = vadd.f32 %v1289, %v1422
      %s1440 = scalar_lea.vmem %s3, 80
      %v1441 = vld [vmem:[%s1440] sm:$0xf]
      %v1442 = vld [vmem:[%s1440 + $0x4] sm:$0xf]
      %v1443 = vld [vmem:[%s1440 + $0x8] sm:$0xf]
      %v1444 = vld [vmem:[%s1440 + $0xc] sm:$0xf]
      %v1449 = vunpack.c.l.b16 %v1441
      %v1450 = vunpack.c.l.b16 %v1442
      %v1451 = vunpack.c.l.b16 %v1443
      %v1452 = vunpack.c.l.b16 %v1444
      %v1453 = vpack.c.b16 %v1450, %v1449
      %v1454 = vpack.c.b16 %v1452, %v1451
      %1455 = vrot.lane.b32.xlu0 %v739, 108
      %v1456 = vpop.permute.xlu0 %1455
      %1457 = vrot.lane.b32.xlu0 %v740, 108
      %v1458 = vpop.permute.xlu0 %1457
      %1459 = vrot.lane.b32.xlu0 %v741, 108
      %v1460 = vpop.permute.xlu0 %1459
      %1461 = vrot.lane.b32.xlu0 %v742, 108
      %v1462 = vpop.permute.xlu0 %1461
      %1463 = vrot.lane.b32.xlu0 %v751, 108
      %v1464 = vpop.permute.xlu0 %1463
      %1465 = vrot.lane.b32.xlu0 %v743, 108
      %v1466 = vpop.permute.xlu0 %1465
      %1467 = vrot.lane.b32.xlu0 %v744, 108
      %v1468 = vpop.permute.xlu0 %1467
      %1469 = vrot.lane.b32.xlu0 %v745, 108
      %v1470 = vpop.permute.xlu0 %1469
      %1471 = vrot.lane.b32.xlu0 %v746, 108
      %v1472 = vpop.permute.xlu0 %1471
      %1473 = vrot.lane.b32.xlu0 %v752, 108
      %v1474 = vpop.permute.xlu0 %1473
      %vm1475 = vcmask 883712
      %v1476 = vsel %vm1475, %v1456, %v1458
      %v1477 = vsel %vm1475, %v1458, %v1460
      %v1478 = vsel %vm1475, %v1460, %v1462
      %v1479 = vsel %vm1475, %v1462, %v1464
      %v1480 = vsel %vm1475, %v1466, %v1468
      %v1481 = vsel %vm1475, %v1468, %v1470
      %v1482 = vsel %vm1475, %v1470, %v1472
      %v1483 = vsel %vm1475, %v1472, %v1474
      %v1493 = vsel %vm815, %v1453, 0
      %v1496 = vsel %vm815, %v1454, 0
      %1498 = vmatpush.bf16.msra.mxu0 0
      %1499 = vmatpush.bf16.msra.mxu0 0
      %1500 = vmatpush.bf16.msra.mxu0 0
      %1501 = vmatpush.bf16.msra.mxu0 0
      %1502 = vmatpush.bf16.msra.mxu0 0
      %1503 = vmatpush.bf16.msra.mxu0 0
      %1504 = vmatpush.bf16.msra.mxu0 %v1480
      %1505 = vmatpush.bf16.msra.mxu0 %v1476
      %1506 = vmatmul.bf16.gmra.mxu0 %v1493
      %v1507 = vpop.f32.mrf.mxu0
      %v1508 = vadd.f32 0.0, %v1507
      %v1509 = vpop.f32.mrf.mxu0
      %v1510 = vadd.f32 0.0, %v1509
      %1511 = vmatmul.bf16.gmra.mxu0 %v1496
      %v1512 = vpop.f32.mrf.mxu0
      %v1513 = vadd.f32 0.0, %v1512
      %v1514 = vpop.f32.mrf.mxu0
      %v1515 = vadd.f32 0.0, %v1514
      %1516 = vdwg.mxu0
      %1517 = vmatpush.bf16.msra.mxu0 0
      %1518 = vmatpush.bf16.msra.mxu0 0
      %1519 = vmatpush.bf16.msra.mxu0 0
      %1520 = vmatpush.bf16.msra.mxu0 0
      %1521 = vmatpush.bf16.msra.mxu0 0
      %1522 = vmatpush.bf16.msra.mxu0 0
      %1523 = vmatpush.bf16.msra.mxu0 %v1481
      %1524 = vmatpush.bf16.msra.mxu0 %v1477
      %1525 = vmatmul.bf16.gmra.mxu0 %v1493
      %v1526 = vpop.f32.mrf.mxu0
      %v1527 = vadd.f32 0.0, %v1526
      %v1528 = vpop.f32.mrf.mxu0
      %v1529 = vadd.f32 0.0, %v1528
      %1530 = vmatmul.bf16.gmra.mxu0 %v1496
      %v1531 = vpop.f32.mrf.mxu0
      %v1532 = vadd.f32 0.0, %v1531
      %v1533 = vpop.f32.mrf.mxu0
      %v1534 = vadd.f32 0.0, %v1533
      %1535 = vdwg.mxu0
      %1536 = vmatpush.bf16.msra.mxu0 0
      %1537 = vmatpush.bf16.msra.mxu0 0
      %1538 = vmatpush.bf16.msra.mxu0 0
      %1539 = vmatpush.bf16.msra.mxu0 0
      %1540 = vmatpush.bf16.msra.mxu0 0
      %1541 = vmatpush.bf16.msra.mxu0 0
      %1542 = vmatpush.bf16.msra.mxu0 %v1482
      %1543 = vmatpush.bf16.msra.mxu0 %v1478
      %1544 = vmatmul.bf16.gmra.mxu0 %v1493
      %v1545 = vpop.f32.mrf.mxu0
      %v1546 = vadd.f32 0.0, %v1545
      %v1547 = vpop.f32.mrf.mxu0
      %v1548 = vadd.f32 0.0, %v1547
      %1549 = vmatmul.bf16.gmra.mxu0 %v1496
      %v1550 = vpop.f32.mrf.mxu0
      %v1551 = vadd.f32 0.0, %v1550
      %v1552 = vpop.f32.mrf.mxu0
      %v1553 = vadd.f32 0.0, %v1552
      %1554 = vdwg.mxu0
      %1555 = vmatpush.bf16.msra.mxu0 0
      %1556 = vmatpush.bf16.msra.mxu0 0
      %1557 = vmatpush.bf16.msra.mxu0 0
      %1558 = vmatpush.bf16.msra.mxu0 0
      %1559 = vmatpush.bf16.msra.mxu0 0
      %1560 = vmatpush.bf16.msra.mxu0 0
      %1561 = vmatpush.bf16.msra.mxu0 %v1483
      %1562 = vmatpush.bf16.msra.mxu0 %v1479
      %1563 = vmatmul.bf16.gmra.mxu0 %v1493
      %v1564 = vpop.f32.mrf.mxu0
      %v1565 = vadd.f32 0.0, %v1564
      %v1566 = vpop.f32.mrf.mxu0
      %v1567 = vadd.f32 0.0, %v1566
      %1568 = vmatmul.bf16.gmra.mxu0 %v1496
      %v1569 = vpop.f32.mrf.mxu0
      %v1570 = vadd.f32 0.0, %v1569
      %v1571 = vpop.f32.mrf.mxu0
      %v1572 = vadd.f32 0.0, %v1571
      %1573 = vdwg.mxu0
      %v1574 = vadd.f32 %v1424, %v1508
      %v1575 = vadd.f32 %v1425, %v1527
      %v1576 = vadd.f32 %v1426, %v1546
      %v1577 = vadd.f32 %v1427, %v1565
      %v1578 = vadd.f32 %v1428, %v1510
      %v1579 = vadd.f32 %v1429, %v1529
      %v1580 = vadd.f32 %v1430, %v1548
      %v1581 = vadd.f32 %v1431, %v1567
      %v1582 = vadd.f32 %v1432, %v1513
      %v1583 = vadd.f32 %v1433, %v1532
      %v1584 = vadd.f32 %v1434, %v1551
      %v1585 = vadd.f32 %v1435, %v1570
      %v1586 = vadd.f32 %v1436, %v1515
      %v1587 = vadd.f32 %v1437, %v1534
      %v1588 = vadd.f32 %v1438, %v1553
      %v1589 = vadd.f32 %v1439, %v1572
      %s1590 = scalar_lea.vmem %s3, 96
      %v1591 = vld [vmem:[%s1590] sm:$0xf]
      %v1592 = vld [vmem:[%s1590 + $0x4] sm:$0xf]
      %v1593 = vld [vmem:[%s1590 + $0x8] sm:$0xf]
      %v1594 = vld [vmem:[%s1590 + $0xc] sm:$0xf]
      %v1599 = vunpack.c.l.b16 %v1591
      %v1600 = vunpack.c.l.b16 %v1592
      %v1601 = vunpack.c.l.b16 %v1593
      %v1602 = vunpack.c.l.b16 %v1594
      %v1603 = vpack.c.b16 %v1600, %v1599
      %v1604 = vpack.c.b16 %v1602, %v1601
      %1605 = vrot.lane.b32.xlu0 %v739, 92
      %v1606 = vpop.permute.xlu0 %1605
      %1607 = vrot.lane.b32.xlu0 %v740, 92
      %v1608 = vpop.permute.xlu0 %1607
      %1609 = vrot.lane.b32.xlu0 %v741, 92
      %v1610 = vpop.permute.xlu0 %1609
      %1611 = vrot.lane.b32.xlu0 %v742, 92
      %v1612 = vpop.permute.xlu0 %1611
      %1613 = vrot.lane.b32.xlu0 %v751, 92
      %v1614 = vpop.permute.xlu0 %1613
      %1615 = vrot.lane.b32.xlu0 %v743, 92
      %v1616 = vpop.permute.xlu0 %1615
      %1617 = vrot.lane.b32.xlu0 %v744, 92
      %v1618 = vpop.permute.xlu0 %1617
      %1619 = vrot.lane.b32.xlu0 %v745, 92
      %v1620 = vpop.permute.xlu0 %1619
      %1621 = vrot.lane.b32.xlu0 %v746, 92
      %v1622 = vpop.permute.xlu0 %1621
      %1623 = vrot.lane.b32.xlu0 %v752, 92
      %v1624 = vpop.permute.xlu0 %1623
      %vm1625 = vcmask 752640
      %v1626 = vsel %vm1625, %v1606, %v1608
      %v1627 = vsel %vm1625, %v1608, %v1610
      %v1628 = vsel %vm1625, %v1610, %v1612
      %v1629 = vsel %vm1625, %v1612, %v1614
      %v1630 = vsel %vm1625, %v1616, %v1618
      %v1631 = vsel %vm1625, %v1618, %v1620
      %v1632 = vsel %vm1625, %v1620, %v1622
      %v1633 = vsel %vm1625, %v1622, %v1624
      %v1643 = vsel %vm815, %v1603, 0
      %v1646 = vsel %vm815, %v1604, 0
      %1648 = vmatpush.bf16.msra.mxu0 0
      %1649 = vmatpush.bf16.msra.mxu0 0
      %1650 = vmatpush.bf16.msra.mxu0 0
      %1651 = vmatpush.bf16.msra.mxu0 0
      %1652 = vmatpush.bf16.msra.mxu0 0
      %1653 = vmatpush.bf16.msra.mxu0 0
      %1654 = vmatpush.bf16.msra.mxu0 %v1630
      %1655 = vmatpush.bf16.msra.mxu0 %v1626
      %1656 = vmatmul.bf16.gmra.mxu0 %v1643
      %v1657 = vpop.f32.mrf.mxu0
      %v1658 = vadd.f32 0.0, %v1657
      %v1659 = vpop.f32.mrf.mxu0
      %v1660 = vadd.f32 0.0, %v1659
      %1661 = vmatmul.bf16.gmra.mxu0 %v1646
      %v1662 = vpop.f32.mrf.mxu0
      %v1663 = vadd.f32 0.0, %v1662
      %v1664 = vpop.f32.mrf.mxu0
      %v1665 = vadd.f32 0.0, %v1664
      %1666 = vdwg.mxu0
      %1667 = vmatpush.bf16.msra.mxu0 0
      %1668 = vmatpush.bf16.msra.mxu0 0
      %1669 = vmatpush.bf16.msra.mxu0 0
      %1670 = vmatpush.bf16.msra.mxu0 0
      %1671 = vmatpush.bf16.msra.mxu0 0
      %1672 = vmatpush.bf16.msra.mxu0 0
      %1673 = vmatpush.bf16.msra.mxu0 %v1631
      %1674 = vmatpush.bf16.msra.mxu0 %v1627
      %1675 = vmatmul.bf16.gmra.mxu0 %v1643
      %v1676 = vpop.f32.mrf.mxu0
      %v1677 = vadd.f32 0.0, %v1676
      %v1678 = vpop.f32.mrf.mxu0
      %v1679 = vadd.f32 0.0, %v1678
      %1680 = vmatmul.bf16.gmra.mxu0 %v1646
      %v1681 = vpop.f32.mrf.mxu0
      %v1682 = vadd.f32 0.0, %v1681
      %v1683 = vpop.f32.mrf.mxu0
      %v1684 = vadd.f32 0.0, %v1683
      %1685 = vdwg.mxu0
      %1686 = vmatpush.bf16.msra.mxu0 0
      %1687 = vmatpush.bf16.msra.mxu0 0
      %1688 = vmatpush.bf16.msra.mxu0 0
      %1689 = vmatpush.bf16.msra.mxu0 0
      %1690 = vmatpush.bf16.msra.mxu0 0
      %1691 = vmatpush.bf16.msra.mxu0 0
      %1692 = vmatpush.bf16.msra.mxu0 %v1632
      %1693 = vmatpush.bf16.msra.mxu0 %v1628
      %1694 = vmatmul.bf16.gmra.mxu0 %v1643
      %v1695 = vpop.f32.mrf.mxu0
      %v1696 = vadd.f32 0.0, %v1695
      %v1697 = vpop.f32.mrf.mxu0
      %v1698 = vadd.f32 0.0, %v1697
      %1699 = vmatmul.bf16.gmra.mxu0 %v1646
      %v1700 = vpop.f32.mrf.mxu0
      %v1701 = vadd.f32 0.0, %v1700
      %v1702 = vpop.f32.mrf.mxu0
      %v1703 = vadd.f32 0.0, %v1702
      %1704 = vdwg.mxu0
      %1705 = vmatpush.bf16.msra.mxu0 0
      %1706 = vmatpush.bf16.msra.mxu0 0
      %1707 = vmatpush.bf16.msra.mxu0 0
      %1708 = vmatpush.bf16.msra.mxu0 0
      %1709 = vmatpush.bf16.msra.mxu0 0
      %1710 = vmatpush.bf16.msra.mxu0 0
      %1711 = vmatpush.bf16.msra.mxu0 %v1633
      %1712 = vmatpush.bf16.msra.mxu0 %v1629
      %1713 = vmatmul.bf16.gmra.mxu0 %v1643
      %v1714 = vpop.f32.mrf.mxu0
      %v1715 = vadd.f32 0.0, %v1714
      %v1716 = vpop.f32.mrf.mxu0
      %v1717 = vadd.f32 0.0, %v1716
      %1718 = vmatmul.bf16.gmra.mxu0 %v1646
      %v1719 = vpop.f32.mrf.mxu0
      %v1720 = vadd.f32 0.0, %v1719
      %v1721 = vpop.f32.mrf.mxu0
      %v1722 = vadd.f32 0.0, %v1721
      %1723 = vdwg.mxu0
      %v1724 = vadd.f32 %v1574, %v1658
      %v1725 = vadd.f32 %v1575, %v1677
      %v1726 = vadd.f32 %v1576, %v1696
      %v1727 = vadd.f32 %v1577, %v1715
      %v1728 = vadd.f32 %v1578, %v1660
      %v1729 = vadd.f32 %v1579, %v1679
      %v1730 = vadd.f32 %v1580, %v1698
      %v1731 = vadd.f32 %v1581, %v1717
      %v1732 = vadd.f32 %v1582, %v1663
      %v1733 = vadd.f32 %v1583, %v1682
      %v1734 = vadd.f32 %v1584, %v1701
      %v1735 = vadd.f32 %v1585, %v1720
      %v1736 = vadd.f32 %v1586, %v1665
      %v1737 = vadd.f32 %v1587, %v1684
      %v1738 = vadd.f32 %v1588, %v1703
      %v1739 = vadd.f32 %v1589, %v1722
      %s1740 = scalar_lea.vmem %s3, 112
      %v1741 = vld [vmem:[%s1740] sm:$0xf]
      %v1742 = vld [vmem:[%s1740 + $0x4] sm:$0xf]
      %v1743 = vld [vmem:[%s1740 + $0x8] sm:$0xf]
      %v1744 = vld [vmem:[%s1740 + $0xc] sm:$0xf]
      %v1749 = vunpack.c.l.b16 %v1741
      %v1750 = vunpack.c.l.b16 %v1742
      %v1751 = vunpack.c.l.b16 %v1743
      %v1752 = vunpack.c.l.b16 %v1744
      %v1753 = vpack.c.b16 %v1750, %v1749
      %v1754 = vpack.c.b16 %v1752, %v1751
      %1755 = vrot.lane.b32.xlu0 %v739, 91
      %v1756 = vpop.permute.xlu0 %1755
      %1757 = vrot.lane.b32.xlu0 %v740, 91
      %v1758 = vpop.permute.xlu0 %1757
      %1759 = vrot.lane.b32.xlu0 %v741, 91
      %v1760 = vpop.permute.xlu0 %1759
      %1761 = vrot.lane.b32.xlu0 %v742, 91
      %v1762 = vpop.permute.xlu0 %1761
      %1763 = vrot.lane.b32.xlu0 %v751, 91
      %v1764 = vpop.permute.xlu0 %1763
      %1765 = vrot.lane.b32.xlu0 %v743, 91
      %v1766 = vpop.permute.xlu0 %1765
      %1767 = vrot.lane.b32.xlu0 %v744, 91
      %v1768 = vpop.permute.xlu0 %1767
      %1769 = vrot.lane.b32.xlu0 %v745, 91
      %v1770 = vpop.permute.xlu0 %1769
      %1771 = vrot.lane.b32.xlu0 %v746, 91
      %v1772 = vpop.permute.xlu0 %1771
      %1773 = vrot.lane.b32.xlu0 %v752, 91
      %v1774 = vpop.permute.xlu0 %1773
      %vm1775 = vcmask 744448
      %v1776 = vsel %vm1775, %v1756, %v1758
      %v1777 = vsel %vm1775, %v1758, %v1760
      %v1778 = vsel %vm1775, %v1760, %v1762
      %v1779 = vsel %vm1775, %v1762, %v1764
      %v1780 = vsel %vm1775, %v1766, %v1768
      %v1781 = vsel %vm1775, %v1768, %v1770
      %v1782 = vsel %vm1775, %v1770, %v1772
      %v1783 = vsel %vm1775, %v1772, %v1774
      %v1793 = vsel %vm815, %v1753, 0
      %v1796 = vsel %vm815, %v1754, 0
      %1798 = vmatpush.bf16.msra.mxu0 0
      %1799 = vmatpush.bf16.msra.mxu0 0
      %1800 = vmatpush.bf16.msra.mxu0 0
      %1801 = vmatpush.bf16.msra.mxu0 0
      %1802 = vmatpush.bf16.msra.mxu0 0
      %1803 = vmatpush.bf16.msra.mxu0 0
      %1804 = vmatpush.bf16.msra.mxu0 %v1780
      %1805 = vmatpush.bf16.msra.mxu0 %v1776
      %1806 = vmatmul.bf16.gmra.mxu0 %v1793
      %v1807 = vpop.f32.mrf.mxu0
      %v1808 = vadd.f32 0.0, %v1807
      %v1809 = vpop.f32.mrf.mxu0
      %v1810 = vadd.f32 0.0, %v1809
      %1811 = vmatmul.bf16.gmra.mxu0 %v1796
      %v1812 = vpop.f32.mrf.mxu0
      %v1813 = vadd.f32 0.0, %v1812
      %v1814 = vpop.f32.mrf.mxu0
      %v1815 = vadd.f32 0.0, %v1814
      %1816 = vdwg.mxu0
      %1817 = vmatpush.bf16.msra.mxu0 0
      %1818 = vmatpush.bf16.msra.mxu0 0
      %1819 = vmatpush.bf16.msra.mxu0 0
      %1820 = vmatpush.bf16.msra.mxu0 0
      %1821 = vmatpush.bf16.msra.mxu0 0
      %1822 = vmatpush.bf16.msra.mxu0 0
      %1823 = vmatpush.bf16.msra.mxu0 %v1781
      %1824 = vmatpush.bf16.msra.mxu0 %v1777
      %1825 = vmatmul.bf16.gmra.mxu0 %v1793
      %v1826 = vpop.f32.mrf.mxu0
      %v1827 = vadd.f32 0.0, %v1826
      %v1828 = vpop.f32.mrf.mxu0
      %v1829 = vadd.f32 0.0, %v1828
      %1830 = vmatmul.bf16.gmra.mxu0 %v1796
      %v1831 = vpop.f32.mrf.mxu0
      %v1832 = vadd.f32 0.0, %v1831
      %v1833 = vpop.f32.mrf.mxu0
      %v1834 = vadd.f32 0.0, %v1833
      %1835 = vdwg.mxu0
      %1836 = vmatpush.bf16.msra.mxu0 0
      %1837 = vmatpush.bf16.msra.mxu0 0
      %1838 = vmatpush.bf16.msra.mxu0 0
      %1839 = vmatpush.bf16.msra.mxu0 0
      %1840 = vmatpush.bf16.msra.mxu0 0
      %1841 = vmatpush.bf16.msra.mxu0 0
      %1842 = vmatpush.bf16.msra.mxu0 %v1782
      %1843 = vmatpush.bf16.msra.mxu0 %v1778
      %1844 = vmatmul.bf16.gmra.mxu0 %v1793
      %v1845 = vpop.f32.mrf.mxu0
      %v1846 = vadd.f32 0.0, %v1845
      %v1847 = vpop.f32.mrf.mxu0
      %v1848 = vadd.f32 0.0, %v1847
      %1849 = vmatmul.bf16.gmra.mxu0 %v1796
      %v1850 = vpop.f32.mrf.mxu0
      %v1851 = vadd.f32 0.0, %v1850
      %v1852 = vpop.f32.mrf.mxu0
      %v1853 = vadd.f32 0.0, %v1852
      %1854 = vdwg.mxu0
      %1855 = vmatpush.bf16.msra.mxu0 0
      %1856 = vmatpush.bf16.msra.mxu0 0
      %1857 = vmatpush.bf16.msra.mxu0 0
      %1858 = vmatpush.bf16.msra.mxu0 0
      %1859 = vmatpush.bf16.msra.mxu0 0
      %1860 = vmatpush.bf16.msra.mxu0 0
      %1861 = vmatpush.bf16.msra.mxu0 %v1783
      %1862 = vmatpush.bf16.msra.mxu0 %v1779
      %1863 = vmatmul.bf16.gmra.mxu0 %v1793
      %v1864 = vpop.f32.mrf.mxu0
      %v1865 = vadd.f32 0.0, %v1864
      %v1866 = vpop.f32.mrf.mxu0
      %v1867 = vadd.f32 0.0, %v1866
      %1868 = vmatmul.bf16.gmra.mxu0 %v1796
      %v1869 = vpop.f32.mrf.mxu0
      %v1870 = vadd.f32 0.0, %v1869
      %v1871 = vpop.f32.mrf.mxu0
      %v1872 = vadd.f32 0.0, %v1871
      %1873 = vdwg.mxu0
      %v1874 = vadd.f32 %v1724, %v1808
      %v1875 = vadd.f32 %v1725, %v1827
      %v1876 = vadd.f32 %v1726, %v1846
      %v1877 = vadd.f32 %v1727, %v1865
      %v1878 = vadd.f32 %v1728, %v1810
      %v1879 = vadd.f32 %v1729, %v1829
      %v1880 = vadd.f32 %v1730, %v1848
      %v1881 = vadd.f32 %v1731, %v1867
      %v1882 = vadd.f32 %v1732, %v1813
      %v1883 = vadd.f32 %v1733, %v1832
      %v1884 = vadd.f32 %v1734, %v1851
      %v1885 = vadd.f32 %v1735, %v1870
      %v1886 = vadd.f32 %v1736, %v1815
      %v1887 = vadd.f32 %v1737, %v1834
      %v1888 = vadd.f32 %v1738, %v1853
      %v1889 = vadd.f32 %v1739, %v1872
      %s1890 = scalar_lea.vmem %s3, 128
      %v1891 = vld [vmem:[%s1890] sm:$0xf]
      %v1892 = vld [vmem:[%s1890 + $0x4] sm:$0xf]
      %v1893 = vld [vmem:[%s1890 + $0x8] sm:$0xf]
      %v1894 = vld [vmem:[%s1890 + $0xc] sm:$0xf]
      %v1899 = vunpack.c.l.b16 %v1891
      %v1900 = vunpack.c.l.b16 %v1892
      %v1901 = vunpack.c.l.b16 %v1893
      %v1902 = vunpack.c.l.b16 %v1894
      %v1903 = vpack.c.b16 %v1900, %v1899
      %v1904 = vpack.c.b16 %v1902, %v1901
      %1905 = vrot.lane.b32.xlu0 %v739, 90
      %v1906 = vpop.permute.xlu0 %1905
      %1907 = vrot.lane.b32.xlu0 %v740, 90
      %v1908 = vpop.permute.xlu0 %1907
      %1909 = vrot.lane.b32.xlu0 %v741, 90
      %v1910 = vpop.permute.xlu0 %1909
      %1911 = vrot.lane.b32.xlu0 %v742, 90
      %v1912 = vpop.permute.xlu0 %1911
      %1913 = vrot.lane.b32.xlu0 %v751, 90
      %v1914 = vpop.permute.xlu0 %1913
      %1915 = vrot.lane.b32.xlu0 %v743, 90
      %v1916 = vpop.permute.xlu0 %1915
      %1917 = vrot.lane.b32.xlu0 %v744, 90
      %v1918 = vpop.permute.xlu0 %1917
      %1919 = vrot.lane.b32.xlu0 %v745, 90
      %v1920 = vpop.permute.xlu0 %1919
      %1921 = vrot.lane.b32.xlu0 %v746, 90
      %v1922 = vpop.permute.xlu0 %1921
      %1923 = vrot.lane.b32.xlu0 %v752, 90
      %v1924 = vpop.permute.xlu0 %1923
      %vm1925 = vcmask 736256
      %v1926 = vsel %vm1925, %v1906, %v1908
      %v1927 = vsel %vm1925, %v1908, %v1910
      %v1928 = vsel %vm1925, %v1910, %v1912
      %v1929 = vsel %vm1925, %v1912, %v1914
      %v1930 = vsel %vm1925, %v1916, %v1918
      %v1931 = vsel %vm1925, %v1918, %v1920
      %v1932 = vsel %vm1925, %v1920, %v1922
      %v1933 = vsel %vm1925, %v1922, %v1924
      %v1943 = vsel %vm815, %v1903, 0
      %v1946 = vsel %vm815, %v1904, 0
      %1948 = vmatpush.bf16.msra.mxu0 0
      %1949 = vmatpush.bf16.msra.mxu0 0
      %1950 = vmatpush.bf16.msra.mxu0 0
      %1951 = vmatpush.bf16.msra.mxu0 0
      %1952 = vmatpush.bf16.msra.mxu0 0
      %1953 = vmatpush.bf16.msra.mxu0 0
      %1954 = vmatpush.bf16.msra.mxu0 %v1930
      %1955 = vmatpush.bf16.msra.mxu0 %v1926
      %1956 = vmatmul.bf16.gmra.mxu0 %v1943
      %v1957 = vpop.f32.mrf.mxu0
      %v1958 = vadd.f32 0.0, %v1957
      %v1959 = vpop.f32.mrf.mxu0
      %v1960 = vadd.f32 0.0, %v1959
      %1961 = vmatmul.bf16.gmra.mxu0 %v1946
      %v1962 = vpop.f32.mrf.mxu0
      %v1963 = vadd.f32 0.0, %v1962
      %v1964 = vpop.f32.mrf.mxu0
      %v1965 = vadd.f32 0.0, %v1964
      %1966 = vdwg.mxu0
      %1967 = vmatpush.bf16.msra.mxu0 0
      %1968 = vmatpush.bf16.msra.mxu0 0
      %1969 = vmatpush.bf16.msra.mxu0 0
      %1970 = vmatpush.bf16.msra.mxu0 0
      %1971 = vmatpush.bf16.msra.mxu0 0
      %1972 = vmatpush.bf16.msra.mxu0 0
      %1973 = vmatpush.bf16.msra.mxu0 %v1931
      %1974 = vmatpush.bf16.msra.mxu0 %v1927
      %1975 = vmatmul.bf16.gmra.mxu0 %v1943
      %v1976 = vpop.f32.mrf.mxu0
      %v1977 = vadd.f32 0.0, %v1976
      %v1978 = vpop.f32.mrf.mxu0
      %v1979 = vadd.f32 0.0, %v1978
      %1980 = vmatmul.bf16.gmra.mxu0 %v1946
      %v1981 = vpop.f32.mrf.mxu0
      %v1982 = vadd.f32 0.0, %v1981
      %v1983 = vpop.f32.mrf.mxu0
      %v1984 = vadd.f32 0.0, %v1983
      %1985 = vdwg.mxu0
      %1986 = vmatpush.bf16.msra.mxu0 0
      %1987 = vmatpush.bf16.msra.mxu0 0
      %1988 = vmatpush.bf16.msra.mxu0 0
      %1989 = vmatpush.bf16.msra.mxu0 0
      %1990 = vmatpush.bf16.msra.mxu0 0
      %1991 = vmatpush.bf16.msra.mxu0 0
      %1992 = vmatpush.bf16.msra.mxu0 %v1932
      %1993 = vmatpush.bf16.msra.mxu0 %v1928
      %1994 = vmatmul.bf16.gmra.mxu0 %v1943
      %v1995 = vpop.f32.mrf.mxu0
      %v1996 = vadd.f32 0.0, %v1995
      %v1997 = vpop.f32.mrf.mxu0
      %v1998 = vadd.f32 0.0, %v1997
      %1999 = vmatmul.bf16.gmra.mxu0 %v1946
      %v2000 = vpop.f32.mrf.mxu0
      %v2001 = vadd.f32 0.0, %v2000
      %v2002 = vpop.f32.mrf.mxu0
      %v2003 = vadd.f32 0.0, %v2002
      %2004 = vdwg.mxu0
      %2005 = vmatpush.bf16.msra.mxu0 0
      %2006 = vmatpush.bf16.msra.mxu0 0
      %2007 = vmatpush.bf16.msra.mxu0 0
      %2008 = vmatpush.bf16.msra.mxu0 0
      %2009 = vmatpush.bf16.msra.mxu0 0
      %2010 = vmatpush.bf16.msra.mxu0 0
      %2011 = vmatpush.bf16.msra.mxu0 %v1933
      %2012 = vmatpush.bf16.msra.mxu0 %v1929
      %2013 = vmatmul.bf16.gmra.mxu0 %v1943
      %v2014 = vpop.f32.mrf.mxu0
      %v2015 = vadd.f32 0.0, %v2014
      %v2016 = vpop.f32.mrf.mxu0
      %v2017 = vadd.f32 0.0, %v2016
      %2018 = vmatmul.bf16.gmra.mxu0 %v1946
      %v2019 = vpop.f32.mrf.mxu0
      %v2020 = vadd.f32 0.0, %v2019
      %v2021 = vpop.f32.mrf.mxu0
      %v2022 = vadd.f32 0.0, %v2021
      %2023 = vdwg.mxu0
      %v2024 = vadd.f32 %v1874, %v1958
      %v2025 = vadd.f32 %v1875, %v1977
      %v2026 = vadd.f32 %v1876, %v1996
      %v2027 = vadd.f32 %v1877, %v2015
      %v2028 = vadd.f32 %v1878, %v1960
      %v2029 = vadd.f32 %v1879, %v1979
      %v2030 = vadd.f32 %v1880, %v1998
      %v2031 = vadd.f32 %v1881, %v2017
      %v2032 = vadd.f32 %v1882, %v1963
      %v2033 = vadd.f32 %v1883, %v1982
      %v2034 = vadd.f32 %v1884, %v2001
      %v2035 = vadd.f32 %v1885, %v2020
      %v2036 = vadd.f32 %v1886, %v1965
      %v2037 = vadd.f32 %v1887, %v1984
      %v2038 = vadd.f32 %v1888, %v2003
      %v2039 = vadd.f32 %v1889, %v2022
      %v2040 = vld [vmem:[%s4] sm:$0xff]
      %v2041 = vld [vmem:[%s4 + $0x8] sm:$0xff]
      %v2042 = vld [vmem:[%s4 + $0x10] sm:$0xff]
      %v2043 = vld [vmem:[%s4 + $0x18] sm:$0xff]
      %2045 = vset.pattern.permute.xlu0 0
      %2046 = vperm.xlu0 %2045, %v2040
      %v2047 = vpop.permute.xlu0 %2046
      %2050 = vset.pattern.permute.xlu0 0
      %2051 = vperm.xlu0 %2050, %v2041
      %v2052 = vpop.permute.xlu0 %2051
      %2055 = vset.pattern.permute.xlu0 0
      %2056 = vperm.xlu0 %2055, %v2042
      %v2057 = vpop.permute.xlu0 %2056
      %2060 = vset.pattern.permute.xlu0 0
      %2061 = vperm.xlu0 %2060, %v2043
      %v2062 = vpop.permute.xlu0 %2061
      %v2064 = vadd.f32 %v2024, %v2047
      %v2065 = vadd.f32 %v2025, %v2047
      %v2066 = vadd.f32 %v2026, %v2047
      %v2067 = vadd.f32 %v2027, %v2047
      %v2068 = vadd.f32 %v2028, %v2052
      %v2069 = vadd.f32 %v2029, %v2052
      %v2070 = vadd.f32 %v2030, %v2052
      %v2071 = vadd.f32 %v2031, %v2052
      %v2072 = vadd.f32 %v2032, %v2057
      %v2073 = vadd.f32 %v2033, %v2057
      %v2074 = vadd.f32 %v2034, %v2057
      %v2075 = vadd.f32 %v2035, %v2057
      %v2076 = vadd.f32 %v2036, %v2062
      %v2077 = vadd.f32 %v2037, %v2062
      %v2078 = vadd.f32 %v2038, %v2062
      %v2079 = vadd.f32 %v2039, %v2062
      %v2080 = vmul.f32 %v2064, %v2064
      %v2081 = vmul.f32 %v2065, %v2065
      %v2082 = vmul.f32 %v2066, %v2066
      %v2083 = vmul.f32 %v2067, %v2067
      %v2084 = vmul.f32 %v2068, %v2068
      %v2085 = vmul.f32 %v2069, %v2069
      %v2086 = vmul.f32 %v2070, %v2070
      %v2087 = vmul.f32 %v2071, %v2071
      %v2088 = vmul.f32 %v2072, %v2072
      %v2089 = vmul.f32 %v2073, %v2073
      %v2090 = vmul.f32 %v2074, %v2074
      %v2091 = vmul.f32 %v2075, %v2075
      %v2092 = vmul.f32 %v2076, %v2076
      %v2093 = vmul.f32 %v2077, %v2077
      %v2094 = vmul.f32 %v2078, %v2078
      %v2095 = vmul.f32 %v2079, %v2079
      %v2096 = vpack.c.bf16 %v2084, %v2080
      %v2097 = vpack.c.bf16 %v2085, %v2081
      %v2098 = vpack.c.bf16 %v2086, %v2082
      %v2099 = vpack.c.bf16 %v2087, %v2083
      %v2100 = vpack.c.bf16 %v2092, %v2088
      %v2101 = vpack.c.bf16 %v2093, %v2089
      %v2102 = vpack.c.bf16 %v2094, %v2090
      %v2103 = vpack.c.bf16 %v2095, %v2091
      %v2104 = vld [vmem:[%s5] sm:$0xf]
      %v2105 = vld [vmem:[%s5 + $0x4] sm:$0xf]
      %v2106 = vld [vmem:[%s5 + $0x8] sm:$0xf]
      %v2107 = vld [vmem:[%s5 + $0xc] sm:$0xf]
      %v2112 = vunpack.c.l.b16 %v2104
      %v2113 = vunpack.c.l.b16 %v2105
      %v2114 = vunpack.c.l.b16 %v2106
      %v2115 = vunpack.c.l.b16 %v2107
      %v2116 = vpack.c.b16 %v2113, %v2112
      %v2117 = vpack.c.b16 %v2115, %v2114
      %v2119 = vsel %vm815, %v2116, 0
      %v2122 = vsel %vm815, %v2117, 0
      %2124 = vmatpush.bf16.msra.mxu0 0
      %2125 = vmatpush.bf16.msra.mxu0 0
      %2126 = vmatpush.bf16.msra.mxu0 0
      %2127 = vmatpush.bf16.msra.mxu0 0
      %2128 = vmatpush.bf16.msra.mxu0 0
      %2129 = vmatpush.bf16.msra.mxu0 0
      %2130 = vmatpush.bf16.msra.mxu0 %v2100
      %2131 = vmatpush.bf16.msra.mxu0 %v2096
      %2132 = vmatmul.bf16.gmra.mxu0 %v2119
      %v2133 = vpop.f32.mrf.mxu0
      %v2134 = vadd.f32 0.0, %v2133
      %v2135 = vpop.f32.mrf.mxu0
      %v2136 = vadd.f32 0.0, %v2135
      %2137 = vmatmul.bf16.gmra.mxu0 %v2122
      %v2138 = vpop.f32.mrf.mxu0
      %v2139 = vadd.f32 0.0, %v2138
      %v2140 = vpop.f32.mrf.mxu0
      %v2141 = vadd.f32 0.0, %v2140
      %2142 = vdwg.mxu0
      %2143 = vmatpush.bf16.msra.mxu0 0
      %2144 = vmatpush.bf16.msra.mxu0 0
      %2145 = vmatpush.bf16.msra.mxu0 0
      %2146 = vmatpush.bf16.msra.mxu0 0
      %2147 = vmatpush.bf16.msra.mxu0 0
      %2148 = vmatpush.bf16.msra.mxu0 0
      %2149 = vmatpush.bf16.msra.mxu0 %v2101
      %2150 = vmatpush.bf16.msra.mxu0 %v2097
      %2151 = vmatmul.bf16.gmra.mxu0 %v2119
      %v2152 = vpop.f32.mrf.mxu0
      %v2153 = vadd.f32 0.0, %v2152
      %v2154 = vpop.f32.mrf.mxu0
      %v2155 = vadd.f32 0.0, %v2154
      %2156 = vmatmul.bf16.gmra.mxu0 %v2122
      %v2157 = vpop.f32.mrf.mxu0
      %v2158 = vadd.f32 0.0, %v2157
      %v2159 = vpop.f32.mrf.mxu0
      %v2160 = vadd.f32 0.0, %v2159
      %2161 = vdwg.mxu0
      %2162 = vmatpush.bf16.msra.mxu0 0
      %2163 = vmatpush.bf16.msra.mxu0 0
      %2164 = vmatpush.bf16.msra.mxu0 0
      %2165 = vmatpush.bf16.msra.mxu0 0
      %2166 = vmatpush.bf16.msra.mxu0 0
      %2167 = vmatpush.bf16.msra.mxu0 0
      %2168 = vmatpush.bf16.msra.mxu0 %v2102
      %2169 = vmatpush.bf16.msra.mxu0 %v2098
      %2170 = vmatmul.bf16.gmra.mxu0 %v2119
      %v2171 = vpop.f32.mrf.mxu0
      %v2172 = vadd.f32 0.0, %v2171
      %v2173 = vpop.f32.mrf.mxu0
      %v2174 = vadd.f32 0.0, %v2173
      %2175 = vmatmul.bf16.gmra.mxu0 %v2122
      %v2176 = vpop.f32.mrf.mxu0
      %v2177 = vadd.f32 0.0, %v2176
      %v2178 = vpop.f32.mrf.mxu0
      %v2179 = vadd.f32 0.0, %v2178
      %2180 = vdwg.mxu0
      %2181 = vmatpush.bf16.msra.mxu0 0
      %2182 = vmatpush.bf16.msra.mxu0 0
      %2183 = vmatpush.bf16.msra.mxu0 0
      %2184 = vmatpush.bf16.msra.mxu0 0
      %2185 = vmatpush.bf16.msra.mxu0 0
      %2186 = vmatpush.bf16.msra.mxu0 0
      %2187 = vmatpush.bf16.msra.mxu0 %v2103
      %2188 = vmatpush.bf16.msra.mxu0 %v2099
      %2189 = vmatmul.bf16.gmra.mxu0 %v2119
      %v2190 = vpop.f32.mrf.mxu0
      %v2191 = vadd.f32 0.0, %v2190
      %v2192 = vpop.f32.mrf.mxu0
      %v2193 = vadd.f32 0.0, %v2192
      %2194 = vmatmul.bf16.gmra.mxu0 %v2122
      %v2195 = vpop.f32.mrf.mxu0
      %v2196 = vadd.f32 0.0, %v2195
      %v2197 = vpop.f32.mrf.mxu0
      %v2198 = vadd.f32 0.0, %v2197
      %2199 = vdwg.mxu0
      %v2200 = vmul.f32 %v2134, 2e-05
      %v2201 = vmul.f32 %v2153, 2e-05
      %v2202 = vmul.f32 %v2172, 2e-05
      %v2203 = vmul.f32 %v2191, 2e-05
      %v2204 = vmul.f32 %v2136, 2e-05
      %v2205 = vmul.f32 %v2155, 2e-05
      %v2206 = vmul.f32 %v2174, 2e-05
      %v2207 = vmul.f32 %v2193, 2e-05
      %v2208 = vmul.f32 %v2139, 2e-05
      %v2209 = vmul.f32 %v2158, 2e-05
      %v2210 = vmul.f32 %v2177, 2e-05
      %v2211 = vmul.f32 %v2196, 2e-05
      %v2212 = vmul.f32 %v2141, 2e-05
      %v2213 = vmul.f32 %v2160, 2e-05
      %v2214 = vmul.f32 %v2179, 2e-05
      %v2215 = vmul.f32 %v2198, 2e-05
      %v2216 = vadd.f32 %v2200, 1.0
      %v2217 = vadd.f32 %v2201, 1.0
      %v2218 = vadd.f32 %v2202, 1.0
      %v2219 = vadd.f32 %v2203, 1.0
      %v2220 = vadd.f32 %v2204, 1.0
      %v2221 = vadd.f32 %v2205, 1.0
      %v2222 = vadd.f32 %v2206, 1.0
      %v2223 = vadd.f32 %v2207, 1.0
      %v2224 = vadd.f32 %v2208, 1.0
      %v2225 = vadd.f32 %v2209, 1.0
      %v2226 = vadd.f32 %v2210, 1.0
      %v2227 = vadd.f32 %v2211, 1.0
      %v2228 = vadd.f32 %v2212, 1.0
      %v2229 = vadd.f32 %v2213, 1.0
      %v2230 = vadd.f32 %v2214, 1.0
      %v2231 = vadd.f32 %v2215, 1.0
      %v2232 = vlog2.pop %v2216
      %v2233 = vmul.f32 %v2232, 0.6931472
      %v2234 = vlog2.pop %v2217
      %v2235 = vmul.f32 %v2234, 0.6931472
      %v2236 = vlog2.pop %v2218
      %v2237 = vmul.f32 %v2236, 0.6931472
      %v2238 = vlog2.pop %v2219
      %v2239 = vmul.f32 %v2238, 0.6931472
      %v2240 = vlog2.pop %v2220
      %v2241 = vmul.f32 %v2240, 0.6931472
      %v2242 = vlog2.pop %v2221
      %v2243 = vmul.f32 %v2242, 0.6931472
      %v2244 = vlog2.pop %v2222
      %v2245 = vmul.f32 %v2244, 0.6931472
      %v2246 = vlog2.pop %v2223
      %v2247 = vmul.f32 %v2246, 0.6931472
      %v2248 = vlog2.pop %v2224
      %v2249 = vmul.f32 %v2248, 0.6931472
      %v2250 = vlog2.pop %v2225
      %v2251 = vmul.f32 %v2250, 0.6931472
      %v2252 = vlog2.pop %v2226
      %v2253 = vmul.f32 %v2252, 0.6931472
      %v2254 = vlog2.pop %v2227
      %v2255 = vmul.f32 %v2254, 0.6931472
      %v2256 = vlog2.pop %v2228
      %v2257 = vmul.f32 %v2256, 0.6931472
      %v2258 = vlog2.pop %v2229
      %v2259 = vmul.f32 %v2258, 0.6931472
      %v2260 = vlog2.pop %v2230
      %v2261 = vmul.f32 %v2260, 0.6931472
      %v2262 = vlog2.pop %v2231
      %v2263 = vmul.f32 %v2262, 0.6931472
      %v2264 = vmul.f32 %v2233, -0.75
      %v2265 = vmul.f32 %v2235, -0.75
      %v2266 = vmul.f32 %v2237, -0.75
      %v2267 = vmul.f32 %v2239, -0.75
      %v2268 = vmul.f32 %v2241, -0.75
      %v2269 = vmul.f32 %v2243, -0.75
      %v2270 = vmul.f32 %v2245, -0.75
      %v2271 = vmul.f32 %v2247, -0.75
      %v2272 = vmul.f32 %v2249, -0.75
      %v2273 = vmul.f32 %v2251, -0.75
      %v2274 = vmul.f32 %v2253, -0.75
      %v2275 = vmul.f32 %v2255, -0.75
      %v2276 = vmul.f32 %v2257, -0.75
      %v2277 = vmul.f32 %v2259, -0.75
      %v2278 = vmul.f32 %v2261, -0.75
      %v2279 = vmul.f32 %v2263, -0.75
      %v2280 = vmul.f32 %v2264, 1.442695
      %v2281 = vpow.pop %v2280
      %v2282 = vmul.f32 %v2265, 1.442695
      %v2283 = vpow.pop %v2282
      %v2284 = vmul.f32 %v2266, 1.442695
      %v2285 = vpow.pop %v2284
      %v2286 = vmul.f32 %v2267, 1.442695
      %v2287 = vpow.pop %v2286
      %v2288 = vmul.f32 %v2268, 1.442695
      %v2289 = vpow.pop %v2288
      %v2290 = vmul.f32 %v2269, 1.442695
      %v2291 = vpow.pop %v2290
      %v2292 = vmul.f32 %v2270, 1.442695
      %v2293 = vpow.pop %v2292
      %v2294 = vmul.f32 %v2271, 1.442695
      %v2295 = vpow.pop %v2294
      %v2296 = vmul.f32 %v2272, 1.442695
      %v2297 = vpow.pop %v2296
      %v2298 = vmul.f32 %v2273, 1.442695
      %v2299 = vpow.pop %v2298
      %v2300 = vmul.f32 %v2274, 1.442695
      %v2301 = vpow.pop %v2300
      %v2302 = vmul.f32 %v2275, 1.442695
      %v2303 = vpow.pop %v2302
      %v2304 = vmul.f32 %v2276, 1.442695
      %v2305 = vpow.pop %v2304
      %v2306 = vmul.f32 %v2277, 1.442695
      %v2307 = vpow.pop %v2306
      %v2308 = vmul.f32 %v2278, 1.442695
      %v2309 = vpow.pop %v2308
      %v2310 = vmul.f32 %v2279, 1.442695
      %v2311 = vpow.pop %v2310
      %v2312 = vmul.f32 %v2064, %v2281
      %v2313 = vmul.f32 %v2065, %v2283
      %v2314 = vmul.f32 %v2066, %v2285
      %v2315 = vmul.f32 %v2067, %v2287
      %v2316 = vmul.f32 %v2068, %v2289
      %v2317 = vmul.f32 %v2069, %v2291
      %v2318 = vmul.f32 %v2070, %v2293
      %v2319 = vmul.f32 %v2071, %v2295
      %v2320 = vmul.f32 %v2072, %v2297
      %v2321 = vmul.f32 %v2073, %v2299
      %v2322 = vmul.f32 %v2074, %v2301
      %v2323 = vmul.f32 %v2075, %v2303
      %v2324 = vmul.f32 %v2076, %v2305
      %v2325 = vmul.f32 %v2077, %v2307
      %v2326 = vmul.f32 %v2078, %v2309
      %v2327 = vmul.f32 %v2079, %v2311
      %v2328 = vld [vmem:[%s7] sm:$0xf]
      %v2330 = vperm.slane %v2328, 0
      %v2331 = vperm.slane %v2328, 1
      %v2332 = vperm.slane %v2328, 2
      %v2333 = vperm.slane %v2328, 3
      %v2338 = vmul.f32 %v2312, %v2330
      %v2339 = vmul.f32 %v2313, %v2331
      %v2340 = vmul.f32 %v2314, %v2332
      %v2341 = vmul.f32 %v2315, %v2333
      %v2342 = vmul.f32 %v2316, %v2330
      %v2343 = vmul.f32 %v2317, %v2331
      %v2344 = vmul.f32 %v2318, %v2332
      %v2345 = vmul.f32 %v2319, %v2333
      %v2346 = vmul.f32 %v2320, %v2330
      %v2347 = vmul.f32 %v2321, %v2331
      %v2348 = vmul.f32 %v2322, %v2332
      %v2349 = vmul.f32 %v2323, %v2333
      %v2350 = vmul.f32 %v2324, %v2330
      %v2351 = vmul.f32 %v2325, %v2331
      %v2352 = vmul.f32 %v2326, %v2332
      %v2353 = vmul.f32 %v2327, %v2333
      %2354 = vst [vmem:[%s305] sm:$0xff] %v2338
      %2355 = vst [vmem:[%s305 + $0x8] sm:$0xff] %v2339
      %2356 = vst [vmem:[%s305 + $0x10] sm:$0xff] %v2340
      %2357 = vst [vmem:[%s305 + $0x18] sm:$0xff] %v2341
      %2358 = vst [vmem:[%s305 + $0x20] sm:$0xff] %v2342
      %2359 = vst [vmem:[%s305 + $0x28] sm:$0xff] %v2343
      %2360 = vst [vmem:[%s305 + $0x30] sm:$0xff] %v2344
      %2361 = vst [vmem:[%s305 + $0x38] sm:$0xff] %v2345
      %2362 = vst [vmem:[%s305 + $0x40] sm:$0xff] %v2346
      %2363 = vst [vmem:[%s305 + $0x48] sm:$0xff] %v2347
      %2364 = vst [vmem:[%s305 + $0x50] sm:$0xff] %v2348
      %2365 = vst [vmem:[%s305 + $0x58] sm:$0xff] %v2349
      %2366 = vst [vmem:[%s305 + $0x60] sm:$0xff] %v2350
      %2367 = vst [vmem:[%s305 + $0x68] sm:$0xff] %v2351
      %2368 = vst [vmem:[%s305 + $0x70] sm:$0xff] %v2352
      %2369 = vst [vmem:[%s305 + $0x78] sm:$0xff] %v2353
      %p2370 = scmp.lt.s32.totalorder %s19, 1
      %s2371 = scalar_select %p2370, %s19, 1
      %s2372 = smul.addr %s2371, 16
      %s2373 = smul.addr %s2372, 8
      %s2374 = scalar_lea.vmem %s8, %s2373
      // Predicated region
      $region53: #{dcfnet_forward.2} parent=51 // pred_check
        %p2375 = pneg %p210
      $region54: #{dcfnet_forward.2} parent=51 // pred_check_branch
        %2377 = sbr.rel (%p2375) target = $region56
      $region55: #{dcfnet_forward.2} parent=51 // pred_region
        _
      $region56: #{dcfnet_forward.2} parent=51 // pred_fallthru
        _
    $region52: #{dcfnet_forward.2} parent=5 // pred_fallthru
      _
    %p2378 = scmp.le.s32.totalorder 2, %s14
    // Predicated region
    $region57: #{dcfnet_forward.2} parent=5 // pred_check
      %p2379 = pneg %p2378
    $region58: #{dcfnet_forward.2} parent=5 // pred_check_branch
      %2381 = sbr.rel (%p2379) target = $region60
    $region59: #{dcfnet_forward.2} parent=5 // pred_region
      %s2382 = ssub.s32 %s14, 2
      // Predicated region
      $region61: #{dcfnet_forward.2} parent=59 // pred_check
        %p2383 = pneg %p216
      $region62: #{dcfnet_forward.2} parent=59 // pred_check_branch
        %2385 = sbr.rel (%p2383) target = $region64
      $region63: #{dcfnet_forward.2} parent=59 // pred_region
        %p2386 = scmp.lt.s32.totalorder %s20, 1
        %s2387 = scalar_select %p2386, %s20, 1
        %s2388 = smul.addr %s2387, 16
        %s2389 = smul.addr %s2388, 8
        %s2390 = scalar_lea.vmem %s8, %s2389
      $region64: #{dcfnet_forward.2} parent=59 // pred_fallthru
        _
    $region60: #{dcfnet_forward.2} parent=5 // pred_fallthru
      _
  $region6: #{dcfnet_forward.2} parent=0 // loop_footer
    %s18 = sadd.s32 1, %s14
  $region7: #{dcfnet_forward.2} parent=0 // loop_footer_branch
    %13 = sbr.rel target = $region3
  $region8: #{dcfnet_forward.2} parent=0 // loop_exit
    _

// kernel: reverse.0
$region0: #{reverse.0}
  %s0 = inlined_call_operand.vmem [shape: f32[2,16,7], index: 0, kind: input, shape index: {}]
  %s1 = inlined_call_operand.vmem [shape: f32[2,16,7], index: 1, kind: output, shape index: {}]
  $region1: #{reverse.0} parent=0
    #allocation0 [shape = 'u8[16384]{0}', space=vmem, size = 0x4000, scoped, tag = 'operand span for operand 0']
    #allocation1 [shape = 'u8[8192]{0}', space=vmem, size = 0x2000, scoped, tag = 'operand span for operand 1']
    %s2 = scalar_lea.vmem [#allocation0], 8
    // Predicated region
    $region2: #{reverse.0} parent=1 // pred_check
      _
    $region3: #{reverse.0} parent=1 // pred_check_branch
      %4 = sbr.rel (0) target = $region5
    $region4: #{reverse.0} parent=1 // pred_region
      // Predicated region
      $region6: #{reverse.0} parent=4 // pred_check
        _
      $region7: #{reverse.0} parent=4 // pred_check_branch
        %6 = sbr.rel (0) target = $region9
      $region8: #{reverse.0} parent=4 // pred_region
        // Predicated region
        $region21: #{reverse.0} parent=8 // pred_check
          _
        $region22: #{reverse.0} parent=8 // pred_check_branch
          %24 = sbr.rel (0) target = $region24
        $region23: #{reverse.0} parent=8 // pred_region
          loop: start=0, step=1, limit=1
          $region25: #{reverse.0} parent=23 // loop_pre_header
            _
          $region26: #{reverse.0} parent=23 // loop_header
            %s26 = sphi 0, %s30
            %p27 = scmp.ge.s32.totalorder %s26, 1
            %s31 = sphi %s0, %s0
            %s32 = sphi %s2, %s2
          $region27: #{reverse.0} parent=23 // loop_header_branch
            %29 = sbr.rel (%p27) target = $region31
          $region28: #{reverse.0} parent=23 // loop_body
            %v33 = vld [vmem:[%s31] sm:$0xff]
            %34 = vst [vmem:[%s32] sm:$0xff] %v33
            %v35 = vld [vmem:[%s31 + $0x8] sm:$0xff]
            %36 = vst [vmem:[%s32 + $0x10] sm:$0xff] %v35
          $region29: #{reverse.0} parent=23 // loop_footer
            %s30 = sadd.s32 1, %s26
          $region30: #{reverse.0} parent=23 // loop_footer_branch
            %25 = sbr.rel target = $region26
          $region31: #{reverse.0} parent=23 // loop_exit
            _
        $region24: #{reverse.0} parent=8 // pred_fallthru
          _
        // Predicated region
        $region32: #{reverse.0} parent=8 // pred_check
          _
        $region33: #{reverse.0} parent=8 // pred_check_branch
          %38 = sbr.rel target = $region35
        $region34: #{reverse.0} parent=8 // pred_region
          _
        $region35: #{reverse.0} parent=8 // pred_fallthru
          _
      $region9: #{reverse.0} parent=4 // pred_fallthru
        _
      // Predicated region
      $region10: #{reverse.0} parent=4 // pred_check
        _
      $region11: #{reverse.0} parent=4 // pred_check_branch
        %8 = sbr.rel target = $region13
      $region12: #{reverse.0} parent=4 // pred_region
        %s10 = ssub.s32 256, 1
        loop: start=0, step=1, limit=1
        $region14: #{reverse.0} parent=12 // loop_pre_header
          _
        $region15: #{reverse.0} parent=12 // loop_header
          %s12 = sphi 0, %s16
          %p13 = scmp.ge.s32.totalorder %s12, 1
          %s17 = sphi %s0, %s0
          %s18 = sphi %s2, %s2
        $region16: #{reverse.0} parent=12 // loop_header_branch
          %15 = sbr.rel (%p13) target = $region20
        $region17: #{reverse.0} parent=12 // loop_body
          %v19 = vld [vmem:[%s17] sm:%s10]
          %20 = vst [vmem:[%s18] sm:%s10] %v19
          %v21 = vld [vmem:[%s17 + $0x8] sm:%s10]
          %22 = vst [vmem:[%s18 + $0x10] sm:%s10] %v21
        $region18: #{reverse.0} parent=12 // loop_footer
          %s16 = sadd.s32 1, %s12
        $region19: #{reverse.0} parent=12 // loop_footer_branch
          %11 = sbr.rel target = $region15
        $region20: #{reverse.0} parent=12 // loop_exit
          _
      $region13: #{reverse.0} parent=4 // pred_fallthru
        _
    $region5: #{reverse.0} parent=1 // pred_fallthru
      _
    %39 = vnop
    %s40 = scalar_lea.vmem [#allocation0], 7
    %v41 = vld [vmem:[%s40] ss:$-1 sm:$0xff]
    %v42 = vrot.slane %v41, 1
    %43 = vst [vmem:[#allocation1] sm:$0xff] %v42
    %s44 = scalar_lea.vmem [#allocation0], 8
    %s45 = scalar_lea.vmem %s44, 7 [#allocation0]
    %v46 = vld [vmem:[%s45] ss:$-1 sm:$0xff]
    %v47 = vrot.slane %v46, 1
    %v48 = vlaneseq
    %v49 = vshrl.u32 %v48, 7
    %vm50 = vcmp.lt.s32.totalorder %v49, 7
    %51 = vst.msk [vmem:[#allocation1] sm:$0xff] %vm50, %v47
    %s52 = scalar_lea.vmem [#allocation1], 8
    %s53 = scalar_lea.vmem [#allocation0], 16
    %s54 = scalar_lea.vmem %s53, 7 [#allocation0]
    %v55 = vld [vmem:[%s54] ss:$-1 sm:$0xff]
    %v56 = vrot.slane %v55, 1
    %57 = vst [vmem:[%s52] sm:$0xff] %v56
    %s58 = scalar_lea.vmem %s53, 8 [#allocation0]
    %s59 = scalar_lea.vmem %s58, 7 [#allocation0]
    %v60 = vld [vmem:[%s59] ss:$-1 sm:$0xff]
    %v61 = vrot.slane %v60, 1
    %v62 = vlaneseq
    %v63 = vshrl.u32 %v62, 7
    %vm64 = vcmp.lt.s32.totalorder %v63, 7
    %65 = vst.msk [vmem:[%s52] sm:$0xff] %vm64, %v61
    // Predicated region
    $region36: #{reverse.0} parent=1 // pred_check
      _
    $region37: #{reverse.0} parent=1 // pred_check_branch
      %67 = sbr.rel (0) target = $region39
    $region38: #{reverse.0} parent=1 // pred_region
      // Predicated region
      $region40: #{reverse.0} parent=38 // pred_check
        _
      $region41: #{reverse.0} parent=38 // pred_check_branch
        %69 = sbr.rel (0) target = $region43
      $region42: #{reverse.0} parent=38 // pred_region
        // Predicated region
        $region55: #{reverse.0} parent=42 // pred_check
          _
        $region56: #{reverse.0} parent=42 // pred_check_branch
          %87 = sbr.rel (0) target = $region58
        $region57: #{reverse.0} parent=42 // pred_region
          loop: start=0, step=1, limit=1
          $region59: #{reverse.0} parent=57 // loop_pre_header
            _
          $region60: #{reverse.0} parent=57 // loop_header
            %s89 = sphi 0, %s93
            %p90 = scmp.ge.s32.totalorder %s89, 1
            %s94 = sphi [#allocation1], [#allocation1]
            %s95 = sphi %s1, %s1
          $region61: #{reverse.0} parent=57 // loop_header_branch
            %92 = sbr.rel (%p90) target = $region65
          $region62: #{reverse.0} parent=57 // loop_body
            %v96 = vld [vmem:[%s94] sm:$0xff]
            %97 = vst [vmem:[%s95] sm:$0xff] %v96
            %v98 = vld [vmem:[%s94 + $0x8] sm:$0xff]
            %99 = vst [vmem:[%s95 + $0x8] sm:$0xff] %v98
          $region63: #{reverse.0} parent=57 // loop_footer
            %s93 = sadd.s32 1, %s89
          $region64: #{reverse.0} parent=57 // loop_footer_branch
            %88 = sbr.rel target = $region60
          $region65: #{reverse.0} parent=57 // loop_exit
            _
        $region58: #{reverse.0} parent=42 // pred_fallthru
          _
        // Predicated region
        $region66: #{reverse.0} parent=42 // pred_check
          _
        $region67: #{reverse.0} parent=42 // pred_check_branch
          %101 = sbr.rel target = $region69
        $region68: #{reverse.0} parent=42 // pred_region
          _
        $region69: #{reverse.0} parent=42 // pred_fallthru
          _
      $region43: #{reverse.0} parent=38 // pred_fallthru
        _
      // Predicated region
      $region44: #{reverse.0} parent=38 // pred_check
        _
      $region45: #{reverse.0} parent=38 // pred_check_branch
        %71 = sbr.rel target = $region47
      $region46: #{reverse.0} parent=38 // pred_region
        %s73 = ssub.s32 256, 1
        loop: start=0, step=1, limit=1
        $region48: #{reverse.0} parent=46 // loop_pre_header
          _
        $region49: #{reverse.0} parent=46 // loop_header
          %s75 = sphi 0, %s79
          %p76 = scmp.ge.s32.totalorder %s75, 1
          %s80 = sphi [#allocation1], [#allocation1]
          %s81 = sphi %s1, %s1
        $region50: #{reverse.0} parent=46 // loop_header_branch
          %78 = sbr.rel (%p76) target = $region54
        $region51: #{reverse.0} parent=46 // loop_body
          %v82 = vld [vmem:[%s80] sm:%s73]
          %83 = vst [vmem:[%s81] sm:%s73] %v82
          %v84 = vld [vmem:[%s80 + $0x8] sm:%s73]
          %85 = vst [vmem:[%s81 + $0x8] sm:%s73] %v84
        $region52: #{reverse.0} parent=46 // loop_footer
          %s79 = sadd.s32 1, %s75
        $region53: #{reverse.0} parent=46 // loop_footer_branch
          %74 = sbr.rel target = $region49
        $region54: #{reverse.0} parent=46 // loop_exit
          _
      $region47: #{reverse.0} parent=38 // pred_fallthru
        _
    $region39: #{reverse.0} parent=1 // pred_fallthru
      _
    %102 = vnop

// kernel: dcfnet_forward.3
$region0: #{dcfnet_forward.3}
  #allocation0 [shape = 'u32[]', space=smem, size = 0x4, offset = 0x4, fixed_abs, tag = 'smem constant byte address 0x4 - core index']
  #allocation1 [shape = 'u32[72,128]{1,0:T(1,128)}', space=vmem, size = 0x9000, scoped, tag = 'internal scratch']
  %s0 = inlined_call_operand.vmem [shape: f32[2,32,144], index: 0, kind: input, shape index: {}]
  %s1 = inlined_call_operand.vmem [shape: f32[2,32,144], index: 1, kind: input, shape index: {}]
  %s2 = inlined_call_operand.vmem [shape: f32[32,144], index: 2, kind: input, shape index: {}]
  %s3 = inlined_call_operand.vmem [shape: f32[32,144], index: 3, kind: input, shape index: {}]
  %s4 = inlined_call_operand.vmem [shape: f32[1,144], index: 4, kind: input, shape index: {}]
  %s5 = inlined_call_operand.vmem [shape: f32[1,144], index: 5, kind: input, shape index: {}]
  %s6 = inlined_call_operand.vmem [shape: f32[2,144], index: 6, kind: output, shape index: {0}]
  %s7 = inlined_call_operand.vmem [shape: f32[2,144], index: 7, kind: output, shape index: {1}]
  %8 = xla_tuple %s6, %s7
  %s9 = sld [smem:[#allocation0]]
  $region42: #{dcfnet_forward.3} parent=0
    _
  %s11 = ssub.s32 1, %s9
  %s12 = scalar_select 0, %s11, %s9
  // Predicated region
  $region2: #{dcfnet_forward.3} parent=0 // pred_check
    _
  $region3: #{dcfnet_forward.3} parent=0 // pred_check_branch
    %14 = sbr.rel (0) target = $region5
  $region4: #{dcfnet_forward.3} parent=0 // pred_region
    _
  $region5: #{dcfnet_forward.3} parent=0 // pred_fallthru
    _
  // Predicated region
  $region6: #{dcfnet_forward.3} parent=0 // pred_check
    _
  $region7: #{dcfnet_forward.3} parent=0 // pred_check_branch
    %16 = sbr.rel (0) target = $region9
  $region8: #{dcfnet_forward.3} parent=0 // pred_region
    _
  $region9: #{dcfnet_forward.3} parent=0 // pred_fallthru
    _
  // Predicated region
  $region10: #{dcfnet_forward.3} parent=0 // pred_check
    _
  $region11: #{dcfnet_forward.3} parent=0 // pred_check_branch
    %18 = sbr.rel (0) target = $region13
  $region12: #{dcfnet_forward.3} parent=0 // pred_region
    _
  $region13: #{dcfnet_forward.3} parent=0 // pred_fallthru
    _
  // Predicated region
  $region14: #{dcfnet_forward.3} parent=0 // pred_check
    _
  $region15: #{dcfnet_forward.3} parent=0 // pred_check_branch
    %20 = sbr.rel (0) target = $region17
  $region16: #{dcfnet_forward.3} parent=0 // pred_region
    _
  $region17: #{dcfnet_forward.3} parent=0 // pred_fallthru
    _
  // Predicated region
  $region18: #{dcfnet_forward.3} parent=0 // pred_check
    _
  $region19: #{dcfnet_forward.3} parent=0 // pred_check_branch
    %22 = sbr.rel (0) target = $region21
  $region20: #{dcfnet_forward.3} parent=0 // pred_region
    _
  $region21: #{dcfnet_forward.3} parent=0 // pred_fallthru
    _
  // Predicated region
  $region22: #{dcfnet_forward.3} parent=0 // pred_check
    _
  $region23: #{dcfnet_forward.3} parent=0 // pred_check_branch
    %24 = sbr.rel (0) target = $region25
  $region24: #{dcfnet_forward.3} parent=0 // pred_region
    _
  $region25: #{dcfnet_forward.3} parent=0 // pred_fallthru
    _
  %v25 = vld [vmem:[%s0] sm:$0xff]
  %v26 = vld [vmem:[%s0 + $0x8] sm:$0xff]
  %v27 = vld [vmem:[%s0 + $0x10] sm:$0xff]
  %v28 = vld [vmem:[%s0 + $0x18] sm:$0xff]
  %v29 = vld [vmem:[%s0 + $0x20] sm:$0xff]
  %v30 = vld [vmem:[%s0 + $0x28] sm:$0xff]
  %v31 = vld [vmem:[%s0 + $0x30] sm:$0xff]
  %v32 = vld [vmem:[%s0 + $0x38] sm:$0xff]
  %v33 = vld [vmem:[%s0 + $0x40] sm:$0xff]
  %v34 = vld [vmem:[%s0 + $0x48] sm:$0xff]
  %v35 = vld [vmem:[%s0 + $0x50] sm:$0xff]
  %v36 = vld [vmem:[%s0 + $0x58] sm:$0xff]
  %v37 = vld [vmem:[%s0 + $0x60] sm:$0xff]
  %v38 = vld [vmem:[%s0 + $0x68] sm:$0xff]
  %v39 = vld [vmem:[%s0 + $0x70] sm:$0xff]
  %v40 = vld [vmem:[%s0 + $0x78] sm:$0xff]
  %v41 = vld [vmem:[%s1] sm:$0xff]
  %v42 = vld [vmem:[%s1 + $0x8] sm:$0xff]
  %v43 = vld [vmem:[%s1 + $0x10] sm:$0xff]
  %v44 = vld [vmem:[%s1 + $0x18] sm:$0xff]
  %v45 = vld [vmem:[%s1 + $0x20] sm:$0xff]
  %v46 = vld [vmem:[%s1 + $0x28] sm:$0xff]
  %v47 = vld [vmem:[%s1 + $0x30] sm:$0xff]
  %v48 = vld [vmem:[%s1 + $0x38] sm:$0xff]
  %v49 = vld [vmem:[%s1 + $0x40] sm:$0xff]
  %v50 = vld [vmem:[%s1 + $0x48] sm:$0xff]
  %v51 = vld [vmem:[%s1 + $0x50] sm:$0xff]
  %v52 = vld [vmem:[%s1 + $0x58] sm:$0xff]
  %v53 = vld [vmem:[%s1 + $0x60] sm:$0xff]
  %v54 = vld [vmem:[%s1 + $0x68] sm:$0xff]
  %v55 = vld [vmem:[%s1 + $0x70] sm:$0xff]
  %v56 = vld [vmem:[%s1 + $0x78] sm:$0xff]
  %v57 = vld [vmem:[%s2] sm:$0xff]
  %v58 = vld [vmem:[%s2 + $0x8] sm:$0xff]
  %v59 = vld [vmem:[%s2 + $0x10] sm:$0xff]
  %v60 = vld [vmem:[%s2 + $0x18] sm:$0xff]
  %v61 = vld [vmem:[%s2 + $0x20] sm:$0xff]
  %v62 = vld [vmem:[%s2 + $0x28] sm:$0xff]
  %v63 = vld [vmem:[%s2 + $0x30] sm:$0xff]
  %v64 = vld [vmem:[%s2 + $0x38] sm:$0xff]
  %v65 = vld [vmem:[%s3] sm:$0xff]
  %v66 = vld [vmem:[%s3 + $0x8] sm:$0xff]
  %v67 = vld [vmem:[%s3 + $0x10] sm:$0xff]
  %v68 = vld [vmem:[%s3 + $0x18] sm:$0xff]
  %v69 = vld [vmem:[%s3 + $0x20] sm:$0xff]
  %v70 = vld [vmem:[%s3 + $0x28] sm:$0xff]
  %v71 = vld [vmem:[%s3 + $0x30] sm:$0xff]
  %v72 = vld [vmem:[%s3 + $0x38] sm:$0xff]
  %v73 = vmul.f32 %v25, %v57
  %v74 = vmul.f32 %v26, %v58
  %v75 = vmul.f32 %v27, %v59
  %v76 = vmul.f32 %v28, %v60
  %v77 = vmul.f32 %v29, %v61
  %v78 = vmul.f32 %v30, %v62
  %v79 = vmul.f32 %v31, %v63
  %v80 = vmul.f32 %v32, %v64
  %v81 = vmul.f32 %v33, %v57
  %v82 = vmul.f32 %v34, %v58
  %v83 = vmul.f32 %v35, %v59
  %v84 = vmul.f32 %v36, %v60
  %v85 = vmul.f32 %v37, %v61
  %v86 = vmul.f32 %v38, %v62
  %v87 = vmul.f32 %v39, %v63
  %v88 = vmul.f32 %v40, %v64
  %v89 = vmul.f32 %v41, %v65
  %v90 = vmul.f32 %v42, %v66
  %v91 = vmul.f32 %v43, %v67
  %v92 = vmul.f32 %v44, %v68
  %v93 = vmul.f32 %v45, %v69
  %v94 = vmul.f32 %v46, %v70
  %v95 = vmul.f32 %v47, %v71
  %v96 = vmul.f32 %v48, %v72
  %v97 = vmul.f32 %v49, %v65
  %v98 = vmul.f32 %v50, %v66
  %v99 = vmul.f32 %v51, %v67
  %v100 = vmul.f32 %v52, %v68
  %v101 = vmul.f32 %v53, %v69
  %v102 = vmul.f32 %v54, %v70
  %v103 = vmul.f32 %v55, %v71
  %v104 = vmul.f32 %v56, %v72
  %v105 = vadd.f32 %v73, %v89
  %v106 = vadd.f32 %v74, %v90
  %v107 = vadd.f32 %v75, %v91
  %v108 = vadd.f32 %v76, %v92
  %v109 = vadd.f32 %v77, %v93
  %v110 = vadd.f32 %v78, %v94
  %v111 = vadd.f32 %v79, %v95
  %v112 = vadd.f32 %v80, %v96
  %v113 = vadd.f32 %v81, %v97
  %v114 = vadd.f32 %v82, %v98
  %v115 = vadd.f32 %v83, %v99
  %v116 = vadd.f32 %v84, %v100
  %v117 = vadd.f32 %v85, %v101
  %v118 = vadd.f32 %v86, %v102
  %v119 = vadd.f32 %v87, %v103
  %v120 = vadd.f32 %v88, %v104
  %v121 = vadd.f32 %v105, %v107
  %v122 = vadd.f32 %v121, %v109
  %v123 = vadd.f32 %v122, %v111
  %v124 = vrot.slane %v123, 4
  %v125 = vadd.f32 %v123, %v124
  %v126 = vrot.slane %v125, 2
  %v127 = vadd.f32 %v125, %v126
  %v128 = vrot.slane %v127, 1
  %v129 = vadd.f32 %v127, %v128
  %vm130 = vcmask 130048
  %v131 = vsel %vm130, %v106, 0.0
  %v132 = vsel %vm130, %v108, 0.0
  %v133 = vadd.f32 %v131, %v132
  %v134 = vsel %vm130, %v110, 0.0
  %v135 = vadd.f32 %v133, %v134
  %v136 = vsel %vm130, %v112, 0.0
  %v137 = vadd.f32 %v135, %v136
  %v138 = vrot.slane %v137, 4
  %v139 = vadd.f32 %v137, %v138
  %v140 = vrot.slane %v139, 2
  %v141 = vadd.f32 %v139, %v140
  %v142 = vrot.slane %v141, 1
  %v143 = vadd.f32 %v141, %v142
  %v144 = vadd.f32 %v113, %v115
  %v145 = vadd.f32 %v144, %v117
  %v146 = vadd.f32 %v145, %v119
  %v147 = vrot.slane %v146, 4
  %v148 = vadd.f32 %v146, %v147
  %v149 = vrot.slane %v148, 2
  %v150 = vadd.f32 %v148, %v149
  %v151 = vrot.slane %v150, 1
  %v152 = vadd.f32 %v150, %v151
  %v153 = vsel %vm130, %v114, 0.0
  %v154 = vsel %vm130, %v116, 0.0
  %v155 = vadd.f32 %v153, %v154
  %v156 = vsel %vm130, %v118, 0.0
  %v157 = vadd.f32 %v155, %v156
  %v158 = vsel %vm130, %v120, 0.0
  %v159 = vadd.f32 %v157, %v158
  %v160 = vrot.slane %v159, 4
  %v161 = vadd.f32 %v159, %v160
  %v162 = vrot.slane %v161, 2
  %v163 = vadd.f32 %v161, %v162
  %v164 = vrot.slane %v163, 1
  %v165 = vadd.f32 %v163, %v164
  %v166 = vmul.f32 %v41, %v57
  %v167 = vmul.f32 %v42, %v58
  %v168 = vmul.f32 %v43, %v59
  %v169 = vmul.f32 %v44, %v60
  %v170 = vmul.f32 %v45, %v61
  %v171 = vmul.f32 %v46, %v62
  %v172 = vmul.f32 %v47, %v63
  %v173 = vmul.f32 %v48, %v64
  %v174 = vmul.f32 %v49, %v57
  %v175 = vmul.f32 %v50, %v58
  %v176 = vmul.f32 %v51, %v59
  %v177 = vmul.f32 %v52, %v60
  %v178 = vmul.f32 %v53, %v61
  %v179 = vmul.f32 %v54, %v62
  %v180 = vmul.f32 %v55, %v63
  %v181 = vmul.f32 %v56, %v64
  %v182 = vmul.f32 %v25, %v65
  %v183 = vmul.f32 %v26, %v66
  %v184 = vmul.f32 %v27, %v67
  %v185 = vmul.f32 %v28, %v68
  %v186 = vmul.f32 %v29, %v69
  %v187 = vmul.f32 %v30, %v70
  %v188 = vmul.f32 %v31, %v71
  %v189 = vmul.f32 %v32, %v72
  %v190 = vmul.f32 %v33, %v65
  %v191 = vmul.f32 %v34, %v66
  %v192 = vmul.f32 %v35, %v67
  %v193 = vmul.f32 %v36, %v68
  %v194 = vmul.f32 %v37, %v69
  %v195 = vmul.f32 %v38, %v70
  %v196 = vmul.f32 %v39, %v71
  %v197 = vmul.f32 %v40, %v72
  %v198 = vsub.f32 %v166, %v182
  %v199 = vsub.f32 %v167, %v183
  %v200 = vsub.f32 %v168, %v184
  %v201 = vsub.f32 %v169, %v185
  %v202 = vsub.f32 %v170, %v186
  %v203 = vsub.f32 %v171, %v187
  %v204 = vsub.f32 %v172, %v188
  %v205 = vsub.f32 %v173, %v189
  %v206 = vsub.f32 %v174, %v190
  %v207 = vsub.f32 %v175, %v191
  %v208 = vsub.f32 %v176, %v192
  %v209 = vsub.f32 %v177, %v193
  %v210 = vsub.f32 %v178, %v194
  %v211 = vsub.f32 %v179, %v195
  %v212 = vsub.f32 %v180, %v196
  %v213 = vsub.f32 %v181, %v197
  %v214 = vadd.f32 %v198, %v200
  %v215 = vadd.f32 %v214, %v202
  %v216 = vadd.f32 %v215, %v204
  %v217 = vrot.slane %v216, 4
  %v218 = vadd.f32 %v216, %v217
  %v219 = vrot.slane %v218, 2
  %v220 = vadd.f32 %v218, %v219
  %v221 = vrot.slane %v220, 1
  %v222 = vadd.f32 %v220, %v221
  %v223 = vsel %vm130, %v199, 0.0
  %v224 = vsel %vm130, %v201, 0.0
  %v225 = vadd.f32 %v223, %v224
  %v226 = vsel %vm130, %v203, 0.0
  %v227 = vadd.f32 %v225, %v226
  %v228 = vsel %vm130, %v205, 0.0
  %v229 = vadd.f32 %v227, %v228
  %v230 = vrot.slane %v229, 4
  %v231 = vadd.f32 %v229, %v230
  %v232 = vrot.slane %v231, 2
  %v233 = vadd.f32 %v231, %v232
  %v234 = vrot.slane %v233, 1
  %v235 = vadd.f32 %v233, %v234
  %v236 = vadd.f32 %v206, %v208
  %v237 = vadd.f32 %v236, %v210
  %v238 = vadd.f32 %v237, %v212
  %v239 = vrot.slane %v238, 4
  %v240 = vadd.f32 %v238, %v239
  %v241 = vrot.slane %v240, 2
  %v242 = vadd.f32 %v240, %v241
  %v243 = vrot.slane %v242, 1
  %v244 = vadd.f32 %v242, %v243
  %v245 = vsel %vm130, %v207, 0.0
  %v246 = vsel %vm130, %v209, 0.0
  %v247 = vadd.f32 %v245, %v246
  %v248 = vsel %vm130, %v211, 0.0
  %v249 = vadd.f32 %v247, %v248
  %v250 = vsel %vm130, %v213, 0.0
  %v251 = vadd.f32 %v249, %v250
  %v252 = vrot.slane %v251, 4
  %v253 = vadd.f32 %v251, %v252
  %v254 = vrot.slane %v253, 2
  %v255 = vadd.f32 %v253, %v254
  %v256 = vrot.slane %v255, 1
  %v257 = vadd.f32 %v255, %v256
  %v258 = vld [vmem:[%s4] sm:$0x3]
  %v259 = vld [vmem:[%s5] sm:$0x3]
  %v261 = vperm.slane %v258, 0
  %v262 = vperm.slane %v258, 1
  %v265 = vmul.f32 %v129, %v261
  %v266 = vmul.f32 %v143, %v262
  %v267 = vmul.f32 %v152, %v261
  %v268 = vmul.f32 %v165, %v262
  %v270 = vperm.slane %v259, 0
  %v271 = vperm.slane %v259, 1
  %v274 = vmul.f32 %v222, %v270
  %v275 = vmul.f32 %v235, %v271
  %v276 = vmul.f32 %v244, %v270
  %v277 = vmul.f32 %v257, %v271
  %v278 = vsub.f32 %v265, %v274
  %v279 = vsub.f32 %v266, %v275
  %v280 = vsub.f32 %v267, %v276
  %v281 = vsub.f32 %v268, %v277
  %v286 = vrot.slane %v279, 6
  %v287 = vrot.slane %v281, 6
  %vm288 = vcmask 1041408
  %v289 = vsel %vm288, %v278, %v286
  %v290 = vsel %vm288, %v280, %v287
  %vm291 = vcmask 1044484
  %v292 = vsel %vm291, %v289, %v289
  %vm293 = vcmask 1046534
  %v294 = vsel %vm293, %v289, %v292
  %v295 = vrot.slane %v290, 7
  %vm296 = vcmask 1041409
  %v297 = vsel %vm296, %v295, %v294
  %vm298 = vcmask 1043459
  %v299 = vsel %vm298, %v295, %v297
  %vm300 = vcmask 1045509
  %v301 = vsel %vm300, %v295, %v299
  %vm302 = vcmask 1047559
  %v303 = vsel %vm302, %v295, %v301
  %vm305 = vcmask 125954
  %vm306 = vmor %vm305, %vm288
  %307 = vst.msk [vmem:[%s6] sm:$0xf] %vm306, %v303
  %v308 = vmul.f32 %v129, %v270
  %v309 = vmul.f32 %v143, %v271
  %v310 = vmul.f32 %v152, %v270
  %v311 = vmul.f32 %v165, %v271
  %v312 = vmul.f32 %v222, %v261
  %v313 = vmul.f32 %v235, %v262
  %v314 = vmul.f32 %v244, %v261
  %v315 = vmul.f32 %v257, %v262
  %v316 = vadd.f32 %v308, %v312
  %v317 = vadd.f32 %v309, %v313
  %v318 = vadd.f32 %v310, %v314
  %v319 = vadd.f32 %v311, %v315
  %v324 = vrot.slane %v317, 6
  %v325 = vrot.slane %v319, 6
  %v326 = vsel %vm288, %v316, %v324
  %v327 = vsel %vm288, %v318, %v325
  %v328 = vsel %vm291, %v326, %v326
  %v329 = vsel %vm293, %v326, %v328
  %v330 = vrot.slane %v327, 7
  %v331 = vsel %vm296, %v330, %v329
  %v332 = vsel %vm298, %v330, %v331
  %v333 = vsel %vm300, %v330, %v332
  %v334 = vsel %vm302, %v330, %v333
  %336 = vst.msk [vmem:[%s7] sm:$0xf] %vm306, %v334
  // Predicated region
  $region26: #{dcfnet_forward.3} parent=0 // pred_check
    _
  $region27: #{dcfnet_forward.3} parent=0 // pred_check_branch
    %338 = sbr.rel (0) target = $region29
  $region28: #{dcfnet_forward.3} parent=0 // pred_region
    _
  $region29: #{dcfnet_forward.3} parent=0 // pred_fallthru
    _
  // Predicated region
  $region30: #{dcfnet_forward.3} parent=0 // pred_check
    _
  $region31: #{dcfnet_forward.3} parent=0 // pred_check_branch
    %340 = sbr.rel (0) target = $region33
  $region32: #{dcfnet_forward.3} parent=0 // pred_region
    _
  $region33: #{dcfnet_forward.3} parent=0 // pred_fallthru
    _
  // Predicated region
  $region34: #{dcfnet_forward.3} parent=0 // pred_check
    _
  $region35: #{dcfnet_forward.3} parent=0 // pred_check_branch
    %342 = sbr.rel (0) target = $region37
  $region36: #{dcfnet_forward.3} parent=0 // pred_region
    _
  $region37: #{dcfnet_forward.3} parent=0 // pred_fallthru
    _
  // Predicated region
  $region38: #{dcfnet_forward.3} parent=0 // pred_check
    _
  $region39: #{dcfnet_forward.3} parent=0 // pred_check_branch
    %344 = sbr.rel (0) target = $region41
  $region40: #{dcfnet_forward.3} parent=0 // pred_region
    _
  $region41: #{dcfnet_forward.3} parent=0 // pred_fallthru
    _

</llo_original>
